<compile_context>
chip_gen: v6e
topology: v6e:2x2x1
jax: 0.10.0
libtpu: 0.0.40
codegen_flags: <defaults>
</compile_context>

<pallas_src>
import math

import jax
import jax.numpy as jnp
from jax.experimental import pallas as pl
from jax.experimental.pallas import tpu as pltpu

LANE = 128


def _round_up(x, m):
    return (x + m - 1) // m * m


def _pick_tile(dim, unit, cap):
    """Largest multiple of `unit` that divides `dim` and is <= cap (dim % unit == 0)."""
    cap = max(unit, cap - cap % unit)
    t = min(dim, cap)
    while dim % t:
        t -= unit
    return t


# ----------------------- fused conv-matmul Pallas kernel ----------------------

def _make_fused_kernel(relu, has_residual):
    """acc += a@b over the K grid axis; on the last K step:
    y = acc*scale + bias (+ residual) (+ ReLU), written back in bf16."""
    if has_residual:
        def kernel(a_ref, b_ref, s_ref, c_ref, r_ref, o_ref, acc_ref):
            @pl.when(pl.program_id(2) == 0)
            def _():
                acc_ref[...] = jnp.zeros_like(acc_ref)

            acc_ref[...] += jnp.dot(a_ref[...], b_ref[...],
                                    preferred_element_type=jnp.float32)

            @pl.when(pl.program_id(2) == pl.num_programs(2) - 1)
            def _():
                y = acc_ref[...] * s_ref[...] + c_ref[...] \
                    + r_ref[...].astype(jnp.float32)
                if relu:
                    y = jnp.maximum(y, 0.0)
                o_ref[...] = y.astype(o_ref.dtype)
    else:
        def kernel(a_ref, b_ref, s_ref, c_ref, o_ref, acc_ref):
            @pl.when(pl.program_id(2) == 0)
            def _():
                acc_ref[...] = jnp.zeros_like(acc_ref)

            acc_ref[...] += jnp.dot(a_ref[...], b_ref[...],
                                    preferred_element_type=jnp.float32)

            @pl.when(pl.program_id(2) == pl.num_programs(2) - 1)
            def _():
                y = acc_ref[...] * s_ref[...] + c_ref[...]
                if relu:
                    y = jnp.maximum(y, 0.0)
                o_ref[...] = y.astype(o_ref.dtype)
    return kernel


def fused_matmul_bn(a, b, scale_row, bias_row, residual=None, *, relu=False):
    """y = [relu]( (a @ b) * scale + bias [+ residual] ), bf16 out, f32 accumulation.

    a:        (M, K)  activations (bf16; K already padded to a multiple of 128).
    b:        (K, N)  pre-folded bf16 weight (N multiple of 128).
    scale_row/bias_row: (1, N) f32 folded BatchNorm affine.
    residual: optional (M, N) bf16, fused into the epilogue (upcast in-kernel).
    """
    M, K = a.shape
    Kb, N = b.shape
    assert K == Kb and K % LANE == 0 and N % LANE == 0

    Mp = _round_up(M, 16)
    tm = _pick_tile(Mp, 16, 512)
    tn = _pick_tile(N, LANE, 512)
    tk = _pick_tile(K, LANE, 2048)
    # v7x has 2 TensorCores: make sure the two "parallel" axes expose >= 2 tiles.
    if Mp // tm == 1 and N // tn == 1:
        if Mp >= 32:
            tm = _pick_tile(Mp, 16, Mp // 2)
        elif N >= 2 * LANE:
            tn = _pick_tile(N, LANE, N // 2)

    a_p = a if Mp == M else jnp.pad(a, ((0, Mp - M), (0, 0)))
    a_p = a_p.astype(jnp.bfloat16)   # no-op when the activation chain is bf16

    in_specs = [
        pl.BlockSpec((tm, tk), lambda i, j, k: (i, k)),
        pl.BlockSpec((tk, tn), lambda i, j, k: (k, j)),
        pl.BlockSpec((1, tn), lambda i, j, k: (0, j)),
        pl.BlockSpec((1, tn), lambda i, j, k: (0, j)),
    ]
    operands = [a_p, b, scale_row, bias_row]
    has_res = residual is not None
    if has_res:
        r_p = residual if Mp == M else jnp.pad(residual, ((0, Mp - M), (0, 0)))
        operands.append(r_p.astype(jnp.bfloat16))
        in_specs.append(pl.BlockSpec((tm, tn), lambda i, j, k: (i, j)))

    flops = 2 * Mp * N * K
    bytes_accessed = 2 * (Mp * K + K * N + Mp * N) + 8 * N \
        + (2 * Mp * N if has_res else 0)

    out = pl.pallas_call(
        _make_fused_kernel(relu, has_res),
        out_shape=jax.ShapeDtypeStruct((Mp, N), jnp.bfloat16),
        grid_spec=pltpu.PrefetchScalarGridSpec(
            num_scalar_prefetch=0,
            grid=(Mp // tm, N // tn, K // tk),
            in_specs=in_specs,
            out_specs=pl.BlockSpec((tm, tn), lambda i, j, k: (i, j)),
            scratch_shapes=[pltpu.VMEM((tm, tn), jnp.float32)]),
        compiler_params=pltpu.CompilerParams(
            dimension_semantics=("parallel", "parallel", "arbitrary"),
            vmem_limit_bytes=32 * 1024 * 1024),
        cost_estimate=pl.CostEstimate(
            flops=flops, bytes_accessed=bytes_accessed, transcendentals=0),
    )(*operands)
    return out if Mp == M else out[:M]


# --------------------------- conv wrapper (im2col glue) -----------------------

def conv_bn_act(x, folded, *, stride=1, padding=0, dilation=1, relu=False,
                residual=None):
    """F.conv2d(bias=False) + folded BatchNorm (+residual) (+ReLU), NHWC bf16.

    x:      (N, H, W, Cp) bf16, Cp multiple of 128.
    folded: (wflat (kh*kw*Cp, Op) bf16, scale (1,Op) f32, bias (1,Op) f32, kh, kw).
    """
    wflat, scale_row, bias_row, kh, kw = folded
    N, H, W, C = x.shape
    KK, O = wflat.shape
    assert KK == kh * kw * C

    if kh == 1 and kw == 1 and padding == 0 and dilation == 1:
        xs = x[:, ::stride, ::stride, :]
        oh, ow = xs.shape[1], xs.shape[2]
        col = xs.reshape(N * oh * ow, C)
    else:
        xp = jnp.pad(x, ((0, 0), (padding, padding), (padding, padding), (0, 0)))
        Hp, Wp = H + 2 * padding, W + 2 * padding
        oh = (Hp - dilation * (kh - 1) - 1) // stride + 1
        ow = (Wp - dilation * (kw - 1) - 1) // stride + 1
        cols = []
        for i in range(kh):
            for j in range(kw):
                sl = xp[:, i * dilation: i * dilation + (oh - 1) * stride + 1: stride,
                           j * dilation: j * dilation + (ow - 1) * stride + 1: stride, :]
                cols.append(sl)
        col = jnp.concatenate(cols, axis=-1).reshape(N * oh * ow, kh * kw * C)

    res2d = residual.reshape(N * oh * ow, O) if residual is not None else None
    y = fused_matmul_bn(col, wflat, scale_row, bias_row, res2d, relu=relu)
    return y.reshape(N, oh, ow, O)


# -------------------- parameter folding (done once, not per call) --------------

def _fold_conv_bn(w_oihw, scale, bias, cp_in, cp_out):
    """OIHW weight + BN affine -> (kh*kw*cp_in, cp_out) bf16 matrix + (1,cp_out) f32 rows."""
    O, Ci, kh, kw = w_oihw.shape
    w = jnp.pad(w_oihw, ((0, cp_out - O), (0, cp_in - Ci), (0, 0), (0, 0)))
    wflat = jnp.transpose(w, (2, 3, 1, 0)).reshape(kh * kw * cp_in, cp_out)
    wflat = wflat.astype(jnp.bfloat16)
    s = jnp.pad(scale, (0, cp_out - O)).reshape(1, cp_out).astype(jnp.float32)
    b = jnp.pad(bias, (0, cp_out - O)).reshape(1, cp_out).astype(jnp.float32)
    return (wflat, s, b, kh, kw)


def prepare_bottleneck(p, in_c):
    planes = p["conv1"].shape[0]
    out_c = p["conv3"].shape[0]
    cp_in, cp_mid, cp_out = (_round_up(c, LANE) for c in (in_c, planes, out_c))
    q = dict(stride=p["stride"], rate=p["rate"])
    q["conv1"] = _fold_conv_bn(p["conv1"], *p["bn1"], cp_in, cp_mid)
    q["conv2"] = _fold_conv_bn(p["conv2"], *p["bn2"], cp_mid, cp_mid)
    q["conv3"] = _fold_conv_bn(p["conv3"], *p["bn3"], cp_mid, cp_out)
    if "ds_conv" in p:
        q["ds"] = _fold_conv_bn(p["ds_conv"], *p["ds_bn"], cp_in, cp_out)
    return q


# ------------------------------ Bottleneck forward -----------------------------

def bottleneck_forward(q, x):
    """Bottleneck.forward on padded-channel NHWC bf16 activations (3-4 fused matmuls)."""
    out = conv_bn_act(x, q["conv1"], relu=True)
    out = conv_bn_act(out, q["conv2"], stride=q["stride"],
                      padding=q["rate"], dilation=q["rate"], relu=True)
    if "ds" in q:
        residual = conv_bn_act(x, q["ds"], stride=q["stride"], relu=False)
    else:
        residual = x
    # conv3 + bn3 + residual add + final ReLU fused in one kernel epilogue.
    return conv_bn_act(out, q["conv3"], relu=True, residual=residual)


def run_blocks_nchw(prep_blocks, x_nchw, out_c):
    x = jnp.transpose(x_nchw, (0, 2, 3, 1))                       # NCHW -> NHWC
    c = x.shape[-1]
    x = jnp.pad(x, ((0, 0), (0, 0), (0, 0), (0, _round_up(c, LANE) - c)))
    x = x.astype(jnp.bfloat16)                                    # bf16 chain end-to-end
    for q in prep_blocks:
        x = bottleneck_forward(q, x)
    x = x[..., :out_c].astype(jnp.float32)
    return jnp.transpose(x, (0, 3, 1, 2))                         # NHWC -> NCHW


# ------------------------------ parameter factory -------------------------------

class ParamGen:
    def __init__(self, seed=0):
        self._key = jax.random.PRNGKey(seed)

    def _next(self):
        self._key, k = jax.random.split(self._key)
        return k

    def conv(self, out_c, in_c, kh, kw):
        std = math.sqrt(2.0 / (out_c * kh * kw))   # kaiming_normal_(mode='fan_out')
        return std * jax.random.normal(self._next(), (out_c, in_c, kh, kw), jnp.float32)

    def bn(self, c, eps=1e-5):
        gamma = 1.0 + 0.1 * jax.random.normal(self._next(), (c,), jnp.float32)
        beta = 0.1 * jax.random.normal(self._next(), (c,), jnp.float32)
        mean = 0.1 * jax.random.normal(self._next(), (c,), jnp.float32)
        var = 1.0 + 0.1 * jnp.abs(jax.random.normal(self._next(), (c,), jnp.float32))
        scale = gamma / jnp.sqrt(var + eps)
        return scale, beta - mean * scale


def make_bottleneck(pg, inplanes, planes, stride=1, downsample=False, rate=1):
    p = dict(stride=stride, rate=rate)
    p["conv1"], p["bn1"] = pg.conv(planes, inplanes, 1, 1), pg.bn(planes)
    p["conv2"], p["bn2"] = pg.conv(planes, planes, 3, 3), pg.bn(planes)
    p["conv3"], p["bn3"] = pg.conv(planes * 4, planes, 1, 1), pg.bn(planes * 4)
    if downsample:
        p["ds_conv"], p["ds_bn"] = pg.conv(planes * 4, inplanes, 1, 1), pg.bn(planes * 4)
    return p


# ------------------------------ pure-JAX reference ------------------------------

def _ref_conv(x, w, stride=1, padding=0, dilation=1):
    return jax.lax.conv_general_dilated(
        x, jnp.transpose(w, (2, 3, 1, 0)),
        window_strides=(stride, stride),
        padding=((padding, padding), (padding, padding)),
        rhs_dilation=(dilation, dilation),
        dimension_numbers=("NHWC", "HWIO", "NHWC"))


def bottleneck_ref(p, x):
    s1, b1 = p["bn1"]; s2, b2 = p["bn2"]; s3, b3 = p["bn3"]
    out = jnp.maximum(_ref_conv(x, p["conv1"]) * s1 + b1, 0.0)
    out = jnp.maximum(_ref_conv(out, p["conv2"], stride=p["stride"],
                                padding=p["rate"], dilation=p["rate"]) * s2 + b2, 0.0)
    out = _ref_conv(out, p["conv3"]) * s3 + b3
    if "ds_conv" in p:
        ds_s, ds_b = p["ds_bn"]
        residual = _ref_conv(x, p["ds_conv"], stride=p["stride"]) * ds_s + ds_b
    else:
        residual = x
    return jnp.maximum(out + residual, 0.0)


def run_blocks_ref_nchw(blocks, x_nchw):
    x = jnp.transpose(x_nchw, (0, 2, 3, 1)).astype(jnp.float32)
    for p in blocks:
        x = bottleneck_ref(p, x)
    return jnp.transpose(x, (0, 3, 1, 2))


# ----------------------------------- main ---------------------------------------

if __name__ == "__main__":
    pg = ParamGen(seed=0)
    inplanes, planes = 64, 16
    # Block 1: stride-2 with downsample branch (strided conv + downsample path).
    block1 = make_bottleneck(pg, inplanes, planes, stride=2, downsample=True, rate=1)
    # Block 2: identity residual, dilated 3x3 (rate=2), stride 1.
    block2 = make_bottleneck(pg, planes * 4, planes, stride=1, downsample=False, rate=2)
    raw_blocks = [block1, block2]

    # Fold/transpose/pad weights + BN once (inference constants).
    prep_blocks = [prepare_bottleneck(block1, inplanes),
                   prepare_bottleneck(block2, planes * 4)]

    x = jax.random.normal(jax.random.PRNGKey(0), (2, inplanes, 16, 16), jnp.float32)

    fwd = jax.jit(lambda inp: run_blocks_nchw(prep_blocks, inp, planes * 4))
    y = jax.block_until_ready(fwd(x))

    assert y.shape == (2, planes * 4, 8, 8), y.shape
    assert bool(jnp.all(jnp.isfinite(y)))

    # Numerical check against a pure-JAX f32 reference (bf16 chain -> loose tolerance).
    y_ref = run_blocks_ref_nchw(raw_blocks, x)
    err = float(jnp.max(jnp.abs(y.astype(jnp.float32) - y_ref)) /
                (jnp.max(jnp.abs(y_ref)) + 1e-6))
    assert err < 0.1, f"relative max error too large: {err}"

    print("KERNEL_OK")
</pallas_src>

<mosaic_0001>
module attributes {stable_mosaic.version = 11 : i64} {
  func.func @kernel(%arg0: i32, %arg1: i32, %arg2: i32, %arg3: memref<64x128xbf16, #tpu.memory_space<vmem>>, %arg4: memref<128x128xbf16, #tpu.memory_space<vmem>>, %arg5: memref<1x128xf32, #tpu.memory_space<vmem>>, %arg6: memref<1x128xf32, #tpu.memory_space<vmem>>, %arg7: memref<64x128xbf16, #tpu.memory_space<vmem>>, %arg8: memref<64x128xf32, #tpu.memory_space<vmem>>) attributes {dimension_semantics = [#tpu.dimension_semantics<parallel>, #tpu.dimension_semantics<parallel>, #tpu.dimension_semantics<arbitrary>], iteration_bounds = array<i64: 2, 1, 1>, scalar_prefetch = 0 : i64, scratch_operands = 1 : i64, tpu.core_type = #tpu.core_type<tc>, window_params = [{transform_indices = @transform_0, window_bounds = array<i64: 64, 128>}, {transform_indices = @transform_1, window_bounds = array<i64: 128, 128>}, {transform_indices = @transform_2, window_bounds = array<i64: 1, 128>}, {transform_indices = @transform_3, window_bounds = array<i64: 1, 128>}, {transform_indices = @transform_4, window_bounds = array<i64: 64, 128>}]} {
    %c0_i32 = arith.constant 0 : i32
    %0 = arith.cmpi eq, %arg2, %c0_i32 : i32
    %1 = arith.extui %0 : i1 to i32
    %c0_i32_0 = arith.constant 0 : i32
    %2 = arith.cmpi ne, %1, %c0_i32_0 : i32
    scf.if %2 {
      %cst_10 = arith.constant 0.000000e+00 : f32
      %12 = vector.broadcast %cst_10 : f32 to vector<64x128xf32>
      %c0_11 = arith.constant 0 : index
      %c0_12 = arith.constant 0 : index
      %13 = vector.load %arg8[%c0_11, %c0_12] : memref<64x128xf32, #tpu.memory_space<vmem>>, vector<64x128xf32>
      tpu.vector_store %arg8[%c0_11, %c0_12], %12 {strides = array<i32>} : memref<64x128xf32, #tpu.memory_space<vmem>>, vector<64x128xf32>,
    } else {
    }
    %c0 = arith.constant 0 : index
    %c0_1 = arith.constant 0 : index
    %3 = vector.load %arg8[%c0, %c0_1] : memref<64x128xf32, #tpu.memory_space<vmem>>, vector<64x128xf32>
    %c0_2 = arith.constant 0 : index
    %c0_3 = arith.constant 0 : index
    %4 = vector.load %arg3[%c0_2, %c0_3] : memref<64x128xbf16, #tpu.memory_space<vmem>>, vector<64x128xbf16>
    %c0_4 = arith.constant 0 : index
    %c0_5 = arith.constant 0 : index
    %5 = vector.load %arg4[%c0_4, %c0_5] : memref<128x128xbf16, #tpu.memory_space<vmem>>, vector<128x128xbf16>
    %cst = arith.constant dense<0.000000e+00> : vector<64x128xf32>
    %6 = tpu.matmul %4, %5, %cst {dimension_numbers = #tpu.dot_dimension_numbers<[1], [0], [0], [1], [0, 0, 1, 1], [], []>} : vector<64x128xbf16>, vector<128x128xbf16>, vector<64x128xf32> -> vector<64x128xf32>
    %7 = arith.addf %3, %6 : vector<64x128xf32>
    %c0_6 = arith.constant 0 : index
    %c0_7 = arith.constant 0 : index
    %8 = vector.load %arg8[%c0_6, %c0_7] : memref<64x128xf32, #tpu.memory_space<vmem>>, vector<64x128xf32>
    tpu.vector_store %arg8[%c0_6, %c0_7], %7 {strides = array<i32>} : memref<64x128xf32, #tpu.memory_space<vmem>>, vector<64x128xf32>,
    %c0_i32_8 = arith.constant 0 : i32
    %9 = arith.cmpi eq, %arg2, %c0_i32_8 : i32
    %10 = arith.extui %9 : i1 to i32
    %c0_i32_9 = arith.constant 0 : i32
    %11 = arith.cmpi ne, %10, %c0_i32_9 : i32
    scf.if %11 {
      %c0_10 = arith.constant 0 : index
      %c0_11 = arith.constant 0 : index
      %12 = vector.load %arg8[%c0_10, %c0_11] : memref<64x128xf32, #tpu.memory_space<vmem>>, vector<64x128xf32>
      %c0_12 = arith.constant 0 : index
      %c0_13 = arith.constant 0 : index
      %13 = vector.load %arg5[%c0_12, %c0_13] : memref<1x128xf32, #tpu.memory_space<vmem>>, vector<1x128xf32>
      %14 = vector.broadcast %13 : vector<1x128xf32> to vector<64x128xf32>
      %15 = arith.mulf %12, %14 : vector<64x128xf32>
      %c0_14 = arith.constant 0 : index
      %c0_15 = arith.constant 0 : index
      %16 = vector.load %arg6[%c0_14, %c0_15] : memref<1x128xf32, #tpu.memory_space<vmem>>, vector<1x128xf32>
      %17 = vector.broadcast %16 : vector<1x128xf32> to vector<64x128xf32>
      %18 = arith.addf %15, %17 : vector<64x128xf32>
      %19 = arith.truncf %18 : vector<64x128xf32> to vector<64x128xbf16>
      %c0_16 = arith.constant 0 : index
      %c0_17 = arith.constant 0 : index
      %20 = vector.load %arg7[%c0_16, %c0_17] : memref<64x128xbf16, #tpu.memory_space<vmem>>, vector<64x128xbf16>
      tpu.vector_store %arg7[%c0_16, %c0_17], %19 {strides = array<i32>} : memref<64x128xbf16, #tpu.memory_space<vmem>>, vector<64x128xbf16>,
    } else {
    }
    return
  }
  func.func @transform_0(%arg0: i32, %arg1: i32, %arg2: i32) -> (i32, i32) {
    %c0_i32 = arith.constant 0 : i32
    return %arg0, %arg2 : i32, i32
  }
  func.func @transform_1(%arg0: i32, %arg1: i32, %arg2: i32) -> (i32, i32) {
    %c0_i32 = arith.constant 0 : i32
    return %arg2, %arg1 : i32, i32
  }
  func.func @transform_2(%arg0: i32, %arg1: i32, %arg2: i32) -> (i32, i32) {
    %c0_i32 = arith.constant 0 : i32
    %c0_i32_0 = arith.constant 0 : i32
    return %c0_i32, %arg1 : i32, i32
  }
  func.func @transform_3(%arg0: i32, %arg1: i32, %arg2: i32) -> (i32, i32) {
    %c0_i32 = arith.constant 0 : i32
    %c0_i32_0 = arith.constant 0 : i32
    return %c0_i32, %arg1 : i32, i32
  }
  func.func @transform_4(%arg0: i32, %arg1: i32, %arg2: i32) -> (i32, i32) {
    %c0_i32 = arith.constant 0 : i32
    return %arg0, %arg1 : i32, i32
  }
}

module attributes {stable_mosaic.version = 11 : i64} {
  func.func @kernel(%arg0: i32, %arg1: i32, %arg2: i32, %arg3: memref<256x128xbf16, #tpu.memory_space<vmem>>, %arg4: memref<128x128xbf16, #tpu.memory_space<vmem>>, %arg5: memref<1x128xf32, #tpu.memory_space<vmem>>, %arg6: memref<1x128xf32, #tpu.memory_space<vmem>>, %arg7: memref<256x128xbf16, #tpu.memory_space<vmem>>, %arg8: memref<256x128xf32, #tpu.memory_space<vmem>>) attributes {dimension_semantics = [#tpu.dimension_semantics<parallel>, #tpu.dimension_semantics<parallel>, #tpu.dimension_semantics<arbitrary>], iteration_bounds = array<i64: 2, 1, 1>, scalar_prefetch = 0 : i64, scratch_operands = 1 : i64, tpu.core_type = #tpu.core_type<tc>, window_params = [{transform_indices = @transform_0, window_bounds = array<i64: 256, 128>}, {transform_indices = @transform_1, window_bounds = array<i64: 128, 128>}, {transform_indices = @transform_2, window_bounds = array<i64: 1, 128>}, {transform_indices = @transform_3, window_bounds = array<i64: 1, 128>}, {transform_indices = @transform_4, window_bounds = array<i64: 256, 128>}]} {
    %c0_i32 = arith.constant 0 : i32
    %0 = arith.cmpi eq, %arg2, %c0_i32 : i32
    %1 = arith.extui %0 : i1 to i32
    %c0_i32_0 = arith.constant 0 : i32
    %2 = arith.cmpi ne, %1, %c0_i32_0 : i32
    scf.if %2 {
      %cst_10 = arith.constant 0.000000e+00 : f32
      %12 = vector.broadcast %cst_10 : f32 to vector<256x128xf32>
      %c0_11 = arith.constant 0 : index
      %c0_12 = arith.constant 0 : index
      %13 = vector.load %arg8[%c0_11, %c0_12] : memref<256x128xf32, #tpu.memory_space<vmem>>, vector<256x128xf32>
      tpu.vector_store %arg8[%c0_11, %c0_12], %12 {strides = array<i32>} : memref<256x128xf32, #tpu.memory_space<vmem>>, vector<256x128xf32>,
    } else {
    }
    %c0 = arith.constant 0 : index
    %c0_1 = arith.constant 0 : index
    %3 = vector.load %arg8[%c0, %c0_1] : memref<256x128xf32, #tpu.memory_space<vmem>>, vector<256x128xf32>
    %c0_2 = arith.constant 0 : index
    %c0_3 = arith.constant 0 : index
    %4 = vector.load %arg3[%c0_2, %c0_3] : memref<256x128xbf16, #tpu.memory_space<vmem>>, vector<256x128xbf16>
    %c0_4 = arith.constant 0 : index
    %c0_5 = arith.constant 0 : index
    %5 = vector.load %arg4[%c0_4, %c0_5] : memref<128x128xbf16, #tpu.memory_space<vmem>>, vector<128x128xbf16>
    %cst = arith.constant dense<0.000000e+00> : vector<256x128xf32>
    %6 = tpu.matmul %4, %5, %cst {dimension_numbers = #tpu.dot_dimension_numbers<[1], [0], [0], [1], [0, 0, 1, 1], [], []>} : vector<256x128xbf16>, vector<128x128xbf16>, vector<256x128xf32> -> vector<256x128xf32>
    %7 = arith.addf %3, %6 : vector<256x128xf32>
    %c0_6 = arith.constant 0 : index
    %c0_7 = arith.constant 0 : index
    %8 = vector.load %arg8[%c0_6, %c0_7] : memref<256x128xf32, #tpu.memory_space<vmem>>, vector<256x128xf32>
    tpu.vector_store %arg8[%c0_6, %c0_7], %7 {strides = array<i32>} : memref<256x128xf32, #tpu.memory_space<vmem>>, vector<256x128xf32>,
    %c0_i32_8 = arith.constant 0 : i32
    %9 = arith.cmpi eq, %arg2, %c0_i32_8 : i32
    %10 = arith.extui %9 : i1 to i32
    %c0_i32_9 = arith.constant 0 : i32
    %11 = arith.cmpi ne, %10, %c0_i32_9 : i32
    scf.if %11 {
      %c0_10 = arith.constant 0 : index
      %c0_11 = arith.constant 0 : index
      %12 = vector.load %arg8[%c0_10, %c0_11] : memref<256x128xf32, #tpu.memory_space<vmem>>, vector<256x128xf32>
      %c0_12 = arith.constant 0 : index
      %c0_13 = arith.constant 0 : index
      %13 = vector.load %arg5[%c0_12, %c0_13] : memref<1x128xf32, #tpu.memory_space<vmem>>, vector<1x128xf32>
      %14 = vector.broadcast %13 : vector<1x128xf32> to vector<256x128xf32>
      %15 = arith.mulf %12, %14 : vector<256x128xf32>
      %c0_14 = arith.constant 0 : index
      %c0_15 = arith.constant 0 : index
      %16 = vector.load %arg6[%c0_14, %c0_15] : memref<1x128xf32, #tpu.memory_space<vmem>>, vector<1x128xf32>
      %17 = vector.broadcast %16 : vector<1x128xf32> to vector<256x128xf32>
      %18 = arith.addf %15, %17 : vector<256x128xf32>
      %cst_16 = arith.constant 0.000000e+00 : f32
      %19 = vector.broadcast %cst_16 : f32 to vector<256x128xf32>
      %20 = arith.maximumf %18, %19 : vector<256x128xf32>
      %21 = arith.truncf %20 : vector<256x128xf32> to vector<256x128xbf16>
      %c0_17 = arith.constant 0 : index
      %c0_18 = arith.constant 0 : index
      %22 = vector.load %arg7[%c0_17, %c0_18] : memref<256x128xbf16, #tpu.memory_space<vmem>>, vector<256x128xbf16>
      tpu.vector_store %arg7[%c0_17, %c0_18], %21 {strides = array<i32>} : memref<256x128xbf16, #tpu.memory_space<vmem>>, vector<256x128xbf16>,
    } else {
    }
    return
  }
  func.func @transform_0(%arg0: i32, %arg1: i32, %arg2: i32) -> (i32, i32) {
    %c0_i32 = arith.constant 0 : i32
    return %arg0, %arg2 : i32, i32
  }
  func.func @transform_1(%arg0: i32, %arg1: i32, %arg2: i32) -> (i32, i32) {
    %c0_i32 = arith.constant 0 : i32
    return %arg2, %arg1 : i32, i32
  }
  func.func @transform_2(%arg0: i32, %arg1: i32, %arg2: i32) -> (i32, i32) {
    %c0_i32 = arith.constant 0 : i32
    %c0_i32_0 = arith.constant 0 : i32
    return %c0_i32, %arg1 : i32, i32
  }
  func.func @transform_3(%arg0: i32, %arg1: i32, %arg2: i32) -> (i32, i32) {
    %c0_i32 = arith.constant 0 : i32
    %c0_i32_0 = arith.constant 0 : i32
    return %c0_i32, %arg1 : i32, i32
  }
  func.func @transform_4(%arg0: i32, %arg1: i32, %arg2: i32) -> (i32, i32) {
    %c0_i32 = arith.constant 0 : i32
    return %arg0, %arg1 : i32, i32
  }
}

module attributes {stable_mosaic.version = 11 : i64} {
  func.func @kernel(%arg0: i32, %arg1: i32, %arg2: i32, %arg3: memref<64x128xbf16, #tpu.memory_space<vmem>>, %arg4: memref<128x128xbf16, #tpu.memory_space<vmem>>, %arg5: memref<1x128xf32, #tpu.memory_space<vmem>>, %arg6: memref<1x128xf32, #tpu.memory_space<vmem>>, %arg7: memref<64x128xbf16, #tpu.memory_space<vmem>>, %arg8: memref<64x128xbf16, #tpu.memory_space<vmem>>, %arg9: memref<64x128xf32, #tpu.memory_space<vmem>>) attributes {dimension_semantics = [#tpu.dimension_semantics<parallel>, #tpu.dimension_semantics<parallel>, #tpu.dimension_semantics<arbitrary>], iteration_bounds = array<i64: 2, 1, 1>, scalar_prefetch = 0 : i64, scratch_operands = 1 : i64, tpu.core_type = #tpu.core_type<tc>, window_params = [{transform_indices = @transform_0, window_bounds = array<i64: 64, 128>}, {transform_indices = @transform_1, window_bounds = array<i64: 128, 128>}, {transform_indices = @transform_2, window_bounds = array<i64: 1, 128>}, {transform_indices = @transform_3, window_bounds = array<i64: 1, 128>}, {transform_indices = @transform_4, window_bounds = array<i64: 64, 128>}, {transform_indices = @transform_5, window_bounds = array<i64: 64, 128>}]} {
    %c0_i32 = arith.constant 0 : i32
    %0 = arith.cmpi eq, %arg2, %c0_i32 : i32
    %1 = arith.extui %0 : i1 to i32
    %c0_i32_0 = arith.constant 0 : i32
    %2 = arith.cmpi ne, %1, %c0_i32_0 : i32
    scf.if %2 {
      %cst_10 = arith.constant 0.000000e+00 : f32
      %12 = vector.broadcast %cst_10 : f32 to vector<64x128xf32>
      %c0_11 = arith.constant 0 : index
      %c0_12 = arith.constant 0 : index
      %13 = vector.load %arg9[%c0_11, %c0_12] : memref<64x128xf32, #tpu.memory_space<vmem>>, vector<64x128xf32>
      tpu.vector_store %arg9[%c0_11, %c0_12], %12 {strides = array<i32>} : memref<64x128xf32, #tpu.memory_space<vmem>>, vector<64x128xf32>,
    } else {
    }
    %c0 = arith.constant 0 : index
    %c0_1 = arith.constant 0 : index
    %3 = vector.load %arg9[%c0, %c0_1] : memref<64x128xf32, #tpu.memory_space<vmem>>, vector<64x128xf32>
    %c0_2 = arith.constant 0 : index
    %c0_3 = arith.constant 0 : index
    %4 = vector.load %arg3[%c0_2, %c0_3] : memref<64x128xbf16, #tpu.memory_space<vmem>>, vector<64x128xbf16>
    %c0_4 = arith.constant 0 : index
    %c0_5 = arith.constant 0 : index
    %5 = vector.load %arg4[%c0_4, %c0_5] : memref<128x128xbf16, #tpu.memory_space<vmem>>, vector<128x128xbf16>
    %cst = arith.constant dense<0.000000e+00> : vector<64x128xf32>
    %6 = tpu.matmul %4, %5, %cst {dimension_numbers = #tpu.dot_dimension_numbers<[1], [0], [0], [1], [0, 0, 1, 1], [], []>} : vector<64x128xbf16>, vector<128x128xbf16>, vector<64x128xf32> -> vector<64x128xf32>
    %7 = arith.addf %3, %6 : vector<64x128xf32>
    %c0_6 = arith.constant 0 : index
    %c0_7 = arith.constant 0 : index
    %8 = vector.load %arg9[%c0_6, %c0_7] : memref<64x128xf32, #tpu.memory_space<vmem>>, vector<64x128xf32>
    tpu.vector_store %arg9[%c0_6, %c0_7], %7 {strides = array<i32>} : memref<64x128xf32, #tpu.memory_space<vmem>>, vector<64x128xf32>,
    %c0_i32_8 = arith.constant 0 : i32
    %9 = arith.cmpi eq, %arg2, %c0_i32_8 : i32
    %10 = arith.extui %9 : i1 to i32
    %c0_i32_9 = arith.constant 0 : i32
    %11 = arith.cmpi ne, %10, %c0_i32_9 : i32
    scf.if %11 {
      %c0_10 = arith.constant 0 : index
      %c0_11 = arith.constant 0 : index
      %12 = vector.load %arg9[%c0_10, %c0_11] : memref<64x128xf32, #tpu.memory_space<vmem>>, vector<64x128xf32>
      %c0_12 = arith.constant 0 : index
      %c0_13 = arith.constant 0 : index
      %13 = vector.load %arg5[%c0_12, %c0_13] : memref<1x128xf32, #tpu.memory_space<vmem>>, vector<1x128xf32>
      %14 = vector.broadcast %13 : vector<1x128xf32> to vector<64x128xf32>
      %15 = arith.mulf %12, %14 : vector<64x128xf32>
      %c0_14 = arith.constant 0 : index
      %c0_15 = arith.constant 0 : index
      %16 = vector.load %arg6[%c0_14, %c0_15] : memref<1x128xf32, #tpu.memory_space<vmem>>, vector<1x128xf32>
      %17 = vector.broadcast %16 : vector<1x128xf32> to vector<64x128xf32>
      %18 = arith.addf %15, %17 : vector<64x128xf32>
      %c0_16 = arith.constant 0 : index
      %c0_17 = arith.constant 0 : index
      %19 = vector.load %arg7[%c0_16, %c0_17] : memref<64x128xbf16, #tpu.memory_space<vmem>>, vector<64x128xbf16>
      %20 = arith.extf %19 : vector<64x128xbf16> to vector<64x128xf32>
      %21 = arith.addf %18, %20 : vector<64x128xf32>
      %cst_18 = arith.constant 0.000000e+00 : f32
      %22 = vector.broadcast %cst_18 : f32 to vector<64x128xf32>
      %23 = arith.maximumf %21, %22 : vector<64x128xf32>
      %24 = arith.truncf %23 : vector<64x128xf32> to vector<64x128xbf16>
      %c0_19 = arith.constant 0 : index
      %c0_20 = arith.constant 0 : index
      %25 = vector.load %arg8[%c0_19, %c0_20] : memref<64x128xbf16, #tpu.memory_space<vmem>>, vector<64x128xbf16>
      tpu.vector_store %arg8[%c0_19, %c0_20], %24 {strides = array<i32>} : memref<64x128xbf16, #tpu.memory_space<vmem>>, vector<64x128xbf16>,
    } else {
    }
    return
  }
  func.func @transform_0(%arg0: i32, %arg1: i32, %arg2: i32) -> (i32, i32) {
    %c0_i32 = arith.constant 0 : i32
    return %arg0, %arg2 : i32, i32
  }
  func.func @transform_1(%arg0: i32, %arg1: i32, %arg2: i32) -> (i32, i32) {
    %c0_i32 = arith.constant 0 : i32
    return %arg2, %arg1 : i32, i32
  }
  func.func @transform_2(%arg0: i32, %arg1: i32, %arg2: i32) -> (i32, i32) {
    %c0_i32 = arith.constant 0 : i32
    %c0_i32_0 = arith.constant 0 : i32
    return %c0_i32, %arg1 : i32, i32
  }
  func.func @transform_3(%arg0: i32, %arg1: i32, %arg2: i32) -> (i32, i32) {
    %c0_i32 = arith.constant 0 : i32
    %c0_i32_0 = arith.constant 0 : i32
    return %c0_i32, %arg1 : i32, i32
  }
  func.func @transform_4(%arg0: i32, %arg1: i32, %arg2: i32) -> (i32, i32) {
    %c0_i32 = arith.constant 0 : i32
    return %arg0, %arg1 : i32, i32
  }
  func.func @transform_5(%arg0: i32, %arg1: i32, %arg2: i32) -> (i32, i32) {
    %c0_i32 = arith.constant 0 : i32
    return %arg0, %arg1 : i32, i32
  }
}

module attributes {stable_mosaic.version = 11 : i64} {
  func.func @kernel(%arg0: i32, %arg1: i32, %arg2: i32, %arg3: memref<64x1152xbf16, #tpu.memory_space<vmem>>, %arg4: memref<1152x128xbf16, #tpu.memory_space<vmem>>, %arg5: memref<1x128xf32, #tpu.memory_space<vmem>>, %arg6: memref<1x128xf32, #tpu.memory_space<vmem>>, %arg7: memref<64x128xbf16, #tpu.memory_space<vmem>>, %arg8: memref<64x128xf32, #tpu.memory_space<vmem>>) attributes {dimension_semantics = [#tpu.dimension_semantics<parallel>, #tpu.dimension_semantics<parallel>, #tpu.dimension_semantics<arbitrary>], iteration_bounds = array<i64: 2, 1, 1>, scalar_prefetch = 0 : i64, scratch_operands = 1 : i64, tpu.core_type = #tpu.core_type<tc>, window_params = [{transform_indices = @transform_0, window_bounds = array<i64: 64, 1152>}, {transform_indices = @transform_1, window_bounds = array<i64: 1152, 128>}, {transform_indices = @transform_2, window_bounds = array<i64: 1, 128>}, {transform_indices = @transform_3, window_bounds = array<i64: 1, 128>}, {transform_indices = @transform_4, window_bounds = array<i64: 64, 128>}]} {
    %c0_i32 = arith.constant 0 : i32
    %0 = arith.cmpi eq, %arg2, %c0_i32 : i32
    %1 = arith.extui %0 : i1 to i32
    %c0_i32_0 = arith.constant 0 : i32
    %2 = arith.cmpi ne, %1, %c0_i32_0 : i32
    scf.if %2 {
      %cst_10 = arith.constant 0.000000e+00 : f32
      %12 = vector.broadcast %cst_10 : f32 to vector<64x128xf32>
      %c0_11 = arith.constant 0 : index
      %c0_12 = arith.constant 0 : index
      %13 = vector.load %arg8[%c0_11, %c0_12] : memref<64x128xf32, #tpu.memory_space<vmem>>, vector<64x128xf32>
      tpu.vector_store %arg8[%c0_11, %c0_12], %12 {strides = array<i32>} : memref<64x128xf32, #tpu.memory_space<vmem>>, vector<64x128xf32>,
    } else {
    }
    %c0 = arith.constant 0 : index
    %c0_1 = arith.constant 0 : index
    %3 = vector.load %arg8[%c0, %c0_1] : memref<64x128xf32, #tpu.memory_space<vmem>>, vector<64x128xf32>
    %c0_2 = arith.constant 0 : index
    %c0_3 = arith.constant 0 : index
    %4 = vector.load %arg3[%c0_2, %c0_3] : memref<64x1152xbf16, #tpu.memory_space<vmem>>, vector<64x1152xbf16>
    %c0_4 = arith.constant 0 : index
    %c0_5 = arith.constant 0 : index
    %5 = vector.load %arg4[%c0_4, %c0_5] : memref<1152x128xbf16, #tpu.memory_space<vmem>>, vector<1152x128xbf16>
    %cst = arith.constant dense<0.000000e+00> : vector<64x128xf32>
    %6 = tpu.matmul %4, %5, %cst {dimension_numbers = #tpu.dot_dimension_numbers<[1], [0], [0], [1], [0, 0, 1, 1], [], []>} : vector<64x1152xbf16>, vector<1152x128xbf16>, vector<64x128xf32> -> vector<64x128xf32>
    %7 = arith.addf %3, %6 : vector<64x128xf32>
    %c0_6 = arith.constant 0 : index
    %c0_7 = arith.constant 0 : index
    %8 = vector.load %arg8[%c0_6, %c0_7] : memref<64x128xf32, #tpu.memory_space<vmem>>, vector<64x128xf32>
    tpu.vector_store %arg8[%c0_6, %c0_7], %7 {strides = array<i32>} : memref<64x128xf32, #tpu.memory_space<vmem>>, vector<64x128xf32>,
    %c0_i32_8 = arith.constant 0 : i32
    %9 = arith.cmpi eq, %arg2, %c0_i32_8 : i32
    %10 = arith.extui %9 : i1 to i32
    %c0_i32_9 = arith.constant 0 : i32
    %11 = arith.cmpi ne, %10, %c0_i32_9 : i32
    scf.if %11 {
      %c0_10 = arith.constant 0 : index
      %c0_11 = arith.constant 0 : index
      %12 = vector.load %arg8[%c0_10, %c0_11] : memref<64x128xf32, #tpu.memory_space<vmem>>, vector<64x128xf32>
      %c0_12 = arith.constant 0 : index
      %c0_13 = arith.constant 0 : index
      %13 = vector.load %arg5[%c0_12, %c0_13] : memref<1x128xf32, #tpu.memory_space<vmem>>, vector<1x128xf32>
      %14 = vector.broadcast %13 : vector<1x128xf32> to vector<64x128xf32>
      %15 = arith.mulf %12, %14 : vector<64x128xf32>
      %c0_14 = arith.constant 0 : index
      %c0_15 = arith.constant 0 : index
      %16 = vector.load %arg6[%c0_14, %c0_15] : memref<1x128xf32, #tpu.memory_space<vmem>>, vector<1x128xf32>
      %17 = vector.broadcast %16 : vector<1x128xf32> to vector<64x128xf32>
      %18 = arith.addf %15, %17 : vector<64x128xf32>
      %cst_16 = arith.constant 0.000000e+00 : f32
      %19 = vector.broadcast %cst_16 : f32 to vector<64x128xf32>
      %20 = arith.maximumf %18, %19 : vector<64x128xf32>
      %21 = arith.truncf %20 : vector<64x128xf32> to vector<64x128xbf16>
      %c0_17 = arith.constant 0 : index
      %c0_18 = arith.constant 0 : index
      %22 = vector.load %arg7[%c0_17, %c0_18] : memref<64x128xbf16, #tpu.memory_space<vmem>>, vector<64x128xbf16>
      tpu.vector_store %arg7[%c0_17, %c0_18], %21 {strides = array<i32>} : memref<64x128xbf16, #tpu.memory_space<vmem>>, vector<64x128xbf16>,
    } else {
    }
    return
  }
  func.func @transform_0(%arg0: i32, %arg1: i32, %arg2: i32) -> (i32, i32) {
    %c0_i32 = arith.constant 0 : i32
    return %arg0, %arg2 : i32, i32
  }
  func.func @transform_1(%arg0: i32, %arg1: i32, %arg2: i32) -> (i32, i32) {
    %c0_i32 = arith.constant 0 : i32
    return %arg2, %arg1 : i32, i32
  }
  func.func @transform_2(%arg0: i32, %arg1: i32, %arg2: i32) -> (i32, i32) {
    %c0_i32 = arith.constant 0 : i32
    %c0_i32_0 = arith.constant 0 : i32
    return %c0_i32, %arg1 : i32, i32
  }
  func.func @transform_3(%arg0: i32, %arg1: i32, %arg2: i32) -> (i32, i32) {
    %c0_i32 = arith.constant 0 : i32
    %c0_i32_0 = arith.constant 0 : i32
    return %c0_i32, %arg1 : i32, i32
  }
  func.func @transform_4(%arg0: i32, %arg1: i32, %arg2: i32) -> (i32, i32) {
    %c0_i32 = arith.constant 0 : i32
    return %arg0, %arg1 : i32, i32
  }
}

module attributes {stable_mosaic.version = 11 : i64} {
  func.func @kernel(%arg0: i32, %arg1: i32, %arg2: i32, %arg3: memref<64x128xbf16, #tpu.memory_space<vmem>>, %arg4: memref<128x128xbf16, #tpu.memory_space<vmem>>, %arg5: memref<1x128xf32, #tpu.memory_space<vmem>>, %arg6: memref<1x128xf32, #tpu.memory_space<vmem>>, %arg7: memref<64x128xbf16, #tpu.memory_space<vmem>>, %arg8: memref<64x128xf32, #tpu.memory_space<vmem>>) attributes {dimension_semantics = [#tpu.dimension_semantics<parallel>, #tpu.dimension_semantics<parallel>, #tpu.dimension_semantics<arbitrary>], iteration_bounds = array<i64: 2, 1, 1>, scalar_prefetch = 0 : i64, scratch_operands = 1 : i64, tpu.core_type = #tpu.core_type<tc>, window_params = [{transform_indices = @transform_0, window_bounds = array<i64: 64, 128>}, {transform_indices = @transform_1, window_bounds = array<i64: 128, 128>}, {transform_indices = @transform_2, window_bounds = array<i64: 1, 128>}, {transform_indices = @transform_3, window_bounds = array<i64: 1, 128>}, {transform_indices = @transform_4, window_bounds = array<i64: 64, 128>}]} {
    %c0_i32 = arith.constant 0 : i32
    %0 = arith.cmpi eq, %arg2, %c0_i32 : i32
    %1 = arith.extui %0 : i1 to i32
    %c0_i32_0 = arith.constant 0 : i32
    %2 = arith.cmpi ne, %1, %c0_i32_0 : i32
    scf.if %2 {
      %cst_10 = arith.constant 0.000000e+00 : f32
      %12 = vector.broadcast %cst_10 : f32 to vector<64x128xf32>
      %c0_11 = arith.constant 0 : index
      %c0_12 = arith.constant 0 : index
      %13 = vector.load %arg8[%c0_11, %c0_12] : memref<64x128xf32, #tpu.memory_space<vmem>>, vector<64x128xf32>
      tpu.vector_store %arg8[%c0_11, %c0_12], %12 {strides = array<i32>} : memref<64x128xf32, #tpu.memory_space<vmem>>, vector<64x128xf32>,
    } else {
    }
    %c0 = arith.constant 0 : index
    %c0_1 = arith.constant 0 : index
    %3 = vector.load %arg8[%c0, %c0_1] : memref<64x128xf32, #tpu.memory_space<vmem>>, vector<64x128xf32>
    %c0_2 = arith.constant 0 : index
    %c0_3 = arith.constant 0 : index
    %4 = vector.load %arg3[%c0_2, %c0_3] : memref<64x128xbf16, #tpu.memory_space<vmem>>, vector<64x128xbf16>
    %c0_4 = arith.constant 0 : index
    %c0_5 = arith.constant 0 : index
    %5 = vector.load %arg4[%c0_4, %c0_5] : memref<128x128xbf16, #tpu.memory_space<vmem>>, vector<128x128xbf16>
    %cst = arith.constant dense<0.000000e+00> : vector<64x128xf32>
    %6 = tpu.matmul %4, %5, %cst {dimension_numbers = #tpu.dot_dimension_numbers<[1], [0], [0], [1], [0, 0, 1, 1], [], []>} : vector<64x128xbf16>, vector<128x128xbf16>, vector<64x128xf32> -> vector<64x128xf32>
    %7 = arith.addf %3, %6 : vector<64x128xf32>
    %c0_6 = arith.constant 0 : index
    %c0_7 = arith.constant 0 : index
    %8 = vector.load %arg8[%c0_6, %c0_7] : memref<64x128xf32, #tpu.memory_space<vmem>>, vector<64x128xf32>
    tpu.vector_store %arg8[%c0_6, %c0_7], %7 {strides = array<i32>} : memref<64x128xf32, #tpu.memory_space<vmem>>, vector<64x128xf32>,
    %c0_i32_8 = arith.constant 0 : i32
    %9 = arith.cmpi eq, %arg2, %c0_i32_8 : i32
    %10 = arith.extui %9 : i1 to i32
    %c0_i32_9 = arith.constant 0 : i32
    %11 = arith.cmpi ne, %10, %c0_i32_9 : i32
    scf.if %11 {
      %c0_10 = arith.constant 0 : index
      %c0_11 = arith.constant 0 : index
      %12 = vector.load %arg8[%c0_10, %c0_11] : memref<64x128xf32, #tpu.memory_space<vmem>>, vector<64x128xf32>
      %c0_12 = arith.constant 0 : index
      %c0_13 = arith.constant 0 : index
      %13 = vector.load %arg5[%c0_12, %c0_13] : memref<1x128xf32, #tpu.memory_space<vmem>>, vector<1x128xf32>
      %14 = vector.broadcast %13 : vector<1x128xf32> to vector<64x128xf32>
      %15 = arith.mulf %12, %14 : vector<64x128xf32>
      %c0_14 = arith.constant 0 : index
      %c0_15 = arith.constant 0 : index
      %16 = vector.load %arg6[%c0_14, %c0_15] : memref<1x128xf32, #tpu.memory_space<vmem>>, vector<1x128xf32>
      %17 = vector.broadcast %16 : vector<1x128xf32> to vector<64x128xf32>
      %18 = arith.addf %15, %17 : vector<64x128xf32>
      %cst_16 = arith.constant 0.000000e+00 : f32
      %19 = vector.broadcast %cst_16 : f32 to vector<64x128xf32>
      %20 = arith.maximumf %18, %19 : vector<64x128xf32>
      %21 = arith.truncf %20 : vector<64x128xf32> to vector<64x128xbf16>
      %c0_17 = arith.constant 0 : index
      %c0_18 = arith.constant 0 : index
      %22 = vector.load %arg7[%c0_17, %c0_18] : memref<64x128xbf16, #tpu.memory_space<vmem>>, vector<64x128xbf16>
      tpu.vector_store %arg7[%c0_17, %c0_18], %21 {strides = array<i32>} : memref<64x128xbf16, #tpu.memory_space<vmem>>, vector<64x128xbf16>,
    } else {
    }
    return
  }
  func.func @transform_0(%arg0: i32, %arg1: i32, %arg2: i32) -> (i32, i32) {
    %c0_i32 = arith.constant 0 : i32
    return %arg0, %arg2 : i32, i32
  }
  func.func @transform_1(%arg0: i32, %arg1: i32, %arg2: i32) -> (i32, i32) {
    %c0_i32 = arith.constant 0 : i32
    return %arg2, %arg1 : i32, i32
  }
  func.func @transform_2(%arg0: i32, %arg1: i32, %arg2: i32) -> (i32, i32) {
    %c0_i32 = arith.constant 0 : i32
    %c0_i32_0 = arith.constant 0 : i32
    return %c0_i32, %arg1 : i32, i32
  }
  func.func @transform_3(%arg0: i32, %arg1: i32, %arg2: i32) -> (i32, i32) {
    %c0_i32 = arith.constant 0 : i32
    %c0_i32_0 = arith.constant 0 : i32
    return %c0_i32, %arg1 : i32, i32
  }
  func.func @transform_4(%arg0: i32, %arg1: i32, %arg2: i32) -> (i32, i32) {
    %c0_i32 = arith.constant 0 : i32
    return %arg0, %arg1 : i32, i32
  }
}

</mosaic_0001>

<llo_original>
// kernel: _lambda_.9
$region0: #{_lambda_.9}
  #allocation0 [shape = 'u32[]', space=smem, size = 0x4, offset = 0x4, fixed_abs, tag = 'smem constant byte address 0x4 - core index']
  #allocation1 [shape = 'u32[144,128]{1,0:T(1,128)}', space=vmem, size = 0x12000, scoped, tag = 'internal scratch']
  #allocation2 [shape = 'f32[64,128]{1,0:T(8,128)}', space=vmem, size = 0x8000, scoped, tag = 'scratch operand']
  %s0 = inlined_call_operand.vmem [shape: bf16[128,128], index: 0, kind: input, shape index: {}]
  %s1 = inlined_call_operand.vmem [shape: bf16[128,128], index: 1, kind: input, shape index: {}]
  %s2 = inlined_call_operand.vmem [shape: f32[1,128], index: 2, kind: input, shape index: {}]
  %s3 = inlined_call_operand.vmem [shape: f32[1,128], index: 3, kind: input, shape index: {}]
  %s4 = inlined_call_operand.vmem [shape: bf16[128,128], index: 4, kind: output, shape index: {}]
  %s5 = sld [smem:[#allocation0]]
  $region57: #{_lambda_.9} parent=0
    _
  %s7 = ssub.s32 1, %s5
  %s8 = scalar_select 0, %s7, %s5
  loop: start=0, step=1, limit=4
  $region2: #{_lambda_.9} parent=0 // loop_pre_header
    _
  $region3: #{_lambda_.9} parent=0 // loop_header
    %s10 = sphi 0, %s14
    %p11 = scmp.ge.s32.totalorder %s10, 4
    %s17 = sphi 0, %s36
    %s18 = sphi 0, %s32
    %s19 = sphi 0, %s28
    %s20 = sphi 0, %s17
    %s21 = sphi 0, %s18
    %s22 = sphi 0, %s19
    %s23 = sphi 0, %s20
    %s24 = sphi 0, %s21
    %s25 = sphi 0, %s22
    %s41 = sphi 0, %s43
    %s44 = sphi 0, %s41
    %s45 = sphi 0, %s44
    %s61 = sphi 0, %s45
    %s69 = sphi 0, %s71
    %s72 = sphi 0, %s69
    %s73 = sphi 0, %s72
    %s89 = sphi 0, %s73
    %s95 = sphi 0, %s97
    %s98 = sphi 0, %s95
    %s99 = sphi 0, %s98
    %s115 = sphi 0, %s99
    %s121 = sphi 0, %s123
    %s124 = sphi 0, %s121
    %s125 = sphi 0, %s124
    %s141 = sphi 0, %s125
    %s149 = sphi 0, %s151
    %s152 = sphi 0, %s149
    %s153 = sphi 0, %s152
    %s169 = sphi 0, %s153
  $region4: #{_lambda_.9} parent=0 // loop_header_branch
    %13 = sbr.rel (%p11) target = $region8
  $region5: #{_lambda_.9} parent=0 // loop_body
    %s15 = ssub.s32 %s10, 1
    %s16 = ssub.s32 %s10, 2
    %s26 = sadd.s32 1, %s19
    %p27 = scmp.ge.s32.totalorder %s26, 1
    %s28 = scalar_select %p27, 0, %s26
    %s29 = sadd.s32 1, %s18
    %s30 = scalar_select %p27, %s29, %s18
    %p31 = scmp.ge.s32.totalorder %s30, 1
    %s32 = scalar_select %p31, 0, %s30
    %s33 = sadd.s32 1, %s17
    %s34 = scalar_select %p31, %s33, %s17
    %p35 = scmp.ge.s32.totalorder %s34, 2
    %s36 = scalar_select %p35, 0, %s34
    %s37 = ssub.s32 %s17, %s36
    %s38 = ssub.s32 %s19, %s28
    %s39 = sor.u32 %s37, %s38
    %p40 = scmp.eq.s32.totalorder %s39, 0
    %s42 = sadd.s32 %s41, 1
    %s43 = scalar_select %p40, %s41, %s42
    %p46 = pneg %p40
    %p47 = scmp.eq.s32.totalorder %s10, 1
    %p48 = por %p46, %p47
    %p49 = scmp.ne.s32.totalorder %s41, %s44
    %p50 = scmp.eq.s32.totalorder %s10, 0
    %p51 = por %p49, %p50
    %p52 = scmp.ne.s32.totalorder %s41, %s44
    %p53 = scmp.eq.s32.totalorder %s15, 1
    %p54 = por %p52, %p53
    %p55 = scmp.ne.s32.totalorder %s44, %s45
    %p56 = scmp.eq.s32.totalorder %s15, 0
    %p57 = por %p55, %p56
    %p58 = scmp.ne.s32.totalorder %s44, %s45
    %p59 = scmp.eq.s32.totalorder %s16, 1
    %p60 = por %p58, %p59
    %p62 = scmp.ne.s32.totalorder %s45, %s61
    %p63 = scmp.eq.s32.totalorder %s16, 0
    %p64 = por %p62, %p63
    %s65 = ssub.s32 %s19, %s28
    %s66 = ssub.s32 %s18, %s32
    %s67 = sor.u32 %s65, %s66
    %p68 = scmp.eq.s32.totalorder %s67, 0
    %s70 = sadd.s32 %s69, 1
    %s71 = scalar_select %p68, %s69, %s70
    %p74 = pneg %p68
    %p75 = scmp.eq.s32.totalorder %s10, 1
    %p76 = por %p74, %p75
    %p77 = scmp.ne.s32.totalorder %s69, %s72
    %p78 = scmp.eq.s32.totalorder %s10, 0
    %p79 = por %p77, %p78
    %p80 = scmp.ne.s32.totalorder %s69, %s72
    %p81 = scmp.eq.s32.totalorder %s15, 1
    %p82 = por %p80, %p81
    %p83 = scmp.ne.s32.totalorder %s72, %s73
    %p84 = scmp.eq.s32.totalorder %s15, 0
    %p85 = por %p83, %p84
    %p86 = scmp.ne.s32.totalorder %s72, %s73
    %p87 = scmp.eq.s32.totalorder %s16, 1
    %p88 = por %p86, %p87
    %p90 = scmp.ne.s32.totalorder %s73, %s89
    %p91 = scmp.eq.s32.totalorder %s16, 0
    %p92 = por %p90, %p91
    %s93 = ssub.s32 %s18, %s32
    %p94 = scmp.eq.s32.totalorder %s93, 0
    %s96 = sadd.s32 %s95, 1
    %s97 = scalar_select %p94, %s95, %s96
    %p100 = pneg %p94
    %p101 = scmp.eq.s32.totalorder %s10, 1
    %p102 = por %p100, %p101
    %p103 = scmp.ne.s32.totalorder %s95, %s98
    %p104 = scmp.eq.s32.totalorder %s10, 0
    %p105 = por %p103, %p104
    %p106 = scmp.ne.s32.totalorder %s95, %s98
    %p107 = scmp.eq.s32.totalorder %s15, 1
    %p108 = por %p106, %p107
    %p109 = scmp.ne.s32.totalorder %s98, %s99
    %p110 = scmp.eq.s32.totalorder %s15, 0
    %p111 = por %p109, %p110
    %p112 = scmp.ne.s32.totalorder %s98, %s99
    %p113 = scmp.eq.s32.totalorder %s16, 1
    %p114 = por %p112, %p113
    %p116 = scmp.ne.s32.totalorder %s99, %s115
    %p117 = scmp.eq.s32.totalorder %s16, 0
    %p118 = por %p116, %p117
    %s119 = ssub.s32 %s18, %s32
    %p120 = scmp.eq.s32.totalorder %s119, 0
    %s122 = sadd.s32 %s121, 1
    %s123 = scalar_select %p120, %s121, %s122
    %p126 = pneg %p120
    %p127 = scmp.eq.s32.totalorder %s10, 1
    %p128 = por %p126, %p127
    %p129 = scmp.ne.s32.totalorder %s121, %s124
    %p130 = scmp.eq.s32.totalorder %s10, 0
    %p131 = por %p129, %p130
    %p132 = scmp.ne.s32.totalorder %s121, %s124
    %p133 = scmp.eq.s32.totalorder %s15, 1
    %p134 = por %p132, %p133
    %p135 = scmp.ne.s32.totalorder %s124, %s125
    %p136 = scmp.eq.s32.totalorder %s15, 0
    %p137 = por %p135, %p136
    %p138 = scmp.ne.s32.totalorder %s124, %s125
    %p139 = scmp.eq.s32.totalorder %s16, 1
    %p140 = por %p138, %p139
    %p142 = scmp.ne.s32.totalorder %s125, %s141
    %p143 = scmp.eq.s32.totalorder %s16, 0
    %p144 = por %p142, %p143
    %s145 = ssub.s32 %s17, %s36
    %s146 = ssub.s32 %s18, %s32
    %s147 = sor.u32 %s145, %s146
    %p148 = scmp.eq.s32.totalorder %s147, 0
    %s150 = sadd.s32 %s149, 1
    %s151 = scalar_select %p148, %s149, %s150
    %p154 = pneg %p148
    %p155 = scmp.eq.s32.totalorder %s10, 1
    %p156 = por %p154, %p155
    %p157 = scmp.ne.s32.totalorder %s149, %s152
    %p158 = scmp.eq.s32.totalorder %s10, 0
    %p159 = por %p157, %p158
    %p160 = scmp.ne.s32.totalorder %s149, %s152
    %p161 = scmp.eq.s32.totalorder %s15, 1
    %p162 = por %p160, %p161
    %p163 = scmp.ne.s32.totalorder %s152, %s153
    %p164 = scmp.eq.s32.totalorder %s15, 0
    %p165 = por %p163, %p164
    %p166 = scmp.ne.s32.totalorder %s152, %s153
    %p167 = scmp.eq.s32.totalorder %s16, 1
    %p168 = por %p166, %p167
    %p170 = scmp.ne.s32.totalorder %s153, %s169
    %p171 = scmp.eq.s32.totalorder %s16, 0
    %p172 = por %p170, %p171
    %p173 = scmp.le.s32.totalorder 1, %s10
    %p174 = scmp.lt.s32.totalorder %s10, 3
    %p175 = pnand %p173, %p174
    %p176 = pneg %p175
    // Predicated region
    $region9: #{_lambda_.9} parent=5 // pred_check
      _
    $region10: #{_lambda_.9} parent=5 // pred_check_branch
      %178 = sbr.rel (%p175) target = $region12
    $region11: #{_lambda_.9} parent=5 // pred_region
      %s179 = ssub.s32 %s10, 1
      // Predicated region
      $region13: #{_lambda_.9} parent=11 // pred_check
        %p180 = pneg %p85
      $region14: #{_lambda_.9} parent=11 // pred_check_branch
        %182 = sbr.rel (%p180) target = $region16
      $region15: #{_lambda_.9} parent=11 // pred_region
        %s183 = smul.u32 16, %s22
        %p184 = scmp.lt.s32.totalorder %s183, 15
        %s185 = scalar_select %p184, %s183, 15
        %p186 = scmp.lt.s32.totalorder %s21, 0
        %s187 = scalar_select %p186, %s21, 0
        %s188 = sadd.s32 %s187, %s185
        %s189 = smul.addr %s188, 4
        %s190 = scalar_lea.vmem %s1, %s189
        %s191 = smul.u32 16, %s22
      $region16: #{_lambda_.9} parent=11 // pred_fallthru
        _
      // Predicated region
      $region17: #{_lambda_.9} parent=11 // pred_check
        %p192 = pneg %p111
      $region18: #{_lambda_.9} parent=11 // pred_check_branch
        %194 = sbr.rel (%p192) target = $region20
      $region19: #{_lambda_.9} parent=11 // pred_region
        %p195 = scmp.lt.s32.totalorder %s21, 0
        %s196 = scalar_select %p195, %s21, 0
        %s197 = scalar_lea.vmem %s2, %s196
      $region20: #{_lambda_.9} parent=11 // pred_fallthru
        _
      // Predicated region
      $region21: #{_lambda_.9} parent=11 // pred_check
        %p198 = pneg %p137
      $region22: #{_lambda_.9} parent=11 // pred_check_branch
        %200 = sbr.rel (%p198) target = $region24
      $region23: #{_lambda_.9} parent=11 // pred_region
        %p201 = scmp.lt.s32.totalorder %s21, 0
        %s202 = scalar_select %p201, %s21, 0
        %s203 = scalar_lea.vmem %s3, %s202
      $region24: #{_lambda_.9} parent=11 // pred_fallthru
        _
    $region12: #{_lambda_.9} parent=5 // pred_fallthru
      _
    %p204 = scmp.lt.s32.totalorder %s10, 2
    // Predicated region
    $region25: #{_lambda_.9} parent=5 // pred_check
      %p205 = pneg %p204
    $region26: #{_lambda_.9} parent=5 // pred_check_branch
      %207 = sbr.rel (%p205) target = $region28
    $region27: #{_lambda_.9} parent=5 // pred_region
      // Predicated region
      $region29: #{_lambda_.9} parent=27 // pred_check
        %p208 = pneg %p51
      $region30: #{_lambda_.9} parent=27 // pred_check_branch
        %210 = sbr.rel (%p208) target = $region32
      $region31: #{_lambda_.9} parent=27 // pred_region
        %s211 = smul.u32 8, %s17
        %p212 = scmp.lt.s32.totalorder %s211, 15
        %s213 = scalar_select %p212, %s211, 15
        %p214 = scmp.lt.s32.totalorder %s19, 0
        %s215 = scalar_select %p214, %s19, 0
        %s216 = sadd.s32 %s215, %s213
        %s217 = smul.addr %s216, 4
        %s218 = scalar_lea.vmem %s0, %s217
        %s219 = smul.u32 8, %s17
      $region32: #{_lambda_.9} parent=27 // pred_fallthru
        _
    $region28: #{_lambda_.9} parent=5 // pred_fallthru
      _
    %p220 = scmp.le.s32.totalorder 1, %s10
    %p221 = scmp.lt.s32.totalorder %s10, 3
    %p222 = pnand %p220, %p221
    %p223 = pneg %p222
    // Predicated region
    $region33: #{_lambda_.9} parent=5 // pred_check
      _
    $region34: #{_lambda_.9} parent=5 // pred_check_branch
      %225 = sbr.rel (%p222) target = $region36
    $region35: #{_lambda_.9} parent=5 // pred_region
      %s226 = ssub.s32 %s10, 1
      %s227 = smul.u32 8, %s20
      %p228 = scmp.lt.s32.totalorder %s227, 15
      %s229 = scalar_select %p228, %s227, 15
      %p230 = scmp.lt.s32.totalorder %s22, 0
      %s231 = scalar_select %p230, %s22, 0
      %s232 = sadd.s32 %s231, %s229
      %s233 = smul.addr %s232, 4
      %s234 = scalar_lea.vmem %s0, %s233
      %p235 = pneg %p57
      %p236 = pneg %p54
      %s237 = smul.u32 16, %s22
      %p238 = scmp.lt.s32.totalorder %s237, 15
      %s239 = scalar_select %p238, %s237, 15
      %p240 = scmp.lt.s32.totalorder %s21, 0
      %s241 = scalar_select %p240, %s21, 0
      %s242 = sadd.s32 %s241, %s239
      %s243 = smul.addr %s242, 4
      %s244 = scalar_lea.vmem %s1, %s243
      %p245 = pneg %p85
      %p246 = pneg %p82
      %p247 = scmp.lt.s32.totalorder %s21, 0
      %s248 = scalar_select %p247, %s21, 0
      %s249 = scalar_lea.vmem %s2, %s248
      %p250 = pneg %p111
      %p251 = pneg %p108
      %p252 = scmp.lt.s32.totalorder %s21, 0
      %s253 = scalar_select %p252, %s21, 0
      %s254 = scalar_lea.vmem %s3, %s253
      %p255 = pneg %p137
      %p256 = pneg %p134
      %p257 = pneg %p165
      %p258 = pneg %p162
      %s259 = smul.u32 8, %s20
      %p260 = scmp.lt.s32.totalorder %s259, 15
      %s261 = scalar_select %p260, %s259, 15
      %p262 = scmp.lt.s32.totalorder %s21, 0
      %s263 = scalar_select %p262, %s21, 0
      %s264 = sadd.s32 %s263, %s261
      %s265 = smul.addr %s264, 4
      %s266 = scalar_lea.vmem %s4, %s265
      %s267 = smul.u32 8, %s20
      %p268 = scmp.lt.s32.totalorder %s267, 15
      %s269 = scalar_select %p268, %s267, 15
      %p270 = scmp.lt.s32.totalorder %s22, 0
      %s271 = scalar_select %p270, %s22, 0
      %s272 = sadd.s32 %s271, %s269
      %s273 = smul.addr %s272, 4
      %s274 = scalar_lea.vmem %s0, %s273
      %s275 = smul.u32 8, %s20
      %s276 = smul.u32 16, %s22
      %p277 = scmp.lt.s32.totalorder %s276, 15
      %s278 = scalar_select %p277, %s276, 15
      %p279 = scmp.lt.s32.totalorder %s21, 0
      %s280 = scalar_select %p279, %s21, 0
      %s281 = sadd.s32 %s280, %s278
      %s282 = smul.addr %s281, 4
      %s283 = scalar_lea.vmem %s1, %s282
      %s284 = smul.u32 16, %s22
      %p285 = scmp.lt.s32.totalorder %s21, 0
      %s286 = scalar_select %p285, %s21, 0
      %s287 = scalar_lea.vmem %s2, %s286
      %p288 = scmp.lt.s32.totalorder %s21, 0
      %s289 = scalar_select %p288, %s21, 0
      %s290 = scalar_lea.vmem %s3, %s289
      %s291 = smul.u32 8, %s20
      %p292 = scmp.lt.s32.totalorder %s291, 15
      %s293 = scalar_select %p292, %s291, 15
      %p294 = scmp.lt.s32.totalorder %s21, 0
      %s295 = scalar_select %p294, %s21, 0
      %s296 = sadd.s32 %s295, %s293
      %s297 = smul.addr %s296, 4
      %s298 = scalar_lea.vmem %s4, %s297
      %s299 = smul.u32 8, %s20
      %p301 = scmp.eq.s32.totalorder %s22, 0
      // Predicated region
      $region37: #{_lambda_.9} parent=35 // pred_check
        %p302 = pneg %p301
      $region38: #{_lambda_.9} parent=35 // pred_check_branch
        %304 = sbr.rel (%p302) target = $region40
      $region39: #{_lambda_.9} parent=35 // pred_region
        %305 = vst [vmem:[#allocation2] sm:$0xff] 0.0
        %306 = vst [vmem:[#allocation2 + $0x8] sm:$0xff] 0.0
        %307 = vst [vmem:[#allocation2 + $0x10] sm:$0xff] 0.0
        %308 = vst [vmem:[#allocation2 + $0x18] sm:$0xff] 0.0
        %309 = vst [vmem:[#allocation2 + $0x20] sm:$0xff] 0.0
        %310 = vst [vmem:[#allocation2 + $0x28] sm:$0xff] 0.0
        %311 = vst [vmem:[#allocation2 + $0x30] sm:$0xff] 0.0
        %312 = vst [vmem:[#allocation2 + $0x38] sm:$0xff] 0.0
      $region40: #{_lambda_.9} parent=35 // pred_fallthru
        _
      %v313 = vld [vmem:[#allocation2] sm:$0xff]
      %v314 = vld [vmem:[#allocation2 + $0x8] sm:$0xff]
      %v315 = vld [vmem:[#allocation2 + $0x10] sm:$0xff]
      %v316 = vld [vmem:[#allocation2 + $0x18] sm:$0xff]
      %v317 = vld [vmem:[#allocation2 + $0x20] sm:$0xff]
      %v318 = vld [vmem:[#allocation2 + $0x28] sm:$0xff]
      %v319 = vld [vmem:[#allocation2 + $0x30] sm:$0xff]
      %v320 = vld [vmem:[#allocation2 + $0x38] sm:$0xff]
      %v321 = vld [vmem:[%s274] sm:$0xf]
      %v322 = vld [vmem:[%s274 + $0x4] sm:$0xf]
      %v323 = vld [vmem:[%s274 + $0x8] sm:$0xf]
      %v324 = vld [vmem:[%s274 + $0xc] sm:$0xf]
      %v325 = vld [vmem:[%s274 + $0x10] sm:$0xf]
      %v326 = vld [vmem:[%s274 + $0x14] sm:$0xf]
      %v327 = vld [vmem:[%s274 + $0x18] sm:$0xf]
      %v328 = vld [vmem:[%s274 + $0x1c] sm:$0xf]
      %v329 = vld [vmem:[%s283] sm:$0xf]
      %v330 = vld [vmem:[%s283 + $0x4] sm:$0xf]
      %v331 = vld [vmem:[%s283 + $0x8] sm:$0xf]
      %v332 = vld [vmem:[%s283 + $0xc] sm:$0xf]
      %v333 = vld [vmem:[%s283 + $0x10] sm:$0xf]
      %v334 = vld [vmem:[%s283 + $0x14] sm:$0xf]
      %v335 = vld [vmem:[%s283 + $0x18] sm:$0xf]
      %v336 = vld [vmem:[%s283 + $0x1c] sm:$0xf]
      %v337 = vld [vmem:[%s283 + $0x20] sm:$0xf]
      %v338 = vld [vmem:[%s283 + $0x24] sm:$0xf]
      %v339 = vld [vmem:[%s283 + $0x28] sm:$0xf]
      %v340 = vld [vmem:[%s283 + $0x2c] sm:$0xf]
      %v341 = vld [vmem:[%s283 + $0x30] sm:$0xf]
      %v342 = vld [vmem:[%s283 + $0x34] sm:$0xf]
      %v343 = vld [vmem:[%s283 + $0x38] sm:$0xf]
      %v344 = vld [vmem:[%s283 + $0x3c] sm:$0xf]
      %v353 = vunpack.c.l.b16 %v321
      %v354 = vunpack.c.l.b16 %v322
      %v355 = vunpack.c.l.b16 %v323
      %v356 = vunpack.c.l.b16 %v324
      %v357 = vunpack.c.l.b16 %v325
      %v358 = vunpack.c.l.b16 %v326
      %v359 = vunpack.c.l.b16 %v327
      %v360 = vunpack.c.l.b16 %v328
      %v361 = vpack.c.b16 %v354, %v353
      %v362 = vpack.c.b16 %v356, %v355
      %v363 = vpack.c.b16 %v358, %v357
      %v364 = vpack.c.b16 %v360, %v359
      %v385 = vunpack.c.l.b16 %v329
      %v386 = vunpack.c.l.b16 %v330
      %v387 = vunpack.c.l.b16 %v331
      %v388 = vunpack.c.l.b16 %v332
      %v389 = vunpack.c.l.b16 %v333
      %v390 = vunpack.c.l.b16 %v334
      %v391 = vunpack.c.l.b16 %v335
      %v392 = vunpack.c.l.b16 %v336
      %v393 = vunpack.c.l.b16 %v337
      %v394 = vunpack.c.l.b16 %v338
      %v395 = vunpack.c.l.b16 %v339
      %v396 = vunpack.c.l.b16 %v340
      %v397 = vunpack.c.l.b16 %v341
      %v398 = vunpack.c.l.b16 %v342
      %v399 = vunpack.c.l.b16 %v343
      %v400 = vunpack.c.l.b16 %v344
      %v401 = vpack.c.b16 %v386, %v385
      %v402 = vpack.c.b16 %v388, %v387
      %v403 = vpack.c.b16 %v390, %v389
      %v404 = vpack.c.b16 %v392, %v391
      %v405 = vpack.c.b16 %v394, %v393
      %v406 = vpack.c.b16 %v396, %v395
      %v407 = vpack.c.b16 %v398, %v397
      %v408 = vpack.c.b16 %v400, %v399
      %417 = vmatprep.subr.bf16.mxu0 0
      %418 = vmatpush1.bf16.msra.mxu0 %v408
      %419 = vmatprep.subr.bf16.mxu0 0
      %420 = vmatpush1.bf16.msra.mxu0 %v407
      %421 = vmatprep.subr.bf16.mxu0 0
      %422 = vmatpush1.bf16.msra.mxu0 %v406
      %423 = vmatprep.subr.bf16.mxu0 0
      %424 = vmatpush1.bf16.msra.mxu0 %v405
      %425 = vmatprep.subr.bf16.mxu0 0
      %426 = vmatpush1.bf16.msra.mxu0 %v404
      %427 = vmatprep.subr.bf16.mxu0 0
      %428 = vmatpush1.bf16.msra.mxu0 %v403
      %429 = vmatprep.subr.bf16.mxu0 0
      %430 = vmatpush1.bf16.msra.mxu0 %v402
      %431 = vmatprep.subr.bf16.mxu0 0
      %432 = vmatpush1.bf16.msra.mxu0 %v401
      %433 = vmatprep.subr.bf16.mxu0 0
      %434 = vmatpush2.bf16.msra.mxu0 0
      %435 = vmatprep.subr.bf16.mxu0 0
      %436 = vmatpush2.bf16.msra.mxu0 0
      %437 = vmatprep.subr.bf16.mxu0 0
      %438 = vmatpush2.bf16.msra.mxu0 0
      %439 = vmatprep.subr.bf16.mxu0 0
      %440 = vmatpush2.bf16.msra.mxu0 0
      %441 = vmatprep.subr.bf16.mxu0 0
      %442 = vmatpush2.bf16.msra.mxu0 0
      %443 = vmatprep.subr.bf16.mxu0 0
      %444 = vmatpush2.bf16.msra.mxu0 0
      %445 = vmatprep.subr.bf16.mxu0 0
      %446 = vmatpush2.bf16.msra.mxu0 0
      %447 = vmatprep.subr.bf16.mxu0 0
      %448 = vmatpush2.bf16.msra.mxu0 0
      %449 = vmatprep.mubr.bf16.mxu0 0
      %450 = vmatmul.mubr.bf16.gmra.mxu0 %v361
      %v451 = vpop.f32.mrf.mxu0
      %v452 = vadd.f32 0.0, %v451
      %v453 = vpop.f32.mrf.mxu0
      %v454 = vpop.f32.mrf.mxu0
      %v455 = vadd.f32 0.0, %v454
      %v456 = vpop.f32.mrf.mxu0
      %457 = vmatprep.mubr.bf16.mxu0 0
      %458 = vmatmul.mubr.bf16.gmra.mxu0 %v362
      %v459 = vpop.f32.mrf.mxu0
      %v460 = vadd.f32 0.0, %v459
      %v461 = vpop.f32.mrf.mxu0
      %v462 = vpop.f32.mrf.mxu0
      %v463 = vadd.f32 0.0, %v462
      %v464 = vpop.f32.mrf.mxu0
      %465 = vmatprep.mubr.bf16.mxu0 0
      %466 = vmatmul.mubr.bf16.gmra.mxu0 %v363
      %v467 = vpop.f32.mrf.mxu0
      %v468 = vadd.f32 0.0, %v467
      %v469 = vpop.f32.mrf.mxu0
      %v470 = vpop.f32.mrf.mxu0
      %v471 = vadd.f32 0.0, %v470
      %v472 = vpop.f32.mrf.mxu0
      %473 = vmatprep.mubr.bf16.mxu0 0
      %474 = vmatmul.mubr.bf16.gmra.mxu0 %v364
      %v475 = vpop.f32.mrf.mxu0
      %v476 = vadd.f32 0.0, %v475
      %v477 = vpop.f32.mrf.mxu0
      %v478 = vpop.f32.mrf.mxu0
      %v479 = vadd.f32 0.0, %v478
      %v480 = vpop.f32.mrf.mxu0
      %481 = vdwg.mxu0
      %v482 = vadd.f32 %v313, %v452
      %v483 = vadd.f32 %v314, %v455
      %v484 = vadd.f32 %v315, %v460
      %v485 = vadd.f32 %v316, %v463
      %v486 = vadd.f32 %v317, %v468
      %v487 = vadd.f32 %v318, %v471
      %v488 = vadd.f32 %v319, %v476
      %v489 = vadd.f32 %v320, %v479
      %490 = vst [vmem:[#allocation2] sm:$0xff] %v482
      %491 = vst [vmem:[#allocation2 + $0x8] sm:$0xff] %v483
      %492 = vst [vmem:[#allocation2 + $0x10] sm:$0xff] %v484
      %493 = vst [vmem:[#allocation2 + $0x18] sm:$0xff] %v485
      %494 = vst [vmem:[#allocation2 + $0x20] sm:$0xff] %v486
      %495 = vst [vmem:[#allocation2 + $0x28] sm:$0xff] %v487
      %496 = vst [vmem:[#allocation2 + $0x30] sm:$0xff] %v488
      %497 = vst [vmem:[#allocation2 + $0x38] sm:$0xff] %v489
      // Predicated region
      $region41: #{_lambda_.9} parent=35 // pred_check
        %p498 = pneg %p301
      $region42: #{_lambda_.9} parent=35 // pred_check_branch
        %500 = sbr.rel (%p498) target = $region44
      $region43: #{_lambda_.9} parent=35 // pred_region
        %v501 = vld [vmem:[#allocation2] sm:$0xff]
        %v502 = vld [vmem:[#allocation2 + $0x8] sm:$0xff]
        %v503 = vld [vmem:[#allocation2 + $0x10] sm:$0xff]
        %v504 = vld [vmem:[#allocation2 + $0x18] sm:$0xff]
        %v505 = vld [vmem:[#allocation2 + $0x20] sm:$0xff]
        %v506 = vld [vmem:[#allocation2 + $0x28] sm:$0xff]
        %v507 = vld [vmem:[#allocation2 + $0x30] sm:$0xff]
        %v508 = vld [vmem:[#allocation2 + $0x38] sm:$0xff]
        %v509 = vld [vmem:[%s287] sm:$0x1]
        %v511 = vlaneseq
        %v512 = vshrl.u32 %v511, 7
        %v513 = vsub.s32 0, %v512
        %v514 = vrot.slane %v509, %v513
        %v516 = vmul.f32 %v501, %v514
        %v517 = vmul.f32 %v502, %v514
        %v518 = vmul.f32 %v503, %v514
        %v519 = vmul.f32 %v504, %v514
        %v520 = vmul.f32 %v505, %v514
        %v521 = vmul.f32 %v506, %v514
        %v522 = vmul.f32 %v507, %v514
        %v523 = vmul.f32 %v508, %v514
        %v524 = vld [vmem:[%s290] sm:$0x1]
        %v526 = vlaneseq
        %v527 = vshrl.u32 %v526, 7
        %v528 = vsub.s32 0, %v527
        %v529 = vrot.slane %v524, %v528
        %v531 = vadd.f32 %v516, %v529
        %v532 = vadd.f32 %v517, %v529
        %v533 = vadd.f32 %v518, %v529
        %v534 = vadd.f32 %v519, %v529
        %v535 = vadd.f32 %v520, %v529
        %v536 = vadd.f32 %v521, %v529
        %v537 = vadd.f32 %v522, %v529
        %v538 = vadd.f32 %v523, %v529
        %v539 = vpack.c.bf16 %v532, %v531
        %v540 = vpack.c.bf16 %v534, %v533
        %v541 = vpack.c.bf16 %v536, %v535
        %v542 = vpack.c.bf16 %v538, %v537
        %v547 = vunpack.c.l.b16 %v539
        %v548 = vunpack.c.h.b16 %v539
        %v549 = vunpack.c.l.b16 %v540
        %v550 = vunpack.c.h.b16 %v540
        %v551 = vunpack.c.l.b16 %v541
        %v552 = vunpack.c.h.b16 %v541
        %v553 = vunpack.c.l.b16 %v542
        %v554 = vunpack.c.h.b16 %v542
        %v555 = vpack.c.b16 %v547, %v547
        %v556 = vpack.c.b16 %v548, %v548
        %v557 = vpack.c.b16 %v549, %v549
        %v558 = vpack.c.b16 %v550, %v550
        %v559 = vpack.c.b16 %v551, %v551
        %v560 = vpack.c.b16 %v552, %v552
        %v561 = vpack.c.b16 %v553, %v553
        %v562 = vpack.c.b16 %v554, %v554
        %571 = vst [vmem:[%s298] sm:$0xf] %v555
        %572 = vst [vmem:[%s298 + $0x4] sm:$0xf] %v556
        %573 = vst [vmem:[%s298 + $0x8] sm:$0xf] %v557
        %574 = vst [vmem:[%s298 + $0xc] sm:$0xf] %v558
        %575 = vst [vmem:[%s298 + $0x10] sm:$0xf] %v559
        %576 = vst [vmem:[%s298 + $0x14] sm:$0xf] %v560
        %577 = vst [vmem:[%s298 + $0x18] sm:$0xf] %v561
        %578 = vst [vmem:[%s298 + $0x1c] sm:$0xf] %v562
      $region44: #{_lambda_.9} parent=35 // pred_fallthru
        _
      %s579 = smul.u32 8, %s20
      %p580 = scmp.lt.s32.totalorder %s579, 15
      %s581 = scalar_select %p580, %s579, 15
      %p582 = scmp.lt.s32.totalorder %s21, 0
      %s583 = scalar_select %p582, %s21, 0
      %s584 = sadd.s32 %s583, %s581
      %s585 = smul.addr %s584, 4
      %s586 = scalar_lea.vmem %s4, %s585
      // Predicated region
      $region45: #{_lambda_.9} parent=35 // pred_check
        %p587 = pneg %p162
      $region46: #{_lambda_.9} parent=35 // pred_check_branch
        %589 = sbr.rel (%p587) target = $region48
      $region47: #{_lambda_.9} parent=35 // pred_region
        %s590 = smul.u32 8, %s20
      $region48: #{_lambda_.9} parent=35 // pred_fallthru
        _
    $region36: #{_lambda_.9} parent=5 // pred_fallthru
      _
    %p591 = scmp.le.s32.totalorder 2, %s10
    // Predicated region
    $region49: #{_lambda_.9} parent=5 // pred_check
      %p592 = pneg %p591
    $region50: #{_lambda_.9} parent=5 // pred_check_branch
      %594 = sbr.rel (%p592) target = $region52
    $region51: #{_lambda_.9} parent=5 // pred_region
      %s595 = ssub.s32 %s10, 2
      // Predicated region
      $region53: #{_lambda_.9} parent=51 // pred_check
        %p596 = pneg %p168
      $region54: #{_lambda_.9} parent=51 // pred_check_branch
        %598 = sbr.rel (%p596) target = $region56
      $region55: #{_lambda_.9} parent=51 // pred_region
        %s599 = smul.u32 8, %s23
        %p600 = scmp.lt.s32.totalorder %s599, 15
        %s601 = scalar_select %p600, %s599, 15
        %p602 = scmp.lt.s32.totalorder %s24, 0
        %s603 = scalar_select %p602, %s24, 0
        %s604 = sadd.s32 %s603, %s601
        %s605 = smul.addr %s604, 4
        %s606 = scalar_lea.vmem %s4, %s605
      $region56: #{_lambda_.9} parent=51 // pred_fallthru
        _
    $region52: #{_lambda_.9} parent=5 // pred_fallthru
      _
  $region6: #{_lambda_.9} parent=0 // loop_footer
    %s14 = sadd.s32 1, %s10
  $region7: #{_lambda_.9} parent=0 // loop_footer_branch
    %9 = sbr.rel target = $region3
  $region8: #{_lambda_.9} parent=0 // loop_exit
    _

// kernel: _lambda_.7
$region0: #{_lambda_.7}
  #allocation0 [shape = 'u32[]', space=smem, size = 0x4, offset = 0x4, fixed_abs, tag = 'smem constant byte address 0x4 - core index']
  #allocation1 [shape = 'u32[144,128]{1,0:T(1,128)}', space=vmem, size = 0x12000, scoped, tag = 'internal scratch']
  #allocation2 [shape = 'f32[256,128]{1,0:T(8,128)}', space=vmem, size = 0x20000, scoped, tag = 'scratch operand']
  %s0 = inlined_call_operand.vmem [shape: bf16[512,128], index: 0, kind: input, shape index: {}]
  %s1 = inlined_call_operand.vmem [shape: bf16[128,128], index: 1, kind: input, shape index: {}]
  %s2 = inlined_call_operand.vmem [shape: f32[1,128], index: 2, kind: input, shape index: {}]
  %s3 = inlined_call_operand.vmem [shape: f32[1,128], index: 3, kind: input, shape index: {}]
  %s4 = inlined_call_operand.vmem [shape: bf16[512,128], index: 4, kind: output, shape index: {}]
  %s5 = sld [smem:[#allocation0]]
  $region57: #{_lambda_.7} parent=0
    _
  %s7 = ssub.s32 1, %s5
  %s8 = scalar_select 0, %s7, %s5
  loop: start=0, step=1, limit=4
  $region2: #{_lambda_.7} parent=0 // loop_pre_header
    _
  $region3: #{_lambda_.7} parent=0 // loop_header
    %s10 = sphi 0, %s14
    %p11 = scmp.ge.s32.totalorder %s10, 4
    %s17 = sphi 0, %s36
    %s18 = sphi 0, %s32
    %s19 = sphi 0, %s28
    %s20 = sphi 0, %s17
    %s21 = sphi 0, %s18
    %s22 = sphi 0, %s19
    %s23 = sphi 0, %s20
    %s24 = sphi 0, %s21
    %s25 = sphi 0, %s22
    %s41 = sphi 0, %s43
    %s44 = sphi 0, %s41
    %s45 = sphi 0, %s44
    %s61 = sphi 0, %s45
    %s69 = sphi 0, %s71
    %s72 = sphi 0, %s69
    %s73 = sphi 0, %s72
    %s89 = sphi 0, %s73
    %s95 = sphi 0, %s97
    %s98 = sphi 0, %s95
    %s99 = sphi 0, %s98
    %s115 = sphi 0, %s99
    %s121 = sphi 0, %s123
    %s124 = sphi 0, %s121
    %s125 = sphi 0, %s124
    %s141 = sphi 0, %s125
    %s149 = sphi 0, %s151
    %s152 = sphi 0, %s149
    %s153 = sphi 0, %s152
    %s169 = sphi 0, %s153
  $region4: #{_lambda_.7} parent=0 // loop_header_branch
    %13 = sbr.rel (%p11) target = $region8
  $region5: #{_lambda_.7} parent=0 // loop_body
    %s15 = ssub.s32 %s10, 1
    %s16 = ssub.s32 %s10, 2
    %s26 = sadd.s32 1, %s19
    %p27 = scmp.ge.s32.totalorder %s26, 1
    %s28 = scalar_select %p27, 0, %s26
    %s29 = sadd.s32 1, %s18
    %s30 = scalar_select %p27, %s29, %s18
    %p31 = scmp.ge.s32.totalorder %s30, 1
    %s32 = scalar_select %p31, 0, %s30
    %s33 = sadd.s32 1, %s17
    %s34 = scalar_select %p31, %s33, %s17
    %p35 = scmp.ge.s32.totalorder %s34, 2
    %s36 = scalar_select %p35, 0, %s34
    %s37 = ssub.s32 %s17, %s36
    %s38 = ssub.s32 %s19, %s28
    %s39 = sor.u32 %s37, %s38
    %p40 = scmp.eq.s32.totalorder %s39, 0
    %s42 = sadd.s32 %s41, 1
    %s43 = scalar_select %p40, %s41, %s42
    %p46 = pneg %p40
    %p47 = scmp.eq.s32.totalorder %s10, 1
    %p48 = por %p46, %p47
    %p49 = scmp.ne.s32.totalorder %s41, %s44
    %p50 = scmp.eq.s32.totalorder %s10, 0
    %p51 = por %p49, %p50
    %p52 = scmp.ne.s32.totalorder %s41, %s44
    %p53 = scmp.eq.s32.totalorder %s15, 1
    %p54 = por %p52, %p53
    %p55 = scmp.ne.s32.totalorder %s44, %s45
    %p56 = scmp.eq.s32.totalorder %s15, 0
    %p57 = por %p55, %p56
    %p58 = scmp.ne.s32.totalorder %s44, %s45
    %p59 = scmp.eq.s32.totalorder %s16, 1
    %p60 = por %p58, %p59
    %p62 = scmp.ne.s32.totalorder %s45, %s61
    %p63 = scmp.eq.s32.totalorder %s16, 0
    %p64 = por %p62, %p63
    %s65 = ssub.s32 %s19, %s28
    %s66 = ssub.s32 %s18, %s32
    %s67 = sor.u32 %s65, %s66
    %p68 = scmp.eq.s32.totalorder %s67, 0
    %s70 = sadd.s32 %s69, 1
    %s71 = scalar_select %p68, %s69, %s70
    %p74 = pneg %p68
    %p75 = scmp.eq.s32.totalorder %s10, 1
    %p76 = por %p74, %p75
    %p77 = scmp.ne.s32.totalorder %s69, %s72
    %p78 = scmp.eq.s32.totalorder %s10, 0
    %p79 = por %p77, %p78
    %p80 = scmp.ne.s32.totalorder %s69, %s72
    %p81 = scmp.eq.s32.totalorder %s15, 1
    %p82 = por %p80, %p81
    %p83 = scmp.ne.s32.totalorder %s72, %s73
    %p84 = scmp.eq.s32.totalorder %s15, 0
    %p85 = por %p83, %p84
    %p86 = scmp.ne.s32.totalorder %s72, %s73
    %p87 = scmp.eq.s32.totalorder %s16, 1
    %p88 = por %p86, %p87
    %p90 = scmp.ne.s32.totalorder %s73, %s89
    %p91 = scmp.eq.s32.totalorder %s16, 0
    %p92 = por %p90, %p91
    %s93 = ssub.s32 %s18, %s32
    %p94 = scmp.eq.s32.totalorder %s93, 0
    %s96 = sadd.s32 %s95, 1
    %s97 = scalar_select %p94, %s95, %s96
    %p100 = pneg %p94
    %p101 = scmp.eq.s32.totalorder %s10, 1
    %p102 = por %p100, %p101
    %p103 = scmp.ne.s32.totalorder %s95, %s98
    %p104 = scmp.eq.s32.totalorder %s10, 0
    %p105 = por %p103, %p104
    %p106 = scmp.ne.s32.totalorder %s95, %s98
    %p107 = scmp.eq.s32.totalorder %s15, 1
    %p108 = por %p106, %p107
    %p109 = scmp.ne.s32.totalorder %s98, %s99
    %p110 = scmp.eq.s32.totalorder %s15, 0
    %p111 = por %p109, %p110
    %p112 = scmp.ne.s32.totalorder %s98, %s99
    %p113 = scmp.eq.s32.totalorder %s16, 1
    %p114 = por %p112, %p113
    %p116 = scmp.ne.s32.totalorder %s99, %s115
    %p117 = scmp.eq.s32.totalorder %s16, 0
    %p118 = por %p116, %p117
    %s119 = ssub.s32 %s18, %s32
    %p120 = scmp.eq.s32.totalorder %s119, 0
    %s122 = sadd.s32 %s121, 1
    %s123 = scalar_select %p120, %s121, %s122
    %p126 = pneg %p120
    %p127 = scmp.eq.s32.totalorder %s10, 1
    %p128 = por %p126, %p127
    %p129 = scmp.ne.s32.totalorder %s121, %s124
    %p130 = scmp.eq.s32.totalorder %s10, 0
    %p131 = por %p129, %p130
    %p132 = scmp.ne.s32.totalorder %s121, %s124
    %p133 = scmp.eq.s32.totalorder %s15, 1
    %p134 = por %p132, %p133
    %p135 = scmp.ne.s32.totalorder %s124, %s125
    %p136 = scmp.eq.s32.totalorder %s15, 0
    %p137 = por %p135, %p136
    %p138 = scmp.ne.s32.totalorder %s124, %s125
    %p139 = scmp.eq.s32.totalorder %s16, 1
    %p140 = por %p138, %p139
    %p142 = scmp.ne.s32.totalorder %s125, %s141
    %p143 = scmp.eq.s32.totalorder %s16, 0
    %p144 = por %p142, %p143
    %s145 = ssub.s32 %s17, %s36
    %s146 = ssub.s32 %s18, %s32
    %s147 = sor.u32 %s145, %s146
    %p148 = scmp.eq.s32.totalorder %s147, 0
    %s150 = sadd.s32 %s149, 1
    %s151 = scalar_select %p148, %s149, %s150
    %p154 = pneg %p148
    %p155 = scmp.eq.s32.totalorder %s10, 1
    %p156 = por %p154, %p155
    %p157 = scmp.ne.s32.totalorder %s149, %s152
    %p158 = scmp.eq.s32.totalorder %s10, 0
    %p159 = por %p157, %p158
    %p160 = scmp.ne.s32.totalorder %s149, %s152
    %p161 = scmp.eq.s32.totalorder %s15, 1
    %p162 = por %p160, %p161
    %p163 = scmp.ne.s32.totalorder %s152, %s153
    %p164 = scmp.eq.s32.totalorder %s15, 0
    %p165 = por %p163, %p164
    %p166 = scmp.ne.s32.totalorder %s152, %s153
    %p167 = scmp.eq.s32.totalorder %s16, 1
    %p168 = por %p166, %p167
    %p170 = scmp.ne.s32.totalorder %s153, %s169
    %p171 = scmp.eq.s32.totalorder %s16, 0
    %p172 = por %p170, %p171
    %p173 = scmp.le.s32.totalorder 1, %s10
    %p174 = scmp.lt.s32.totalorder %s10, 3
    %p175 = pnand %p173, %p174
    %p176 = pneg %p175
    // Predicated region
    $region9: #{_lambda_.7} parent=5 // pred_check
      _
    $region10: #{_lambda_.7} parent=5 // pred_check_branch
      %178 = sbr.rel (%p175) target = $region12
    $region11: #{_lambda_.7} parent=5 // pred_region
      %s179 = ssub.s32 %s10, 1
      // Predicated region
      $region13: #{_lambda_.7} parent=11 // pred_check
        %p180 = pneg %p85
      $region14: #{_lambda_.7} parent=11 // pred_check_branch
        %182 = sbr.rel (%p180) target = $region16
      $region15: #{_lambda_.7} parent=11 // pred_region
        %s183 = smul.u32 16, %s22
        %p184 = scmp.lt.s32.totalorder %s183, 15
        %s185 = scalar_select %p184, %s183, 15
        %p186 = scmp.lt.s32.totalorder %s21, 0
        %s187 = scalar_select %p186, %s21, 0
        %s188 = sadd.s32 %s187, %s185
        %s189 = smul.addr %s188, 4
        %s190 = scalar_lea.vmem %s1, %s189
        %s191 = smul.u32 16, %s22
      $region16: #{_lambda_.7} parent=11 // pred_fallthru
        _
      // Predicated region
      $region17: #{_lambda_.7} parent=11 // pred_check
        %p192 = pneg %p111
      $region18: #{_lambda_.7} parent=11 // pred_check_branch
        %194 = sbr.rel (%p192) target = $region20
      $region19: #{_lambda_.7} parent=11 // pred_region
        %p195 = scmp.lt.s32.totalorder %s21, 0
        %s196 = scalar_select %p195, %s21, 0
        %s197 = scalar_lea.vmem %s2, %s196
      $region20: #{_lambda_.7} parent=11 // pred_fallthru
        _
      // Predicated region
      $region21: #{_lambda_.7} parent=11 // pred_check
        %p198 = pneg %p137
      $region22: #{_lambda_.7} parent=11 // pred_check_branch
        %200 = sbr.rel (%p198) target = $region24
      $region23: #{_lambda_.7} parent=11 // pred_region
        %p201 = scmp.lt.s32.totalorder %s21, 0
        %s202 = scalar_select %p201, %s21, 0
        %s203 = scalar_lea.vmem %s3, %s202
      $region24: #{_lambda_.7} parent=11 // pred_fallthru
        _
    $region12: #{_lambda_.7} parent=5 // pred_fallthru
      _
    %p204 = scmp.lt.s32.totalorder %s10, 2
    // Predicated region
    $region25: #{_lambda_.7} parent=5 // pred_check
      %p205 = pneg %p204
    $region26: #{_lambda_.7} parent=5 // pred_check_branch
      %207 = sbr.rel (%p205) target = $region28
    $region27: #{_lambda_.7} parent=5 // pred_region
      // Predicated region
      $region29: #{_lambda_.7} parent=27 // pred_check
        %p208 = pneg %p51
      $region30: #{_lambda_.7} parent=27 // pred_check_branch
        %210 = sbr.rel (%p208) target = $region32
      $region31: #{_lambda_.7} parent=27 // pred_region
        %s211 = smul.u32 32, %s17
        %p212 = scmp.lt.s32.totalorder %s211, 63
        %s213 = scalar_select %p212, %s211, 63
        %p214 = scmp.lt.s32.totalorder %s19, 0
        %s215 = scalar_select %p214, %s19, 0
        %s216 = sadd.s32 %s215, %s213
        %s217 = smul.addr %s216, 4
        %s218 = scalar_lea.vmem %s0, %s217
        %s219 = smul.u32 32, %s17
      $region32: #{_lambda_.7} parent=27 // pred_fallthru
        _
    $region28: #{_lambda_.7} parent=5 // pred_fallthru
      _
    %p220 = scmp.le.s32.totalorder 1, %s10
    %p221 = scmp.lt.s32.totalorder %s10, 3
    %p222 = pnand %p220, %p221
    %p223 = pneg %p222
    // Predicated region
    $region33: #{_lambda_.7} parent=5 // pred_check
      _
    $region34: #{_lambda_.7} parent=5 // pred_check_branch
      %225 = sbr.rel (%p222) target = $region36
    $region35: #{_lambda_.7} parent=5 // pred_region
      %s226 = ssub.s32 %s10, 1
      %s227 = smul.u32 32, %s20
      %p228 = scmp.lt.s32.totalorder %s227, 63
      %s229 = scalar_select %p228, %s227, 63
      %p230 = scmp.lt.s32.totalorder %s22, 0
      %s231 = scalar_select %p230, %s22, 0
      %s232 = sadd.s32 %s231, %s229
      %s233 = smul.addr %s232, 4
      %s234 = scalar_lea.vmem %s0, %s233
      %p235 = pneg %p57
      %p236 = pneg %p54
      %s237 = smul.u32 16, %s22
      %p238 = scmp.lt.s32.totalorder %s237, 15
      %s239 = scalar_select %p238, %s237, 15
      %p240 = scmp.lt.s32.totalorder %s21, 0
      %s241 = scalar_select %p240, %s21, 0
      %s242 = sadd.s32 %s241, %s239
      %s243 = smul.addr %s242, 4
      %s244 = scalar_lea.vmem %s1, %s243
      %p245 = pneg %p85
      %p246 = pneg %p82
      %p247 = scmp.lt.s32.totalorder %s21, 0
      %s248 = scalar_select %p247, %s21, 0
      %s249 = scalar_lea.vmem %s2, %s248
      %p250 = pneg %p111
      %p251 = pneg %p108
      %p252 = scmp.lt.s32.totalorder %s21, 0
      %s253 = scalar_select %p252, %s21, 0
      %s254 = scalar_lea.vmem %s3, %s253
      %p255 = pneg %p137
      %p256 = pneg %p134
      %p257 = pneg %p165
      %p258 = pneg %p162
      %s259 = smul.u32 32, %s20
      %p260 = scmp.lt.s32.totalorder %s259, 63
      %s261 = scalar_select %p260, %s259, 63
      %p262 = scmp.lt.s32.totalorder %s21, 0
      %s263 = scalar_select %p262, %s21, 0
      %s264 = sadd.s32 %s263, %s261
      %s265 = smul.addr %s264, 4
      %s266 = scalar_lea.vmem %s4, %s265
      %s267 = smul.u32 32, %s20
      %p268 = scmp.lt.s32.totalorder %s267, 63
      %s269 = scalar_select %p268, %s267, 63
      %p270 = scmp.lt.s32.totalorder %s22, 0
      %s271 = scalar_select %p270, %s22, 0
      %s272 = sadd.s32 %s271, %s269
      %s273 = smul.addr %s272, 4
      %s274 = scalar_lea.vmem %s0, %s273
      %s275 = smul.u32 32, %s20
      %s276 = smul.u32 16, %s22
      %p277 = scmp.lt.s32.totalorder %s276, 15
      %s278 = scalar_select %p277, %s276, 15
      %p279 = scmp.lt.s32.totalorder %s21, 0
      %s280 = scalar_select %p279, %s21, 0
      %s281 = sadd.s32 %s280, %s278
      %s282 = smul.addr %s281, 4
      %s283 = scalar_lea.vmem %s1, %s282
      %s284 = smul.u32 16, %s22
      %p285 = scmp.lt.s32.totalorder %s21, 0
      %s286 = scalar_select %p285, %s21, 0
      %s287 = scalar_lea.vmem %s2, %s286
      %p288 = scmp.lt.s32.totalorder %s21, 0
      %s289 = scalar_select %p288, %s21, 0
      %s290 = scalar_lea.vmem %s3, %s289
      %s291 = smul.u32 32, %s20
      %p292 = scmp.lt.s32.totalorder %s291, 63
      %s293 = scalar_select %p292, %s291, 63
      %p294 = scmp.lt.s32.totalorder %s21, 0
      %s295 = scalar_select %p294, %s21, 0
      %s296 = sadd.s32 %s295, %s293
      %s297 = smul.addr %s296, 4
      %s298 = scalar_lea.vmem %s4, %s297
      %s299 = smul.u32 32, %s20
      %p301 = scmp.eq.s32.totalorder %s22, 0
      // Predicated region
      $region37: #{_lambda_.7} parent=35 // pred_check
        %p302 = pneg %p301
      $region38: #{_lambda_.7} parent=35 // pred_check_branch
        %304 = sbr.rel (%p302) target = $region40
      $region39: #{_lambda_.7} parent=35 // pred_region
        %305 = vst [vmem:[#allocation2] sm:$0xff] 0.0
        %306 = vst [vmem:[#allocation2 + $0x8] sm:$0xff] 0.0
        %307 = vst [vmem:[#allocation2 + $0x10] sm:$0xff] 0.0
        %308 = vst [vmem:[#allocation2 + $0x18] sm:$0xff] 0.0
        %309 = vst [vmem:[#allocation2 + $0x20] sm:$0xff] 0.0
        %310 = vst [vmem:[#allocation2 + $0x28] sm:$0xff] 0.0
        %311 = vst [vmem:[#allocation2 + $0x30] sm:$0xff] 0.0
        %312 = vst [vmem:[#allocation2 + $0x38] sm:$0xff] 0.0
        %313 = vst [vmem:[#allocation2 + $0x40] sm:$0xff] 0.0
        %314 = vst [vmem:[#allocation2 + $0x48] sm:$0xff] 0.0
        %315 = vst [vmem:[#allocation2 + $0x50] sm:$0xff] 0.0
        %316 = vst [vmem:[#allocation2 + $0x58] sm:$0xff] 0.0
        %317 = vst [vmem:[#allocation2 + $0x60] sm:$0xff] 0.0
        %318 = vst [vmem:[#allocation2 + $0x68] sm:$0xff] 0.0
        %319 = vst [vmem:[#allocation2 + $0x70] sm:$0xff] 0.0
        %320 = vst [vmem:[#allocation2 + $0x78] sm:$0xff] 0.0
        %321 = vst [vmem:[#allocation2 + $0x80] sm:$0xff] 0.0
        %322 = vst [vmem:[#allocation2 + $0x88] sm:$0xff] 0.0
        %323 = vst [vmem:[#allocation2 + $0x90] sm:$0xff] 0.0
        %324 = vst [vmem:[#allocation2 + $0x98] sm:$0xff] 0.0
        %325 = vst [vmem:[#allocation2 + $0xa0] sm:$0xff] 0.0
        %326 = vst [vmem:[#allocation2 + $0xa8] sm:$0xff] 0.0
        %327 = vst [vmem:[#allocation2 + $0xb0] sm:$0xff] 0.0
        %328 = vst [vmem:[#allocation2 + $0xb8] sm:$0xff] 0.0
        %329 = vst [vmem:[#allocation2 + $0xc0] sm:$0xff] 0.0
        %330 = vst [vmem:[#allocation2 + $0xc8] sm:$0xff] 0.0
        %331 = vst [vmem:[#allocation2 + $0xd0] sm:$0xff] 0.0
        %332 = vst [vmem:[#allocation2 + $0xd8] sm:$0xff] 0.0
        %333 = vst [vmem:[#allocation2 + $0xe0] sm:$0xff] 0.0
        %334 = vst [vmem:[#allocation2 + $0xe8] sm:$0xff] 0.0
        %335 = vst [vmem:[#allocation2 + $0xf0] sm:$0xff] 0.0
        %336 = vst [vmem:[#allocation2 + $0xf8] sm:$0xff] 0.0
      $region40: #{_lambda_.7} parent=35 // pred_fallthru
        _
      %v337 = vld [vmem:[#allocation2] sm:$0xff]
      %v338 = vld [vmem:[#allocation2 + $0x8] sm:$0xff]
      %v339 = vld [vmem:[#allocation2 + $0x10] sm:$0xff]
      %v340 = vld [vmem:[#allocation2 + $0x18] sm:$0xff]
      %v341 = vld [vmem:[#allocation2 + $0x20] sm:$0xff]
      %v342 = vld [vmem:[#allocation2 + $0x28] sm:$0xff]
      %v343 = vld [vmem:[#allocation2 + $0x30] sm:$0xff]
      %v344 = vld [vmem:[#allocation2 + $0x38] sm:$0xff]
      %v345 = vld [vmem:[#allocation2 + $0x40] sm:$0xff]
      %v346 = vld [vmem:[#allocation2 + $0x48] sm:$0xff]
      %v347 = vld [vmem:[#allocation2 + $0x50] sm:$0xff]
      %v348 = vld [vmem:[#allocation2 + $0x58] sm:$0xff]
      %v349 = vld [vmem:[#allocation2 + $0x60] sm:$0xff]
      %v350 = vld [vmem:[#allocation2 + $0x68] sm:$0xff]
      %v351 = vld [vmem:[#allocation2 + $0x70] sm:$0xff]
      %v352 = vld [vmem:[#allocation2 + $0x78] sm:$0xff]
      %v353 = vld [vmem:[#allocation2 + $0x80] sm:$0xff]
      %v354 = vld [vmem:[#allocation2 + $0x88] sm:$0xff]
      %v355 = vld [vmem:[#allocation2 + $0x90] sm:$0xff]
      %v356 = vld [vmem:[#allocation2 + $0x98] sm:$0xff]
      %v357 = vld [vmem:[#allocation2 + $0xa0] sm:$0xff]
      %v358 = vld [vmem:[#allocation2 + $0xa8] sm:$0xff]
      %v359 = vld [vmem:[#allocation2 + $0xb0] sm:$0xff]
      %v360 = vld [vmem:[#allocation2 + $0xb8] sm:$0xff]
      %v361 = vld [vmem:[#allocation2 + $0xc0] sm:$0xff]
      %v362 = vld [vmem:[#allocation2 + $0xc8] sm:$0xff]
      %v363 = vld [vmem:[#allocation2 + $0xd0] sm:$0xff]
      %v364 = vld [vmem:[#allocation2 + $0xd8] sm:$0xff]
      %v365 = vld [vmem:[#allocation2 + $0xe0] sm:$0xff]
      %v366 = vld [vmem:[#allocation2 + $0xe8] sm:$0xff]
      %v367 = vld [vmem:[#allocation2 + $0xf0] sm:$0xff]
      %v368 = vld [vmem:[#allocation2 + $0xf8] sm:$0xff]
      %v369 = vld [vmem:[%s274] sm:$0xf]
      %v370 = vld [vmem:[%s274 + $0x4] sm:$0xf]
      %v371 = vld [vmem:[%s274 + $0x8] sm:$0xf]
      %v372 = vld [vmem:[%s274 + $0xc] sm:$0xf]
      %v373 = vld [vmem:[%s274 + $0x10] sm:$0xf]
      %v374 = vld [vmem:[%s274 + $0x14] sm:$0xf]
      %v375 = vld [vmem:[%s274 + $0x18] sm:$0xf]
      %v376 = vld [vmem:[%s274 + $0x1c] sm:$0xf]
      %v377 = vld [vmem:[%s274 + $0x20] sm:$0xf]
      %v378 = vld [vmem:[%s274 + $0x24] sm:$0xf]
      %v379 = vld [vmem:[%s274 + $0x28] sm:$0xf]
      %v380 = vld [vmem:[%s274 + $0x2c] sm:$0xf]
      %v381 = vld [vmem:[%s274 + $0x30] sm:$0xf]
      %v382 = vld [vmem:[%s274 + $0x34] sm:$0xf]
      %v383 = vld [vmem:[%s274 + $0x38] sm:$0xf]
      %v384 = vld [vmem:[%s274 + $0x3c] sm:$0xf]
      %v385 = vld [vmem:[%s274 + $0x40] sm:$0xf]
      %v386 = vld [vmem:[%s274 + $0x44] sm:$0xf]
      %v387 = vld [vmem:[%s274 + $0x48] sm:$0xf]
      %v388 = vld [vmem:[%s274 + $0x4c] sm:$0xf]
      %v389 = vld [vmem:[%s274 + $0x50] sm:$0xf]
      %v390 = vld [vmem:[%s274 + $0x54] sm:$0xf]
      %v391 = vld [vmem:[%s274 + $0x58] sm:$0xf]
      %v392 = vld [vmem:[%s274 + $0x5c] sm:$0xf]
      %v393 = vld [vmem:[%s274 + $0x60] sm:$0xf]
      %v394 = vld [vmem:[%s274 + $0x64] sm:$0xf]
      %v395 = vld [vmem:[%s274 + $0x68] sm:$0xf]
      %v396 = vld [vmem:[%s274 + $0x6c] sm:$0xf]
      %v397 = vld [vmem:[%s274 + $0x70] sm:$0xf]
      %v398 = vld [vmem:[%s274 + $0x74] sm:$0xf]
      %v399 = vld [vmem:[%s274 + $0x78] sm:$0xf]
      %v400 = vld [vmem:[%s274 + $0x7c] sm:$0xf]
      %v401 = vld [vmem:[%s283] sm:$0xf]
      %v402 = vld [vmem:[%s283 + $0x4] sm:$0xf]
      %v403 = vld [vmem:[%s283 + $0x8] sm:$0xf]
      %v404 = vld [vmem:[%s283 + $0xc] sm:$0xf]
      %v405 = vld [vmem:[%s283 + $0x10] sm:$0xf]
      %v406 = vld [vmem:[%s283 + $0x14] sm:$0xf]
      %v407 = vld [vmem:[%s283 + $0x18] sm:$0xf]
      %v408 = vld [vmem:[%s283 + $0x1c] sm:$0xf]
      %v409 = vld [vmem:[%s283 + $0x20] sm:$0xf]
      %v410 = vld [vmem:[%s283 + $0x24] sm:$0xf]
      %v411 = vld [vmem:[%s283 + $0x28] sm:$0xf]
      %v412 = vld [vmem:[%s283 + $0x2c] sm:$0xf]
      %v413 = vld [vmem:[%s283 + $0x30] sm:$0xf]
      %v414 = vld [vmem:[%s283 + $0x34] sm:$0xf]
      %v415 = vld [vmem:[%s283 + $0x38] sm:$0xf]
      %v416 = vld [vmem:[%s283 + $0x3c] sm:$0xf]
      %v449 = vunpack.c.l.b16 %v369
      %v450 = vunpack.c.l.b16 %v370
      %v451 = vunpack.c.l.b16 %v371
      %v452 = vunpack.c.l.b16 %v372
      %v453 = vunpack.c.l.b16 %v373
      %v454 = vunpack.c.l.b16 %v374
      %v455 = vunpack.c.l.b16 %v375
      %v456 = vunpack.c.l.b16 %v376
      %v457 = vunpack.c.l.b16 %v377
      %v458 = vunpack.c.l.b16 %v378
      %v459 = vunpack.c.l.b16 %v379
      %v460 = vunpack.c.l.b16 %v380
      %v461 = vunpack.c.l.b16 %v381
      %v462 = vunpack.c.l.b16 %v382
      %v463 = vunpack.c.l.b16 %v383
      %v464 = vunpack.c.l.b16 %v384
      %v465 = vunpack.c.l.b16 %v385
      %v466 = vunpack.c.l.b16 %v386
      %v467 = vunpack.c.l.b16 %v387
      %v468 = vunpack.c.l.b16 %v388
      %v469 = vunpack.c.l.b16 %v389
      %v470 = vunpack.c.l.b16 %v390
      %v471 = vunpack.c.l.b16 %v391
      %v472 = vunpack.c.l.b16 %v392
      %v473 = vunpack.c.l.b16 %v393
      %v474 = vunpack.c.l.b16 %v394
      %v475 = vunpack.c.l.b16 %v395
      %v476 = vunpack.c.l.b16 %v396
      %v477 = vunpack.c.l.b16 %v397
      %v478 = vunpack.c.l.b16 %v398
      %v479 = vunpack.c.l.b16 %v399
      %v480 = vunpack.c.l.b16 %v400
      %v481 = vpack.c.b16 %v450, %v449
      %v482 = vpack.c.b16 %v452, %v451
      %v483 = vpack.c.b16 %v454, %v453
      %v484 = vpack.c.b16 %v456, %v455
      %v485 = vpack.c.b16 %v458, %v457
      %v486 = vpack.c.b16 %v460, %v459
      %v487 = vpack.c.b16 %v462, %v461
      %v488 = vpack.c.b16 %v464, %v463
      %v489 = vpack.c.b16 %v466, %v465
      %v490 = vpack.c.b16 %v468, %v467
      %v491 = vpack.c.b16 %v470, %v469
      %v492 = vpack.c.b16 %v472, %v471
      %v493 = vpack.c.b16 %v474, %v473
      %v494 = vpack.c.b16 %v476, %v475
      %v495 = vpack.c.b16 %v478, %v477
      %v496 = vpack.c.b16 %v480, %v479
      %v529 = vunpack.c.l.b16 %v401
      %v530 = vunpack.c.l.b16 %v402
      %v531 = vunpack.c.l.b16 %v403
      %v532 = vunpack.c.l.b16 %v404
      %v533 = vunpack.c.l.b16 %v405
      %v534 = vunpack.c.l.b16 %v406
      %v535 = vunpack.c.l.b16 %v407
      %v536 = vunpack.c.l.b16 %v408
      %v537 = vunpack.c.l.b16 %v409
      %v538 = vunpack.c.l.b16 %v410
      %v539 = vunpack.c.l.b16 %v411
      %v540 = vunpack.c.l.b16 %v412
      %v541 = vunpack.c.l.b16 %v413
      %v542 = vunpack.c.l.b16 %v414
      %v543 = vunpack.c.l.b16 %v415
      %v544 = vunpack.c.l.b16 %v416
      %v545 = vpack.c.b16 %v530, %v529
      %v546 = vpack.c.b16 %v532, %v531
      %v547 = vpack.c.b16 %v534, %v533
      %v548 = vpack.c.b16 %v536, %v535
      %v549 = vpack.c.b16 %v538, %v537
      %v550 = vpack.c.b16 %v540, %v539
      %v551 = vpack.c.b16 %v542, %v541
      %v552 = vpack.c.b16 %v544, %v543
      %561 = vmatprep.subr.bf16.mxu0 0
      %562 = vmatpush1.bf16.msra.mxu0 %v552
      %563 = vmatprep.subr.bf16.mxu0 0
      %564 = vmatpush1.bf16.msra.mxu0 %v551
      %565 = vmatprep.subr.bf16.mxu0 0
      %566 = vmatpush1.bf16.msra.mxu0 %v550
      %567 = vmatprep.subr.bf16.mxu0 0
      %568 = vmatpush1.bf16.msra.mxu0 %v549
      %569 = vmatprep.subr.bf16.mxu0 0
      %570 = vmatpush1.bf16.msra.mxu0 %v548
      %571 = vmatprep.subr.bf16.mxu0 0
      %572 = vmatpush1.bf16.msra.mxu0 %v547
      %573 = vmatprep.subr.bf16.mxu0 0
      %574 = vmatpush1.bf16.msra.mxu0 %v546
      %575 = vmatprep.subr.bf16.mxu0 0
      %576 = vmatpush1.bf16.msra.mxu0 %v545
      %577 = vmatprep.subr.bf16.mxu0 0
      %578 = vmatpush2.bf16.msra.mxu0 0
      %579 = vmatprep.subr.bf16.mxu0 0
      %580 = vmatpush2.bf16.msra.mxu0 0
      %581 = vmatprep.subr.bf16.mxu0 0
      %582 = vmatpush2.bf16.msra.mxu0 0
      %583 = vmatprep.subr.bf16.mxu0 0
      %584 = vmatpush2.bf16.msra.mxu0 0
      %585 = vmatprep.subr.bf16.mxu0 0
      %586 = vmatpush2.bf16.msra.mxu0 0
      %587 = vmatprep.subr.bf16.mxu0 0
      %588 = vmatpush2.bf16.msra.mxu0 0
      %589 = vmatprep.subr.bf16.mxu0 0
      %590 = vmatpush2.bf16.msra.mxu0 0
      %591 = vmatprep.subr.bf16.mxu0 0
      %592 = vmatpush2.bf16.msra.mxu0 0
      %593 = vmatprep.mubr.bf16.mxu0 0
      %594 = vmatmul.mubr.bf16.gmra.mxu0 %v481
      %v595 = vpop.f32.mrf.mxu0
      %v596 = vadd.f32 0.0, %v595
      %v597 = vpop.f32.mrf.mxu0
      %v598 = vpop.f32.mrf.mxu0
      %v599 = vadd.f32 0.0, %v598
      %v600 = vpop.f32.mrf.mxu0
      %601 = vmatprep.mubr.bf16.mxu0 0
      %602 = vmatmul.mubr.bf16.gmra.mxu0 %v482
      %v603 = vpop.f32.mrf.mxu0
      %v604 = vadd.f32 0.0, %v603
      %v605 = vpop.f32.mrf.mxu0
      %v606 = vpop.f32.mrf.mxu0
      %v607 = vadd.f32 0.0, %v606
      %v608 = vpop.f32.mrf.mxu0
      %609 = vmatprep.mubr.bf16.mxu0 0
      %610 = vmatmul.mubr.bf16.gmra.mxu0 %v483
      %v611 = vpop.f32.mrf.mxu0
      %v612 = vadd.f32 0.0, %v611
      %v613 = vpop.f32.mrf.mxu0
      %v614 = vpop.f32.mrf.mxu0
      %v615 = vadd.f32 0.0, %v614
      %v616 = vpop.f32.mrf.mxu0
      %617 = vmatprep.mubr.bf16.mxu0 0
      %618 = vmatmul.mubr.bf16.gmra.mxu0 %v484
      %v619 = vpop.f32.mrf.mxu0
      %v620 = vadd.f32 0.0, %v619
      %v621 = vpop.f32.mrf.mxu0
      %v622 = vpop.f32.mrf.mxu0
      %v623 = vadd.f32 0.0, %v622
      %v624 = vpop.f32.mrf.mxu0
      %625 = vmatprep.mubr.bf16.mxu0 0
      %626 = vmatmul.mubr.bf16.gmra.mxu0 %v485
      %v627 = vpop.f32.mrf.mxu0
      %v628 = vadd.f32 0.0, %v627
      %v629 = vpop.f32.mrf.mxu0
      %v630 = vpop.f32.mrf.mxu0
      %v631 = vadd.f32 0.0, %v630
      %v632 = vpop.f32.mrf.mxu0
      %633 = vmatprep.mubr.bf16.mxu0 0
      %634 = vmatmul.mubr.bf16.gmra.mxu0 %v486
      %v635 = vpop.f32.mrf.mxu0
      %v636 = vadd.f32 0.0, %v635
      %v637 = vpop.f32.mrf.mxu0
      %v638 = vpop.f32.mrf.mxu0
      %v639 = vadd.f32 0.0, %v638
      %v640 = vpop.f32.mrf.mxu0
      %641 = vmatprep.mubr.bf16.mxu0 0
      %642 = vmatmul.mubr.bf16.gmra.mxu0 %v487
      %v643 = vpop.f32.mrf.mxu0
      %v644 = vadd.f32 0.0, %v643
      %v645 = vpop.f32.mrf.mxu0
      %v646 = vpop.f32.mrf.mxu0
      %v647 = vadd.f32 0.0, %v646
      %v648 = vpop.f32.mrf.mxu0
      %649 = vmatprep.mubr.bf16.mxu0 0
      %650 = vmatmul.mubr.bf16.gmra.mxu0 %v488
      %v651 = vpop.f32.mrf.mxu0
      %v652 = vadd.f32 0.0, %v651
      %v653 = vpop.f32.mrf.mxu0
      %v654 = vpop.f32.mrf.mxu0
      %v655 = vadd.f32 0.0, %v654
      %v656 = vpop.f32.mrf.mxu0
      %657 = vmatprep.mubr.bf16.mxu0 0
      %658 = vmatmul.mubr.bf16.gmra.mxu0 %v489
      %v659 = vpop.f32.mrf.mxu0
      %v660 = vadd.f32 0.0, %v659
      %v661 = vpop.f32.mrf.mxu0
      %v662 = vpop.f32.mrf.mxu0
      %v663 = vadd.f32 0.0, %v662
      %v664 = vpop.f32.mrf.mxu0
      %665 = vmatprep.mubr.bf16.mxu0 0
      %666 = vmatmul.mubr.bf16.gmra.mxu0 %v490
      %v667 = vpop.f32.mrf.mxu0
      %v668 = vadd.f32 0.0, %v667
      %v669 = vpop.f32.mrf.mxu0
      %v670 = vpop.f32.mrf.mxu0
      %v671 = vadd.f32 0.0, %v670
      %v672 = vpop.f32.mrf.mxu0
      %673 = vmatprep.mubr.bf16.mxu0 0
      %674 = vmatmul.mubr.bf16.gmra.mxu0 %v491
      %v675 = vpop.f32.mrf.mxu0
      %v676 = vadd.f32 0.0, %v675
      %v677 = vpop.f32.mrf.mxu0
      %v678 = vpop.f32.mrf.mxu0
      %v679 = vadd.f32 0.0, %v678
      %v680 = vpop.f32.mrf.mxu0
      %681 = vmatprep.mubr.bf16.mxu0 0
      %682 = vmatmul.mubr.bf16.gmra.mxu0 %v492
      %v683 = vpop.f32.mrf.mxu0
      %v684 = vadd.f32 0.0, %v683
      %v685 = vpop.f32.mrf.mxu0
      %v686 = vpop.f32.mrf.mxu0
      %v687 = vadd.f32 0.0, %v686
      %v688 = vpop.f32.mrf.mxu0
      %689 = vmatprep.mubr.bf16.mxu0 0
      %690 = vmatmul.mubr.bf16.gmra.mxu0 %v493
      %v691 = vpop.f32.mrf.mxu0
      %v692 = vadd.f32 0.0, %v691
      %v693 = vpop.f32.mrf.mxu0
      %v694 = vpop.f32.mrf.mxu0
      %v695 = vadd.f32 0.0, %v694
      %v696 = vpop.f32.mrf.mxu0
      %697 = vmatprep.mubr.bf16.mxu0 0
      %698 = vmatmul.mubr.bf16.gmra.mxu0 %v494
      %v699 = vpop.f32.mrf.mxu0
      %v700 = vadd.f32 0.0, %v699
      %v701 = vpop.f32.mrf.mxu0
      %v702 = vpop.f32.mrf.mxu0
      %v703 = vadd.f32 0.0, %v702
      %v704 = vpop.f32.mrf.mxu0
      %705 = vmatprep.mubr.bf16.mxu0 0
      %706 = vmatmul.mubr.bf16.gmra.mxu0 %v495
      %v707 = vpop.f32.mrf.mxu0
      %v708 = vadd.f32 0.0, %v707
      %v709 = vpop.f32.mrf.mxu0
      %v710 = vpop.f32.mrf.mxu0
      %v711 = vadd.f32 0.0, %v710
      %v712 = vpop.f32.mrf.mxu0
      %713 = vmatprep.mubr.bf16.mxu0 0
      %714 = vmatmul.mubr.bf16.gmra.mxu0 %v496
      %v715 = vpop.f32.mrf.mxu0
      %v716 = vadd.f32 0.0, %v715
      %v717 = vpop.f32.mrf.mxu0
      %v718 = vpop.f32.mrf.mxu0
      %v719 = vadd.f32 0.0, %v718
      %v720 = vpop.f32.mrf.mxu0
      %721 = vdwg.mxu0
      %v722 = vadd.f32 %v337, %v596
      %v723 = vadd.f32 %v338, %v599
      %v724 = vadd.f32 %v339, %v604
      %v725 = vadd.f32 %v340, %v607
      %v726 = vadd.f32 %v341, %v612
      %v727 = vadd.f32 %v342, %v615
      %v728 = vadd.f32 %v343, %v620
      %v729 = vadd.f32 %v344, %v623
      %v730 = vadd.f32 %v345, %v628
      %v731 = vadd.f32 %v346, %v631
      %v732 = vadd.f32 %v347, %v636
      %v733 = vadd.f32 %v348, %v639
      %v734 = vadd.f32 %v349, %v644
      %v735 = vadd.f32 %v350, %v647
      %v736 = vadd.f32 %v351, %v652
      %v737 = vadd.f32 %v352, %v655
      %v738 = vadd.f32 %v353, %v660
      %v739 = vadd.f32 %v354, %v663
      %v740 = vadd.f32 %v355, %v668
      %v741 = vadd.f32 %v356, %v671
      %v742 = vadd.f32 %v357, %v676
      %v743 = vadd.f32 %v358, %v679
      %v744 = vadd.f32 %v359, %v684
      %v745 = vadd.f32 %v360, %v687
      %v746 = vadd.f32 %v361, %v692
      %v747 = vadd.f32 %v362, %v695
      %v748 = vadd.f32 %v363, %v700
      %v749 = vadd.f32 %v364, %v703
      %v750 = vadd.f32 %v365, %v708
      %v751 = vadd.f32 %v366, %v711
      %v752 = vadd.f32 %v367, %v716
      %v753 = vadd.f32 %v368, %v719
      %754 = vst [vmem:[#allocation2] sm:$0xff] %v722
      %755 = vst [vmem:[#allocation2 + $0x8] sm:$0xff] %v723
      %756 = vst [vmem:[#allocation2 + $0x10] sm:$0xff] %v724
      %757 = vst [vmem:[#allocation2 + $0x18] sm:$0xff] %v725
      %758 = vst [vmem:[#allocation2 + $0x20] sm:$0xff] %v726
      %759 = vst [vmem:[#allocation2 + $0x28] sm:$0xff] %v727
      %760 = vst [vmem:[#allocation2 + $0x30] sm:$0xff] %v728
      %761 = vst [vmem:[#allocation2 + $0x38] sm:$0xff] %v729
      %762 = vst [vmem:[#allocation2 + $0x40] sm:$0xff] %v730
      %763 = vst [vmem:[#allocation2 + $0x48] sm:$0xff] %v731
      %764 = vst [vmem:[#allocation2 + $0x50] sm:$0xff] %v732
      %765 = vst [vmem:[#allocation2 + $0x58] sm:$0xff] %v733
      %766 = vst [vmem:[#allocation2 + $0x60] sm:$0xff] %v734
      %767 = vst [vmem:[#allocation2 + $0x68] sm:$0xff] %v735
      %768 = vst [vmem:[#allocation2 + $0x70] sm:$0xff] %v736
      %769 = vst [vmem:[#allocation2 + $0x78] sm:$0xff] %v737
      %770 = vst [vmem:[#allocation2 + $0x80] sm:$0xff] %v738
      %771 = vst [vmem:[#allocation2 + $0x88] sm:$0xff] %v739
      %772 = vst [vmem:[#allocation2 + $0x90] sm:$0xff] %v740
      %773 = vst [vmem:[#allocation2 + $0x98] sm:$0xff] %v741
      %774 = vst [vmem:[#allocation2 + $0xa0] sm:$0xff] %v742
      %775 = vst [vmem:[#allocation2 + $0xa8] sm:$0xff] %v743
      %776 = vst [vmem:[#allocation2 + $0xb0] sm:$0xff] %v744
      %777 = vst [vmem:[#allocation2 + $0xb8] sm:$0xff] %v745
      %778 = vst [vmem:[#allocation2 + $0xc0] sm:$0xff] %v746
      %779 = vst [vmem:[#allocation2 + $0xc8] sm:$0xff] %v747
      %780 = vst [vmem:[#allocation2 + $0xd0] sm:$0xff] %v748
      %781 = vst [vmem:[#allocation2 + $0xd8] sm:$0xff] %v749
      %782 = vst [vmem:[#allocation2 + $0xe0] sm:$0xff] %v750
      %783 = vst [vmem:[#allocation2 + $0xe8] sm:$0xff] %v751
      %784 = vst [vmem:[#allocation2 + $0xf0] sm:$0xff] %v752
      %785 = vst [vmem:[#allocation2 + $0xf8] sm:$0xff] %v753
      // Predicated region
      $region41: #{_lambda_.7} parent=35 // pred_check
        %p786 = pneg %p301
      $region42: #{_lambda_.7} parent=35 // pred_check_branch
        %788 = sbr.rel (%p786) target = $region44
      $region43: #{_lambda_.7} parent=35 // pred_region
        %v789 = vld [vmem:[#allocation2] sm:$0xff]
        %v790 = vld [vmem:[#allocation2 + $0x8] sm:$0xff]
        %v791 = vld [vmem:[#allocation2 + $0x10] sm:$0xff]
        %v792 = vld [vmem:[#allocation2 + $0x18] sm:$0xff]
        %v793 = vld [vmem:[#allocation2 + $0x20] sm:$0xff]
        %v794 = vld [vmem:[#allocation2 + $0x28] sm:$0xff]
        %v795 = vld [vmem:[#allocation2 + $0x30] sm:$0xff]
        %v796 = vld [vmem:[#allocation2 + $0x38] sm:$0xff]
        %v797 = vld [vmem:[#allocation2 + $0x40] sm:$0xff]
        %v798 = vld [vmem:[#allocation2 + $0x48] sm:$0xff]
        %v799 = vld [vmem:[#allocation2 + $0x50] sm:$0xff]
        %v800 = vld [vmem:[#allocation2 + $0x58] sm:$0xff]
        %v801 = vld [vmem:[#allocation2 + $0x60] sm:$0xff]
        %v802 = vld [vmem:[#allocation2 + $0x68] sm:$0xff]
        %v803 = vld [vmem:[#allocation2 + $0x70] sm:$0xff]
        %v804 = vld [vmem:[#allocation2 + $0x78] sm:$0xff]
        %v805 = vld [vmem:[#allocation2 + $0x80] sm:$0xff]
        %v806 = vld [vmem:[#allocation2 + $0x88] sm:$0xff]
        %v807 = vld [vmem:[#allocation2 + $0x90] sm:$0xff]
        %v808 = vld [vmem:[#allocation2 + $0x98] sm:$0xff]
        %v809 = vld [vmem:[#allocation2 + $0xa0] sm:$0xff]
        %v810 = vld [vmem:[#allocation2 + $0xa8] sm:$0xff]
        %v811 = vld [vmem:[#allocation2 + $0xb0] sm:$0xff]
        %v812 = vld [vmem:[#allocation2 + $0xb8] sm:$0xff]
        %v813 = vld [vmem:[#allocation2 + $0xc0] sm:$0xff]
        %v814 = vld [vmem:[#allocation2 + $0xc8] sm:$0xff]
        %v815 = vld [vmem:[#allocation2 + $0xd0] sm:$0xff]
        %v816 = vld [vmem:[#allocation2 + $0xd8] sm:$0xff]
        %v817 = vld [vmem:[#allocation2 + $0xe0] sm:$0xff]
        %v818 = vld [vmem:[#allocation2 + $0xe8] sm:$0xff]
        %v819 = vld [vmem:[#allocation2 + $0xf0] sm:$0xff]
        %v820 = vld [vmem:[#allocation2 + $0xf8] sm:$0xff]
        %v821 = vld [vmem:[%s287] sm:$0x1]
        %v823 = vlaneseq
        %v824 = vshrl.u32 %v823, 7
        %v825 = vsub.s32 0, %v824
        %v826 = vrot.slane %v821, %v825
        %v828 = vmul.f32 %v789, %v826
        %v829 = vmul.f32 %v790, %v826
        %v830 = vmul.f32 %v791, %v826
        %v831 = vmul.f32 %v792, %v826
        %v832 = vmul.f32 %v793, %v826
        %v833 = vmul.f32 %v794, %v826
        %v834 = vmul.f32 %v795, %v826
        %v835 = vmul.f32 %v796, %v826
        %v836 = vmul.f32 %v797, %v826
        %v837 = vmul.f32 %v798, %v826
        %v838 = vmul.f32 %v799, %v826
        %v839 = vmul.f32 %v800, %v826
        %v840 = vmul.f32 %v801, %v826
        %v841 = vmul.f32 %v802, %v826
        %v842 = vmul.f32 %v803, %v826
        %v843 = vmul.f32 %v804, %v826
        %v844 = vmul.f32 %v805, %v826
        %v845 = vmul.f32 %v806, %v826
        %v846 = vmul.f32 %v807, %v826
        %v847 = vmul.f32 %v808, %v826
        %v848 = vmul.f32 %v809, %v826
        %v849 = vmul.f32 %v810, %v826
        %v850 = vmul.f32 %v811, %v826
        %v851 = vmul.f32 %v812, %v826
        %v852 = vmul.f32 %v813, %v826
        %v853 = vmul.f32 %v814, %v826
        %v854 = vmul.f32 %v815, %v826
        %v855 = vmul.f32 %v816, %v826
        %v856 = vmul.f32 %v817, %v826
        %v857 = vmul.f32 %v818, %v826
        %v858 = vmul.f32 %v819, %v826
        %v859 = vmul.f32 %v820, %v826
        %v860 = vld [vmem:[%s290] sm:$0x1]
        %v862 = vlaneseq
        %v863 = vshrl.u32 %v862, 7
        %v864 = vsub.s32 0, %v863
        %v865 = vrot.slane %v860, %v864
        %v867 = vadd.f32 %v828, %v865
        %v868 = vadd.f32 %v829, %v865
        %v869 = vadd.f32 %v830, %v865
        %v870 = vadd.f32 %v831, %v865
        %v871 = vadd.f32 %v832, %v865
        %v872 = vadd.f32 %v833, %v865
        %v873 = vadd.f32 %v834, %v865
        %v874 = vadd.f32 %v835, %v865
        %v875 = vadd.f32 %v836, %v865
        %v876 = vadd.f32 %v837, %v865
        %v877 = vadd.f32 %v838, %v865
        %v878 = vadd.f32 %v839, %v865
        %v879 = vadd.f32 %v840, %v865
        %v880 = vadd.f32 %v841, %v865
        %v881 = vadd.f32 %v842, %v865
        %v882 = vadd.f32 %v843, %v865
        %v883 = vadd.f32 %v844, %v865
        %v884 = vadd.f32 %v845, %v865
        %v885 = vadd.f32 %v846, %v865
        %v886 = vadd.f32 %v847, %v865
        %v887 = vadd.f32 %v848, %v865
        %v888 = vadd.f32 %v849, %v865
        %v889 = vadd.f32 %v850, %v865
        %v890 = vadd.f32 %v851, %v865
        %v891 = vadd.f32 %v852, %v865
        %v892 = vadd.f32 %v853, %v865
        %v893 = vadd.f32 %v854, %v865
        %v894 = vadd.f32 %v855, %v865
        %v895 = vadd.f32 %v856, %v865
        %v896 = vadd.f32 %v857, %v865
        %v897 = vadd.f32 %v858, %v865
        %v898 = vadd.f32 %v859, %v865
        %v899 = vmax.f32 %v867, 0.0
        %v900 = vmax.f32 %v868, 0.0
        %v901 = vmax.f32 %v869, 0.0
        %v902 = vmax.f32 %v870, 0.0
        %v903 = vmax.f32 %v871, 0.0
        %v904 = vmax.f32 %v872, 0.0
        %v905 = vmax.f32 %v873, 0.0
        %v906 = vmax.f32 %v874, 0.0
        %v907 = vmax.f32 %v875, 0.0
        %v908 = vmax.f32 %v876, 0.0
        %v909 = vmax.f32 %v877, 0.0
        %v910 = vmax.f32 %v878, 0.0
        %v911 = vmax.f32 %v879, 0.0
        %v912 = vmax.f32 %v880, 0.0
        %v913 = vmax.f32 %v881, 0.0
        %v914 = vmax.f32 %v882, 0.0
        %v915 = vmax.f32 %v883, 0.0
        %v916 = vmax.f32 %v884, 0.0
        %v917 = vmax.f32 %v885, 0.0
        %v918 = vmax.f32 %v886, 0.0
        %v919 = vmax.f32 %v887, 0.0
        %v920 = vmax.f32 %v888, 0.0
        %v921 = vmax.f32 %v889, 0.0
        %v922 = vmax.f32 %v890, 0.0
        %v923 = vmax.f32 %v891, 0.0
        %v924 = vmax.f32 %v892, 0.0
        %v925 = vmax.f32 %v893, 0.0
        %v926 = vmax.f32 %v894, 0.0
        %v927 = vmax.f32 %v895, 0.0
        %v928 = vmax.f32 %v896, 0.0
        %v929 = vmax.f32 %v897, 0.0
        %v930 = vmax.f32 %v898, 0.0
        %v931 = vpack.c.bf16 %v900, %v899
        %v932 = vpack.c.bf16 %v902, %v901
        %v933 = vpack.c.bf16 %v904, %v903
        %v934 = vpack.c.bf16 %v906, %v905
        %v935 = vpack.c.bf16 %v908, %v907
        %v936 = vpack.c.bf16 %v910, %v909
        %v937 = vpack.c.bf16 %v912, %v911
        %v938 = vpack.c.bf16 %v914, %v913
        %v939 = vpack.c.bf16 %v916, %v915
        %v940 = vpack.c.bf16 %v918, %v917
        %v941 = vpack.c.bf16 %v920, %v919
        %v942 = vpack.c.bf16 %v922, %v921
        %v943 = vpack.c.bf16 %v924, %v923
        %v944 = vpack.c.bf16 %v926, %v925
        %v945 = vpack.c.bf16 %v928, %v927
        %v946 = vpack.c.bf16 %v930, %v929
        %v963 = vunpack.c.l.b16 %v931
        %v964 = vunpack.c.h.b16 %v931
        %v965 = vunpack.c.l.b16 %v932
        %v966 = vunpack.c.h.b16 %v932
        %v967 = vunpack.c.l.b16 %v933
        %v968 = vunpack.c.h.b16 %v933
        %v969 = vunpack.c.l.b16 %v934
        %v970 = vunpack.c.h.b16 %v934
        %v971 = vunpack.c.l.b16 %v935
        %v972 = vunpack.c.h.b16 %v935
        %v973 = vunpack.c.l.b16 %v936
        %v974 = vunpack.c.h.b16 %v936
        %v975 = vunpack.c.l.b16 %v937
        %v976 = vunpack.c.h.b16 %v937
        %v977 = vunpack.c.l.b16 %v938
        %v978 = vunpack.c.h.b16 %v938
        %v979 = vunpack.c.l.b16 %v939
        %v980 = vunpack.c.h.b16 %v939
        %v981 = vunpack.c.l.b16 %v940
        %v982 = vunpack.c.h.b16 %v940
        %v983 = vunpack.c.l.b16 %v941
        %v984 = vunpack.c.h.b16 %v941
        %v985 = vunpack.c.l.b16 %v942
        %v986 = vunpack.c.h.b16 %v942
        %v987 = vunpack.c.l.b16 %v943
        %v988 = vunpack.c.h.b16 %v943
        %v989 = vunpack.c.l.b16 %v944
        %v990 = vunpack.c.h.b16 %v944
        %v991 = vunpack.c.l.b16 %v945
        %v992 = vunpack.c.h.b16 %v945
        %v993 = vunpack.c.l.b16 %v946
        %v994 = vunpack.c.h.b16 %v946
        %v995 = vpack.c.b16 %v963, %v963
        %v996 = vpack.c.b16 %v964, %v964
        %v997 = vpack.c.b16 %v965, %v965
        %v998 = vpack.c.b16 %v966, %v966
        %v999 = vpack.c.b16 %v967, %v967
        %v1000 = vpack.c.b16 %v968, %v968
        %v1001 = vpack.c.b16 %v969, %v969
        %v1002 = vpack.c.b16 %v970, %v970
        %v1003 = vpack.c.b16 %v971, %v971
        %v1004 = vpack.c.b16 %v972, %v972
        %v1005 = vpack.c.b16 %v973, %v973
        %v1006 = vpack.c.b16 %v974, %v974
        %v1007 = vpack.c.b16 %v975, %v975
        %v1008 = vpack.c.b16 %v976, %v976
        %v1009 = vpack.c.b16 %v977, %v977
        %v1010 = vpack.c.b16 %v978, %v978
        %v1011 = vpack.c.b16 %v979, %v979
        %v1012 = vpack.c.b16 %v980, %v980
        %v1013 = vpack.c.b16 %v981, %v981
        %v1014 = vpack.c.b16 %v982, %v982
        %v1015 = vpack.c.b16 %v983, %v983
        %v1016 = vpack.c.b16 %v984, %v984
        %v1017 = vpack.c.b16 %v985, %v985
        %v1018 = vpack.c.b16 %v986, %v986
        %v1019 = vpack.c.b16 %v987, %v987
        %v1020 = vpack.c.b16 %v988, %v988
        %v1021 = vpack.c.b16 %v989, %v989
        %v1022 = vpack.c.b16 %v990, %v990
        %v1023 = vpack.c.b16 %v991, %v991
        %v1024 = vpack.c.b16 %v992, %v992
        %v1025 = vpack.c.b16 %v993, %v993
        %v1026 = vpack.c.b16 %v994, %v994
        %1059 = vst [vmem:[%s298] sm:$0xf] %v995
        %1060 = vst [vmem:[%s298 + $0x4] sm:$0xf] %v996
        %1061 = vst [vmem:[%s298 + $0x8] sm:$0xf] %v997
        %1062 = vst [vmem:[%s298 + $0xc] sm:$0xf] %v998
        %1063 = vst [vmem:[%s298 + $0x10] sm:$0xf] %v999
        %1064 = vst [vmem:[%s298 + $0x14] sm:$0xf] %v1000
        %1065 = vst [vmem:[%s298 + $0x18] sm:$0xf] %v1001
        %1066 = vst [vmem:[%s298 + $0x1c] sm:$0xf] %v1002
        %1067 = vst [vmem:[%s298 + $0x20] sm:$0xf] %v1003
        %1068 = vst [vmem:[%s298 + $0x24] sm:$0xf] %v1004
        %1069 = vst [vmem:[%s298 + $0x28] sm:$0xf] %v1005
        %1070 = vst [vmem:[%s298 + $0x2c] sm:$0xf] %v1006
        %1071 = vst [vmem:[%s298 + $0x30] sm:$0xf] %v1007
        %1072 = vst [vmem:[%s298 + $0x34] sm:$0xf] %v1008
        %1073 = vst [vmem:[%s298 + $0x38] sm:$0xf] %v1009
        %1074 = vst [vmem:[%s298 + $0x3c] sm:$0xf] %v1010
        %1075 = vst [vmem:[%s298 + $0x40] sm:$0xf] %v1011
        %1076 = vst [vmem:[%s298 + $0x44] sm:$0xf] %v1012
        %1077 = vst [vmem:[%s298 + $0x48] sm:$0xf] %v1013
        %1078 = vst [vmem:[%s298 + $0x4c] sm:$0xf] %v1014
        %1079 = vst [vmem:[%s298 + $0x50] sm:$0xf] %v1015
        %1080 = vst [vmem:[%s298 + $0x54] sm:$0xf] %v1016
        %1081 = vst [vmem:[%s298 + $0x58] sm:$0xf] %v1017
        %1082 = vst [vmem:[%s298 + $0x5c] sm:$0xf] %v1018
        %1083 = vst [vmem:[%s298 + $0x60] sm:$0xf] %v1019
        %1084 = vst [vmem:[%s298 + $0x64] sm:$0xf] %v1020
        %1085 = vst [vmem:[%s298 + $0x68] sm:$0xf] %v1021
        %1086 = vst [vmem:[%s298 + $0x6c] sm:$0xf] %v1022
        %1087 = vst [vmem:[%s298 + $0x70] sm:$0xf] %v1023
        %1088 = vst [vmem:[%s298 + $0x74] sm:$0xf] %v1024
        %1089 = vst [vmem:[%s298 + $0x78] sm:$0xf] %v1025
        %1090 = vst [vmem:[%s298 + $0x7c] sm:$0xf] %v1026
      $region44: #{_lambda_.7} parent=35 // pred_fallthru
        _
      %s1091 = smul.u32 32, %s20
      %p1092 = scmp.lt.s32.totalorder %s1091, 63
      %s1093 = scalar_select %p1092, %s1091, 63
      %p1094 = scmp.lt.s32.totalorder %s21, 0
      %s1095 = scalar_select %p1094, %s21, 0
      %s1096 = sadd.s32 %s1095, %s1093
      %s1097 = smul.addr %s1096, 4
      %s1098 = scalar_lea.vmem %s4, %s1097
      // Predicated region
      $region45: #{_lambda_.7} parent=35 // pred_check
        %p1099 = pneg %p162
      $region46: #{_lambda_.7} parent=35 // pred_check_branch
        %1101 = sbr.rel (%p1099) target = $region48
      $region47: #{_lambda_.7} parent=35 // pred_region
        %s1102 = smul.u32 32, %s20
      $region48: #{_lambda_.7} parent=35 // pred_fallthru
        _
    $region36: #{_lambda_.7} parent=5 // pred_fallthru
      _
    %p1103 = scmp.le.s32.totalorder 2, %s10
    // Predicated region
    $region49: #{_lambda_.7} parent=5 // pred_check
      %p1104 = pneg %p1103
    $region50: #{_lambda_.7} parent=5 // pred_check_branch
      %1106 = sbr.rel (%p1104) target = $region52
    $region51: #{_lambda_.7} parent=5 // pred_region
      %s1107 = ssub.s32 %s10, 2
      // Predicated region
      $region53: #{_lambda_.7} parent=51 // pred_check
        %p1108 = pneg %p168
      $region54: #{_lambda_.7} parent=51 // pred_check_branch
        %1110 = sbr.rel (%p1108) target = $region56
      $region55: #{_lambda_.7} parent=51 // pred_region
        %s1111 = smul.u32 32, %s23
        %p1112 = scmp.lt.s32.totalorder %s1111, 63
        %s1113 = scalar_select %p1112, %s1111, 63
        %p1114 = scmp.lt.s32.totalorder %s24, 0
        %s1115 = scalar_select %p1114, %s24, 0
        %s1116 = sadd.s32 %s1115, %s1113
        %s1117 = smul.addr %s1116, 4
        %s1118 = scalar_lea.vmem %s4, %s1117
      $region56: #{_lambda_.7} parent=51 // pred_fallthru
        _
    $region52: #{_lambda_.7} parent=5 // pred_fallthru
      _
  $region6: #{_lambda_.7} parent=0 // loop_footer
    %s14 = sadd.s32 1, %s10
  $region7: #{_lambda_.7} parent=0 // loop_footer_branch
    %9 = sbr.rel target = $region3
  $region8: #{_lambda_.7} parent=0 // loop_exit
    _

// kernel: _lambda_.10
$region0: #{_lambda_.10}
  #allocation0 [shape = 'u32[]', space=smem, size = 0x4, offset = 0x4, fixed_abs, tag = 'smem constant byte address 0x4 - core index']
  #allocation1 [shape = 'u32[144,128]{1,0:T(1,128)}', space=vmem, size = 0x12000, scoped, tag = 'internal scratch']
  #allocation2 [shape = 'f32[64,128]{1,0:T(8,128)}', space=vmem, size = 0x8000, scoped, tag = 'scratch operand']
  %s0 = inlined_call_operand.vmem [shape: bf16[128,128], index: 0, kind: input, shape index: {}]
  %s1 = inlined_call_operand.vmem [shape: bf16[128,128], index: 1, kind: input, shape index: {}]
  %s2 = inlined_call_operand.vmem [shape: f32[1,128], index: 2, kind: input, shape index: {}]
  %s3 = inlined_call_operand.vmem [shape: f32[1,128], index: 3, kind: input, shape index: {}]
  %s4 = inlined_call_operand.vmem [shape: bf16[128,128], index: 4, kind: input, shape index: {}]
  %s5 = inlined_call_operand.vmem [shape: bf16[128,128], index: 5, kind: output, shape index: {}]
  %s6 = sld [smem:[#allocation0]]
  $region61: #{_lambda_.10} parent=0
    _
  %s8 = ssub.s32 1, %s6
  %s9 = scalar_select 0, %s8, %s6
  loop: start=0, step=1, limit=4
  $region2: #{_lambda_.10} parent=0 // loop_pre_header
    _
  $region3: #{_lambda_.10} parent=0 // loop_header
    %s11 = sphi 0, %s15
    %p12 = scmp.ge.s32.totalorder %s11, 4
    %s18 = sphi 0, %s37
    %s19 = sphi 0, %s33
    %s20 = sphi 0, %s29
    %s21 = sphi 0, %s18
    %s22 = sphi 0, %s19
    %s23 = sphi 0, %s20
    %s24 = sphi 0, %s21
    %s25 = sphi 0, %s22
    %s26 = sphi 0, %s23
    %s42 = sphi 0, %s44
    %s45 = sphi 0, %s42
    %s46 = sphi 0, %s45
    %s62 = sphi 0, %s46
    %s70 = sphi 0, %s72
    %s73 = sphi 0, %s70
    %s74 = sphi 0, %s73
    %s90 = sphi 0, %s74
    %s96 = sphi 0, %s98
    %s99 = sphi 0, %s96
    %s100 = sphi 0, %s99
    %s116 = sphi 0, %s100
    %s122 = sphi 0, %s124
    %s125 = sphi 0, %s122
    %s126 = sphi 0, %s125
    %s142 = sphi 0, %s126
    %s150 = sphi 0, %s152
    %s153 = sphi 0, %s150
    %s154 = sphi 0, %s153
    %s170 = sphi 0, %s154
    %s178 = sphi 0, %s180
    %s181 = sphi 0, %s178
    %s182 = sphi 0, %s181
    %s198 = sphi 0, %s182
  $region4: #{_lambda_.10} parent=0 // loop_header_branch
    %14 = sbr.rel (%p12) target = $region8
  $region5: #{_lambda_.10} parent=0 // loop_body
    %s16 = ssub.s32 %s11, 1
    %s17 = ssub.s32 %s11, 2
    %s27 = sadd.s32 1, %s20
    %p28 = scmp.ge.s32.totalorder %s27, 1
    %s29 = scalar_select %p28, 0, %s27
    %s30 = sadd.s32 1, %s19
    %s31 = scalar_select %p28, %s30, %s19
    %p32 = scmp.ge.s32.totalorder %s31, 1
    %s33 = scalar_select %p32, 0, %s31
    %s34 = sadd.s32 1, %s18
    %s35 = scalar_select %p32, %s34, %s18
    %p36 = scmp.ge.s32.totalorder %s35, 2
    %s37 = scalar_select %p36, 0, %s35
    %s38 = ssub.s32 %s18, %s37
    %s39 = ssub.s32 %s20, %s29
    %s40 = sor.u32 %s38, %s39
    %p41 = scmp.eq.s32.totalorder %s40, 0
    %s43 = sadd.s32 %s42, 1
    %s44 = scalar_select %p41, %s42, %s43
    %p47 = pneg %p41
    %p48 = scmp.eq.s32.totalorder %s11, 1
    %p49 = por %p47, %p48
    %p50 = scmp.ne.s32.totalorder %s42, %s45
    %p51 = scmp.eq.s32.totalorder %s11, 0
    %p52 = por %p50, %p51
    %p53 = scmp.ne.s32.totalorder %s42, %s45
    %p54 = scmp.eq.s32.totalorder %s16, 1
    %p55 = por %p53, %p54
    %p56 = scmp.ne.s32.totalorder %s45, %s46
    %p57 = scmp.eq.s32.totalorder %s16, 0
    %p58 = por %p56, %p57
    %p59 = scmp.ne.s32.totalorder %s45, %s46
    %p60 = scmp.eq.s32.totalorder %s17, 1
    %p61 = por %p59, %p60
    %p63 = scmp.ne.s32.totalorder %s46, %s62
    %p64 = scmp.eq.s32.totalorder %s17, 0
    %p65 = por %p63, %p64
    %s66 = ssub.s32 %s20, %s29
    %s67 = ssub.s32 %s19, %s33
    %s68 = sor.u32 %s66, %s67
    %p69 = scmp.eq.s32.totalorder %s68, 0
    %s71 = sadd.s32 %s70, 1
    %s72 = scalar_select %p69, %s70, %s71
    %p75 = pneg %p69
    %p76 = scmp.eq.s32.totalorder %s11, 1
    %p77 = por %p75, %p76
    %p78 = scmp.ne.s32.totalorder %s70, %s73
    %p79 = scmp.eq.s32.totalorder %s11, 0
    %p80 = por %p78, %p79
    %p81 = scmp.ne.s32.totalorder %s70, %s73
    %p82 = scmp.eq.s32.totalorder %s16, 1
    %p83 = por %p81, %p82
    %p84 = scmp.ne.s32.totalorder %s73, %s74
    %p85 = scmp.eq.s32.totalorder %s16, 0
    %p86 = por %p84, %p85
    %p87 = scmp.ne.s32.totalorder %s73, %s74
    %p88 = scmp.eq.s32.totalorder %s17, 1
    %p89 = por %p87, %p88
    %p91 = scmp.ne.s32.totalorder %s74, %s90
    %p92 = scmp.eq.s32.totalorder %s17, 0
    %p93 = por %p91, %p92
    %s94 = ssub.s32 %s19, %s33
    %p95 = scmp.eq.s32.totalorder %s94, 0
    %s97 = sadd.s32 %s96, 1
    %s98 = scalar_select %p95, %s96, %s97
    %p101 = pneg %p95
    %p102 = scmp.eq.s32.totalorder %s11, 1
    %p103 = por %p101, %p102
    %p104 = scmp.ne.s32.totalorder %s96, %s99
    %p105 = scmp.eq.s32.totalorder %s11, 0
    %p106 = por %p104, %p105
    %p107 = scmp.ne.s32.totalorder %s96, %s99
    %p108 = scmp.eq.s32.totalorder %s16, 1
    %p109 = por %p107, %p108
    %p110 = scmp.ne.s32.totalorder %s99, %s100
    %p111 = scmp.eq.s32.totalorder %s16, 0
    %p112 = por %p110, %p111
    %p113 = scmp.ne.s32.totalorder %s99, %s100
    %p114 = scmp.eq.s32.totalorder %s17, 1
    %p115 = por %p113, %p114
    %p117 = scmp.ne.s32.totalorder %s100, %s116
    %p118 = scmp.eq.s32.totalorder %s17, 0
    %p119 = por %p117, %p118
    %s120 = ssub.s32 %s19, %s33
    %p121 = scmp.eq.s32.totalorder %s120, 0
    %s123 = sadd.s32 %s122, 1
    %s124 = scalar_select %p121, %s122, %s123
    %p127 = pneg %p121
    %p128 = scmp.eq.s32.totalorder %s11, 1
    %p129 = por %p127, %p128
    %p130 = scmp.ne.s32.totalorder %s122, %s125
    %p131 = scmp.eq.s32.totalorder %s11, 0
    %p132 = por %p130, %p131
    %p133 = scmp.ne.s32.totalorder %s122, %s125
    %p134 = scmp.eq.s32.totalorder %s16, 1
    %p135 = por %p133, %p134
    %p136 = scmp.ne.s32.totalorder %s125, %s126
    %p137 = scmp.eq.s32.totalorder %s16, 0
    %p138 = por %p136, %p137
    %p139 = scmp.ne.s32.totalorder %s125, %s126
    %p140 = scmp.eq.s32.totalorder %s17, 1
    %p141 = por %p139, %p140
    %p143 = scmp.ne.s32.totalorder %s126, %s142
    %p144 = scmp.eq.s32.totalorder %s17, 0
    %p145 = por %p143, %p144
    %s146 = ssub.s32 %s18, %s37
    %s147 = ssub.s32 %s19, %s33
    %s148 = sor.u32 %s146, %s147
    %p149 = scmp.eq.s32.totalorder %s148, 0
    %s151 = sadd.s32 %s150, 1
    %s152 = scalar_select %p149, %s150, %s151
    %p155 = pneg %p149
    %p156 = scmp.eq.s32.totalorder %s11, 1
    %p157 = por %p155, %p156
    %p158 = scmp.ne.s32.totalorder %s150, %s153
    %p159 = scmp.eq.s32.totalorder %s11, 0
    %p160 = por %p158, %p159
    %p161 = scmp.ne.s32.totalorder %s150, %s153
    %p162 = scmp.eq.s32.totalorder %s16, 1
    %p163 = por %p161, %p162
    %p164 = scmp.ne.s32.totalorder %s153, %s154
    %p165 = scmp.eq.s32.totalorder %s16, 0
    %p166 = por %p164, %p165
    %p167 = scmp.ne.s32.totalorder %s153, %s154
    %p168 = scmp.eq.s32.totalorder %s17, 1
    %p169 = por %p167, %p168
    %p171 = scmp.ne.s32.totalorder %s154, %s170
    %p172 = scmp.eq.s32.totalorder %s17, 0
    %p173 = por %p171, %p172
    %s174 = ssub.s32 %s18, %s37
    %s175 = ssub.s32 %s19, %s33
    %s176 = sor.u32 %s174, %s175
    %p177 = scmp.eq.s32.totalorder %s176, 0
    %s179 = sadd.s32 %s178, 1
    %s180 = scalar_select %p177, %s178, %s179
    %p183 = pneg %p177
    %p184 = scmp.eq.s32.totalorder %s11, 1
    %p185 = por %p183, %p184
    %p186 = scmp.ne.s32.totalorder %s178, %s181
    %p187 = scmp.eq.s32.totalorder %s11, 0
    %p188 = por %p186, %p187
    %p189 = scmp.ne.s32.totalorder %s178, %s181
    %p190 = scmp.eq.s32.totalorder %s16, 1
    %p191 = por %p189, %p190
    %p192 = scmp.ne.s32.totalorder %s181, %s182
    %p193 = scmp.eq.s32.totalorder %s16, 0
    %p194 = por %p192, %p193
    %p195 = scmp.ne.s32.totalorder %s181, %s182
    %p196 = scmp.eq.s32.totalorder %s17, 1
    %p197 = por %p195, %p196
    %p199 = scmp.ne.s32.totalorder %s182, %s198
    %p200 = scmp.eq.s32.totalorder %s17, 0
    %p201 = por %p199, %p200
    %p202 = scmp.le.s32.totalorder 1, %s11
    %p203 = scmp.lt.s32.totalorder %s11, 3
    %p204 = pnand %p202, %p203
    %p205 = pneg %p204
    // Predicated region
    $region9: #{_lambda_.10} parent=5 // pred_check
      _
    $region10: #{_lambda_.10} parent=5 // pred_check_branch
      %207 = sbr.rel (%p204) target = $region12
    $region11: #{_lambda_.10} parent=5 // pred_region
      %s208 = ssub.s32 %s11, 1
      // Predicated region
      $region13: #{_lambda_.10} parent=11 // pred_check
        %p209 = pneg %p86
      $region14: #{_lambda_.10} parent=11 // pred_check_branch
        %211 = sbr.rel (%p209) target = $region16
      $region15: #{_lambda_.10} parent=11 // pred_region
        %s212 = smul.u32 16, %s23
        %p213 = scmp.lt.s32.totalorder %s212, 15
        %s214 = scalar_select %p213, %s212, 15
        %p215 = scmp.lt.s32.totalorder %s22, 0
        %s216 = scalar_select %p215, %s22, 0
        %s217 = sadd.s32 %s216, %s214
        %s218 = smul.addr %s217, 4
        %s219 = scalar_lea.vmem %s1, %s218
        %s220 = smul.u32 16, %s23
      $region16: #{_lambda_.10} parent=11 // pred_fallthru
        _
      // Predicated region
      $region17: #{_lambda_.10} parent=11 // pred_check
        %p221 = pneg %p112
      $region18: #{_lambda_.10} parent=11 // pred_check_branch
        %223 = sbr.rel (%p221) target = $region20
      $region19: #{_lambda_.10} parent=11 // pred_region
        %p224 = scmp.lt.s32.totalorder %s22, 0
        %s225 = scalar_select %p224, %s22, 0
        %s226 = scalar_lea.vmem %s2, %s225
      $region20: #{_lambda_.10} parent=11 // pred_fallthru
        _
      // Predicated region
      $region21: #{_lambda_.10} parent=11 // pred_check
        %p227 = pneg %p138
      $region22: #{_lambda_.10} parent=11 // pred_check_branch
        %229 = sbr.rel (%p227) target = $region24
      $region23: #{_lambda_.10} parent=11 // pred_region
        %p230 = scmp.lt.s32.totalorder %s22, 0
        %s231 = scalar_select %p230, %s22, 0
        %s232 = scalar_lea.vmem %s3, %s231
      $region24: #{_lambda_.10} parent=11 // pred_fallthru
        _
    $region12: #{_lambda_.10} parent=5 // pred_fallthru
      _
    %p233 = scmp.lt.s32.totalorder %s11, 2
    // Predicated region
    $region25: #{_lambda_.10} parent=5 // pred_check
      %p234 = pneg %p233
    $region26: #{_lambda_.10} parent=5 // pred_check_branch
      %236 = sbr.rel (%p234) target = $region28
    $region27: #{_lambda_.10} parent=5 // pred_region
      // Predicated region
      $region29: #{_lambda_.10} parent=27 // pred_check
        %p237 = pneg %p52
      $region30: #{_lambda_.10} parent=27 // pred_check_branch
        %239 = sbr.rel (%p237) target = $region32
      $region31: #{_lambda_.10} parent=27 // pred_region
        %s240 = smul.u32 8, %s18
        %p241 = scmp.lt.s32.totalorder %s240, 15
        %s242 = scalar_select %p241, %s240, 15
        %p243 = scmp.lt.s32.totalorder %s20, 0
        %s244 = scalar_select %p243, %s20, 0
        %s245 = sadd.s32 %s244, %s242
        %s246 = smul.addr %s245, 4
        %s247 = scalar_lea.vmem %s0, %s246
        %s248 = smul.u32 8, %s18
      $region32: #{_lambda_.10} parent=27 // pred_fallthru
        _
      // Predicated region
      $region33: #{_lambda_.10} parent=27 // pred_check
        %p249 = pneg %p160
      $region34: #{_lambda_.10} parent=27 // pred_check_branch
        %251 = sbr.rel (%p249) target = $region36
      $region35: #{_lambda_.10} parent=27 // pred_region
        %s252 = smul.u32 8, %s18
        %p253 = scmp.lt.s32.totalorder %s252, 15
        %s254 = scalar_select %p253, %s252, 15
        %p255 = scmp.lt.s32.totalorder %s19, 0
        %s256 = scalar_select %p255, %s19, 0
        %s257 = sadd.s32 %s256, %s254
        %s258 = smul.addr %s257, 4
        %s259 = scalar_lea.vmem %s4, %s258
        %s260 = smul.u32 8, %s18
      $region36: #{_lambda_.10} parent=27 // pred_fallthru
        _
    $region28: #{_lambda_.10} parent=5 // pred_fallthru
      _
    %p261 = scmp.le.s32.totalorder 1, %s11
    %p262 = scmp.lt.s32.totalorder %s11, 3
    %p263 = pnand %p261, %p262
    %p264 = pneg %p263
    // Predicated region
    $region37: #{_lambda_.10} parent=5 // pred_check
      _
    $region38: #{_lambda_.10} parent=5 // pred_check_branch
      %266 = sbr.rel (%p263) target = $region40
    $region39: #{_lambda_.10} parent=5 // pred_region
      %s267 = ssub.s32 %s11, 1
      %s268 = smul.u32 8, %s21
      %p269 = scmp.lt.s32.totalorder %s268, 15
      %s270 = scalar_select %p269, %s268, 15
      %p271 = scmp.lt.s32.totalorder %s23, 0
      %s272 = scalar_select %p271, %s23, 0
      %s273 = sadd.s32 %s272, %s270
      %s274 = smul.addr %s273, 4
      %s275 = scalar_lea.vmem %s0, %s274
      %p276 = pneg %p58
      %p277 = pneg %p55
      %s278 = smul.u32 16, %s23
      %p279 = scmp.lt.s32.totalorder %s278, 15
      %s280 = scalar_select %p279, %s278, 15
      %p281 = scmp.lt.s32.totalorder %s22, 0
      %s282 = scalar_select %p281, %s22, 0
      %s283 = sadd.s32 %s282, %s280
      %s284 = smul.addr %s283, 4
      %s285 = scalar_lea.vmem %s1, %s284
      %p286 = pneg %p86
      %p287 = pneg %p83
      %p288 = scmp.lt.s32.totalorder %s22, 0
      %s289 = scalar_select %p288, %s22, 0
      %s290 = scalar_lea.vmem %s2, %s289
      %p291 = pneg %p112
      %p292 = pneg %p109
      %p293 = scmp.lt.s32.totalorder %s22, 0
      %s294 = scalar_select %p293, %s22, 0
      %s295 = scalar_lea.vmem %s3, %s294
      %p296 = pneg %p138
      %p297 = pneg %p135
      %s298 = smul.u32 8, %s21
      %p299 = scmp.lt.s32.totalorder %s298, 15
      %s300 = scalar_select %p299, %s298, 15
      %p301 = scmp.lt.s32.totalorder %s22, 0
      %s302 = scalar_select %p301, %s22, 0
      %s303 = sadd.s32 %s302, %s300
      %s304 = smul.addr %s303, 4
      %s305 = scalar_lea.vmem %s4, %s304
      %p306 = pneg %p166
      %p307 = pneg %p163
      %p308 = pneg %p194
      %p309 = pneg %p191
      %s310 = smul.u32 8, %s21
      %p311 = scmp.lt.s32.totalorder %s310, 15
      %s312 = scalar_select %p311, %s310, 15
      %p313 = scmp.lt.s32.totalorder %s22, 0
      %s314 = scalar_select %p313, %s22, 0
      %s315 = sadd.s32 %s314, %s312
      %s316 = smul.addr %s315, 4
      %s317 = scalar_lea.vmem %s5, %s316
      %s318 = smul.u32 8, %s21
      %p319 = scmp.lt.s32.totalorder %s318, 15
      %s320 = scalar_select %p319, %s318, 15
      %p321 = scmp.lt.s32.totalorder %s23, 0
      %s322 = scalar_select %p321, %s23, 0
      %s323 = sadd.s32 %s322, %s320
      %s324 = smul.addr %s323, 4
      %s325 = scalar_lea.vmem %s0, %s324
      %s326 = smul.u32 8, %s21
      %s327 = smul.u32 16, %s23
      %p328 = scmp.lt.s32.totalorder %s327, 15
      %s329 = scalar_select %p328, %s327, 15
      %p330 = scmp.lt.s32.totalorder %s22, 0
      %s331 = scalar_select %p330, %s22, 0
      %s332 = sadd.s32 %s331, %s329
      %s333 = smul.addr %s332, 4
      %s334 = scalar_lea.vmem %s1, %s333
      %s335 = smul.u32 16, %s23
      %p336 = scmp.lt.s32.totalorder %s22, 0
      %s337 = scalar_select %p336, %s22, 0
      %s338 = scalar_lea.vmem %s2, %s337
      %p339 = scmp.lt.s32.totalorder %s22, 0
      %s340 = scalar_select %p339, %s22, 0
      %s341 = scalar_lea.vmem %s3, %s340
      %s342 = smul.u32 8, %s21
      %p343 = scmp.lt.s32.totalorder %s342, 15
      %s344 = scalar_select %p343, %s342, 15
      %p345 = scmp.lt.s32.totalorder %s22, 0
      %s346 = scalar_select %p345, %s22, 0
      %s347 = sadd.s32 %s346, %s344
      %s348 = smul.addr %s347, 4
      %s349 = scalar_lea.vmem %s4, %s348
      %s350 = smul.u32 8, %s21
      %s351 = smul.u32 8, %s21
      %p352 = scmp.lt.s32.totalorder %s351, 15
      %s353 = scalar_select %p352, %s351, 15
      %p354 = scmp.lt.s32.totalorder %s22, 0
      %s355 = scalar_select %p354, %s22, 0
      %s356 = sadd.s32 %s355, %s353
      %s357 = smul.addr %s356, 4
      %s358 = scalar_lea.vmem %s5, %s357
      %s359 = smul.u32 8, %s21
      %p361 = scmp.eq.s32.totalorder %s23, 0
      // Predicated region
      $region41: #{_lambda_.10} parent=39 // pred_check
        %p362 = pneg %p361
      $region42: #{_lambda_.10} parent=39 // pred_check_branch
        %364 = sbr.rel (%p362) target = $region44
      $region43: #{_lambda_.10} parent=39 // pred_region
        %365 = vst [vmem:[#allocation2] sm:$0xff] 0.0
        %366 = vst [vmem:[#allocation2 + $0x8] sm:$0xff] 0.0
        %367 = vst [vmem:[#allocation2 + $0x10] sm:$0xff] 0.0
        %368 = vst [vmem:[#allocation2 + $0x18] sm:$0xff] 0.0
        %369 = vst [vmem:[#allocation2 + $0x20] sm:$0xff] 0.0
        %370 = vst [vmem:[#allocation2 + $0x28] sm:$0xff] 0.0
        %371 = vst [vmem:[#allocation2 + $0x30] sm:$0xff] 0.0
        %372 = vst [vmem:[#allocation2 + $0x38] sm:$0xff] 0.0
      $region44: #{_lambda_.10} parent=39 // pred_fallthru
        _
      %v373 = vld [vmem:[#allocation2] sm:$0xff]
      %v374 = vld [vmem:[#allocation2 + $0x8] sm:$0xff]
      %v375 = vld [vmem:[#allocation2 + $0x10] sm:$0xff]
      %v376 = vld [vmem:[#allocation2 + $0x18] sm:$0xff]
      %v377 = vld [vmem:[#allocation2 + $0x20] sm:$0xff]
      %v378 = vld [vmem:[#allocation2 + $0x28] sm:$0xff]
      %v379 = vld [vmem:[#allocation2 + $0x30] sm:$0xff]
      %v380 = vld [vmem:[#allocation2 + $0x38] sm:$0xff]
      %v381 = vld [vmem:[%s325] sm:$0xf]
      %v382 = vld [vmem:[%s325 + $0x4] sm:$0xf]
      %v383 = vld [vmem:[%s325 + $0x8] sm:$0xf]
      %v384 = vld [vmem:[%s325 + $0xc] sm:$0xf]
      %v385 = vld [vmem:[%s325 + $0x10] sm:$0xf]
      %v386 = vld [vmem:[%s325 + $0x14] sm:$0xf]
      %v387 = vld [vmem:[%s325 + $0x18] sm:$0xf]
      %v388 = vld [vmem:[%s325 + $0x1c] sm:$0xf]
      %v389 = vld [vmem:[%s334] sm:$0xf]
      %v390 = vld [vmem:[%s334 + $0x4] sm:$0xf]
      %v391 = vld [vmem:[%s334 + $0x8] sm:$0xf]
      %v392 = vld [vmem:[%s334 + $0xc] sm:$0xf]
      %v393 = vld [vmem:[%s334 + $0x10] sm:$0xf]
      %v394 = vld [vmem:[%s334 + $0x14] sm:$0xf]
      %v395 = vld [vmem:[%s334 + $0x18] sm:$0xf]
      %v396 = vld [vmem:[%s334 + $0x1c] sm:$0xf]
      %v397 = vld [vmem:[%s334 + $0x20] sm:$0xf]
      %v398 = vld [vmem:[%s334 + $0x24] sm:$0xf]
      %v399 = vld [vmem:[%s334 + $0x28] sm:$0xf]
      %v400 = vld [vmem:[%s334 + $0x2c] sm:$0xf]
      %v401 = vld [vmem:[%s334 + $0x30] sm:$0xf]
      %v402 = vld [vmem:[%s334 + $0x34] sm:$0xf]
      %v403 = vld [vmem:[%s334 + $0x38] sm:$0xf]
      %v404 = vld [vmem:[%s334 + $0x3c] sm:$0xf]
      %v413 = vunpack.c.l.b16 %v381
      %v414 = vunpack.c.l.b16 %v382
      %v415 = vunpack.c.l.b16 %v383
      %v416 = vunpack.c.l.b16 %v384
      %v417 = vunpack.c.l.b16 %v385
      %v418 = vunpack.c.l.b16 %v386
      %v419 = vunpack.c.l.b16 %v387
      %v420 = vunpack.c.l.b16 %v388
      %v421 = vpack.c.b16 %v414, %v413
      %v422 = vpack.c.b16 %v416, %v415
      %v423 = vpack.c.b16 %v418, %v417
      %v424 = vpack.c.b16 %v420, %v419
      %v445 = vunpack.c.l.b16 %v389
      %v446 = vunpack.c.l.b16 %v390
      %v447 = vunpack.c.l.b16 %v391
      %v448 = vunpack.c.l.b16 %v392
      %v449 = vunpack.c.l.b16 %v393
      %v450 = vunpack.c.l.b16 %v394
      %v451 = vunpack.c.l.b16 %v395
      %v452 = vunpack.c.l.b16 %v396
      %v453 = vunpack.c.l.b16 %v397
      %v454 = vunpack.c.l.b16 %v398
      %v455 = vunpack.c.l.b16 %v399
      %v456 = vunpack.c.l.b16 %v400
      %v457 = vunpack.c.l.b16 %v401
      %v458 = vunpack.c.l.b16 %v402
      %v459 = vunpack.c.l.b16 %v403
      %v460 = vunpack.c.l.b16 %v404
      %v461 = vpack.c.b16 %v446, %v445
      %v462 = vpack.c.b16 %v448, %v447
      %v463 = vpack.c.b16 %v450, %v449
      %v464 = vpack.c.b16 %v452, %v451
      %v465 = vpack.c.b16 %v454, %v453
      %v466 = vpack.c.b16 %v456, %v455
      %v467 = vpack.c.b16 %v458, %v457
      %v468 = vpack.c.b16 %v460, %v459
      %477 = vmatprep.subr.bf16.mxu0 0
      %478 = vmatpush1.bf16.msra.mxu0 %v468
      %479 = vmatprep.subr.bf16.mxu0 0
      %480 = vmatpush1.bf16.msra.mxu0 %v467
      %481 = vmatprep.subr.bf16.mxu0 0
      %482 = vmatpush1.bf16.msra.mxu0 %v466
      %483 = vmatprep.subr.bf16.mxu0 0
      %484 = vmatpush1.bf16.msra.mxu0 %v465
      %485 = vmatprep.subr.bf16.mxu0 0
      %486 = vmatpush1.bf16.msra.mxu0 %v464
      %487 = vmatprep.subr.bf16.mxu0 0
      %488 = vmatpush1.bf16.msra.mxu0 %v463
      %489 = vmatprep.subr.bf16.mxu0 0
      %490 = vmatpush1.bf16.msra.mxu0 %v462
      %491 = vmatprep.subr.bf16.mxu0 0
      %492 = vmatpush1.bf16.msra.mxu0 %v461
      %493 = vmatprep.subr.bf16.mxu0 0
      %494 = vmatpush2.bf16.msra.mxu0 0
      %495 = vmatprep.subr.bf16.mxu0 0
      %496 = vmatpush2.bf16.msra.mxu0 0
      %497 = vmatprep.subr.bf16.mxu0 0
      %498 = vmatpush2.bf16.msra.mxu0 0
      %499 = vmatprep.subr.bf16.mxu0 0
      %500 = vmatpush2.bf16.msra.mxu0 0
      %501 = vmatprep.subr.bf16.mxu0 0
      %502 = vmatpush2.bf16.msra.mxu0 0
      %503 = vmatprep.subr.bf16.mxu0 0
      %504 = vmatpush2.bf16.msra.mxu0 0
      %505 = vmatprep.subr.bf16.mxu0 0
      %506 = vmatpush2.bf16.msra.mxu0 0
      %507 = vmatprep.subr.bf16.mxu0 0
      %508 = vmatpush2.bf16.msra.mxu0 0
      %509 = vmatprep.mubr.bf16.mxu0 0
      %510 = vmatmul.mubr.bf16.gmra.mxu0 %v421
      %v511 = vpop.f32.mrf.mxu0
      %v512 = vadd.f32 0.0, %v511
      %v513 = vpop.f32.mrf.mxu0
      %v514 = vpop.f32.mrf.mxu0
      %v515 = vadd.f32 0.0, %v514
      %v516 = vpop.f32.mrf.mxu0
      %517 = vmatprep.mubr.bf16.mxu0 0
      %518 = vmatmul.mubr.bf16.gmra.mxu0 %v422
      %v519 = vpop.f32.mrf.mxu0
      %v520 = vadd.f32 0.0, %v519
      %v521 = vpop.f32.mrf.mxu0
      %v522 = vpop.f32.mrf.mxu0
      %v523 = vadd.f32 0.0, %v522
      %v524 = vpop.f32.mrf.mxu0
      %525 = vmatprep.mubr.bf16.mxu0 0
      %526 = vmatmul.mubr.bf16.gmra.mxu0 %v423
      %v527 = vpop.f32.mrf.mxu0
      %v528 = vadd.f32 0.0, %v527
      %v529 = vpop.f32.mrf.mxu0
      %v530 = vpop.f32.mrf.mxu0
      %v531 = vadd.f32 0.0, %v530
      %v532 = vpop.f32.mrf.mxu0
      %533 = vmatprep.mubr.bf16.mxu0 0
      %534 = vmatmul.mubr.bf16.gmra.mxu0 %v424
      %v535 = vpop.f32.mrf.mxu0
      %v536 = vadd.f32 0.0, %v535
      %v537 = vpop.f32.mrf.mxu0
      %v538 = vpop.f32.mrf.mxu0
      %v539 = vadd.f32 0.0, %v538
      %v540 = vpop.f32.mrf.mxu0
      %541 = vdwg.mxu0
      %v542 = vadd.f32 %v373, %v512
      %v543 = vadd.f32 %v374, %v515
      %v544 = vadd.f32 %v375, %v520
      %v545 = vadd.f32 %v376, %v523
      %v546 = vadd.f32 %v377, %v528
      %v547 = vadd.f32 %v378, %v531
      %v548 = vadd.f32 %v379, %v536
      %v549 = vadd.f32 %v380, %v539
      %550 = vst [vmem:[#allocation2] sm:$0xff] %v542
      %551 = vst [vmem:[#allocation2 + $0x8] sm:$0xff] %v543
      %552 = vst [vmem:[#allocation2 + $0x10] sm:$0xff] %v544
      %553 = vst [vmem:[#allocation2 + $0x18] sm:$0xff] %v545
      %554 = vst [vmem:[#allocation2 + $0x20] sm:$0xff] %v546
      %555 = vst [vmem:[#allocation2 + $0x28] sm:$0xff] %v547
      %556 = vst [vmem:[#allocation2 + $0x30] sm:$0xff] %v548
      %557 = vst [vmem:[#allocation2 + $0x38] sm:$0xff] %v549
      // Predicated region
      $region45: #{_lambda_.10} parent=39 // pred_check
        %p558 = pneg %p361
      $region46: #{_lambda_.10} parent=39 // pred_check_branch
        %560 = sbr.rel (%p558) target = $region48
      $region47: #{_lambda_.10} parent=39 // pred_region
        %v561 = vld [vmem:[#allocation2] sm:$0xff]
        %v562 = vld [vmem:[#allocation2 + $0x8] sm:$0xff]
        %v563 = vld [vmem:[#allocation2 + $0x10] sm:$0xff]
        %v564 = vld [vmem:[#allocation2 + $0x18] sm:$0xff]
        %v565 = vld [vmem:[#allocation2 + $0x20] sm:$0xff]
        %v566 = vld [vmem:[#allocation2 + $0x28] sm:$0xff]
        %v567 = vld [vmem:[#allocation2 + $0x30] sm:$0xff]
        %v568 = vld [vmem:[#allocation2 + $0x38] sm:$0xff]
        %v569 = vld [vmem:[%s338] sm:$0x1]
        %v571 = vlaneseq
        %v572 = vshrl.u32 %v571, 7
        %v573 = vsub.s32 0, %v572
        %v574 = vrot.slane %v569, %v573
        %v576 = vmul.f32 %v561, %v574
        %v577 = vmul.f32 %v562, %v574
        %v578 = vmul.f32 %v563, %v574
        %v579 = vmul.f32 %v564, %v574
        %v580 = vmul.f32 %v565, %v574
        %v581 = vmul.f32 %v566, %v574
        %v582 = vmul.f32 %v567, %v574
        %v583 = vmul.f32 %v568, %v574
        %v584 = vld [vmem:[%s341] sm:$0x1]
        %v586 = vlaneseq
        %v587 = vshrl.u32 %v586, 7
        %v588 = vsub.s32 0, %v587
        %v589 = vrot.slane %v584, %v588
        %v591 = vadd.f32 %v576, %v589
        %v592 = vadd.f32 %v577, %v589
        %v593 = vadd.f32 %v578, %v589
        %v594 = vadd.f32 %v579, %v589
        %v595 = vadd.f32 %v580, %v589
        %v596 = vadd.f32 %v581, %v589
        %v597 = vadd.f32 %v582, %v589
        %v598 = vadd.f32 %v583, %v589
        %v599 = vld [vmem:[%s349] sm:$0xf]
        %v600 = vld [vmem:[%s349 + $0x4] sm:$0xf]
        %v601 = vld [vmem:[%s349 + $0x8] sm:$0xf]
        %v602 = vld [vmem:[%s349 + $0xc] sm:$0xf]
        %v603 = vld [vmem:[%s349 + $0x10] sm:$0xf]
        %v604 = vld [vmem:[%s349 + $0x14] sm:$0xf]
        %v605 = vld [vmem:[%s349 + $0x18] sm:$0xf]
        %v606 = vld [vmem:[%s349 + $0x1c] sm:$0xf]
        %v607 = vunpack.c.l.bf16 %v599
        %v608 = vunpack.c.l.bf16 %v600
        %v609 = vunpack.c.l.bf16 %v601
        %v610 = vunpack.c.l.bf16 %v602
        %v611 = vunpack.c.l.bf16 %v603
        %v612 = vunpack.c.l.bf16 %v604
        %v613 = vunpack.c.l.bf16 %v605
        %v614 = vunpack.c.l.bf16 %v606
        %v615 = vadd.f32 %v591, %v607
        %v616 = vadd.f32 %v592, %v608
        %v617 = vadd.f32 %v593, %v609
        %v618 = vadd.f32 %v594, %v610
        %v619 = vadd.f32 %v595, %v611
        %v620 = vadd.f32 %v596, %v612
        %v621 = vadd.f32 %v597, %v613
        %v622 = vadd.f32 %v598, %v614
        %v623 = vmax.f32 %v615, 0.0
        %v624 = vmax.f32 %v616, 0.0
        %v625 = vmax.f32 %v617, 0.0
        %v626 = vmax.f32 %v618, 0.0
        %v627 = vmax.f32 %v619, 0.0
        %v628 = vmax.f32 %v620, 0.0
        %v629 = vmax.f32 %v621, 0.0
        %v630 = vmax.f32 %v622, 0.0
        %v631 = vpack.c.bf16 %v624, %v623
        %v632 = vpack.c.bf16 %v626, %v625
        %v633 = vpack.c.bf16 %v628, %v627
        %v634 = vpack.c.bf16 %v630, %v629
        %v639 = vunpack.c.l.b16 %v631
        %v640 = vunpack.c.h.b16 %v631
        %v641 = vunpack.c.l.b16 %v632
        %v642 = vunpack.c.h.b16 %v632
        %v643 = vunpack.c.l.b16 %v633
        %v644 = vunpack.c.h.b16 %v633
        %v645 = vunpack.c.l.b16 %v634
        %v646 = vunpack.c.h.b16 %v634
        %v647 = vpack.c.b16 %v639, %v639
        %v648 = vpack.c.b16 %v640, %v640
        %v649 = vpack.c.b16 %v641, %v641
        %v650 = vpack.c.b16 %v642, %v642
        %v651 = vpack.c.b16 %v643, %v643
        %v652 = vpack.c.b16 %v644, %v644
        %v653 = vpack.c.b16 %v645, %v645
        %v654 = vpack.c.b16 %v646, %v646
        %663 = vst [vmem:[%s358] sm:$0xf] %v647
        %664 = vst [vmem:[%s358 + $0x4] sm:$0xf] %v648
        %665 = vst [vmem:[%s358 + $0x8] sm:$0xf] %v649
        %666 = vst [vmem:[%s358 + $0xc] sm:$0xf] %v650
        %667 = vst [vmem:[%s358 + $0x10] sm:$0xf] %v651
        %668 = vst [vmem:[%s358 + $0x14] sm:$0xf] %v652
        %669 = vst [vmem:[%s358 + $0x18] sm:$0xf] %v653
        %670 = vst [vmem:[%s358 + $0x1c] sm:$0xf] %v654
      $region48: #{_lambda_.10} parent=39 // pred_fallthru
        _
      %s671 = smul.u32 8, %s21
      %p672 = scmp.lt.s32.totalorder %s671, 15
      %s673 = scalar_select %p672, %s671, 15
      %p674 = scmp.lt.s32.totalorder %s22, 0
      %s675 = scalar_select %p674, %s22, 0
      %s676 = sadd.s32 %s675, %s673
      %s677 = smul.addr %s676, 4
      %s678 = scalar_lea.vmem %s5, %s677
      // Predicated region
      $region49: #{_lambda_.10} parent=39 // pred_check
        %p679 = pneg %p191
      $region50: #{_lambda_.10} parent=39 // pred_check_branch
        %681 = sbr.rel (%p679) target = $region52
      $region51: #{_lambda_.10} parent=39 // pred_region
        %s682 = smul.u32 8, %s21
      $region52: #{_lambda_.10} parent=39 // pred_fallthru
        _
    $region40: #{_lambda_.10} parent=5 // pred_fallthru
      _
    %p683 = scmp.le.s32.totalorder 2, %s11
    // Predicated region
    $region53: #{_lambda_.10} parent=5 // pred_check
      %p684 = pneg %p683
    $region54: #{_lambda_.10} parent=5 // pred_check_branch
      %686 = sbr.rel (%p684) target = $region56
    $region55: #{_lambda_.10} parent=5 // pred_region
      %s687 = ssub.s32 %s11, 2
      // Predicated region
      $region57: #{_lambda_.10} parent=55 // pred_check
        %p688 = pneg %p197
      $region58: #{_lambda_.10} parent=55 // pred_check_branch
        %690 = sbr.rel (%p688) target = $region60
      $region59: #{_lambda_.10} parent=55 // pred_region
        %s691 = smul.u32 8, %s24
        %p692 = scmp.lt.s32.totalorder %s691, 15
        %s693 = scalar_select %p692, %s691, 15
        %p694 = scmp.lt.s32.totalorder %s25, 0
        %s695 = scalar_select %p694, %s25, 0
        %s696 = sadd.s32 %s695, %s693
        %s697 = smul.addr %s696, 4
        %s698 = scalar_lea.vmem %s5, %s697
      $region60: #{_lambda_.10} parent=55 // pred_fallthru
        _
    $region56: #{_lambda_.10} parent=5 // pred_fallthru
      _
  $region6: #{_lambda_.10} parent=0 // loop_footer
    %s15 = sadd.s32 1, %s11
  $region7: #{_lambda_.10} parent=0 // loop_footer_branch
    %10 = sbr.rel target = $region3
  $region8: #{_lambda_.10} parent=0 // loop_exit
    _

// kernel: _lambda_.11
$region0: #{_lambda_.11}
  #allocation0 [shape = 'u32[]', space=smem, size = 0x4, offset = 0x4, fixed_abs, tag = 'smem constant byte address 0x4 - core index']
  #allocation1 [shape = 'u32[144,128]{1,0:T(1,128)}', space=vmem, size = 0x12000, scoped, tag = 'internal scratch']
  #allocation2 [shape = 'f32[64,128]{1,0:T(8,128)}', space=vmem, size = 0x8000, scoped, tag = 'scratch operand']
  %s0 = inlined_call_operand.vmem [shape: bf16[128,128], index: 0, kind: input, shape index: {}]
  %s1 = inlined_call_operand.vmem [shape: bf16[128,128], index: 1, kind: input, shape index: {}]
  %s2 = inlined_call_operand.vmem [shape: f32[1,128], index: 2, kind: input, shape index: {}]
  %s3 = inlined_call_operand.vmem [shape: f32[1,128], index: 3, kind: input, shape index: {}]
  %s4 = inlined_call_operand.vmem [shape: bf16[128,128], index: 4, kind: output, shape index: {}]
  %s5 = sld [smem:[#allocation0]]
  $region57: #{_lambda_.11} parent=0
    _
  %s7 = ssub.s32 1, %s5
  %s8 = scalar_select 0, %s7, %s5
  loop: start=0, step=1, limit=4
  $region2: #{_lambda_.11} parent=0 // loop_pre_header
    _
  $region3: #{_lambda_.11} parent=0 // loop_header
    %s10 = sphi 0, %s14
    %p11 = scmp.ge.s32.totalorder %s10, 4
    %s17 = sphi 0, %s36
    %s18 = sphi 0, %s32
    %s19 = sphi 0, %s28
    %s20 = sphi 0, %s17
    %s21 = sphi 0, %s18
    %s22 = sphi 0, %s19
    %s23 = sphi 0, %s20
    %s24 = sphi 0, %s21
    %s25 = sphi 0, %s22
    %s41 = sphi 0, %s43
    %s44 = sphi 0, %s41
    %s45 = sphi 0, %s44
    %s61 = sphi 0, %s45
    %s69 = sphi 0, %s71
    %s72 = sphi 0, %s69
    %s73 = sphi 0, %s72
    %s89 = sphi 0, %s73
    %s95 = sphi 0, %s97
    %s98 = sphi 0, %s95
    %s99 = sphi 0, %s98
    %s115 = sphi 0, %s99
    %s121 = sphi 0, %s123
    %s124 = sphi 0, %s121
    %s125 = sphi 0, %s124
    %s141 = sphi 0, %s125
    %s149 = sphi 0, %s151
    %s152 = sphi 0, %s149
    %s153 = sphi 0, %s152
    %s169 = sphi 0, %s153
  $region4: #{_lambda_.11} parent=0 // loop_header_branch
    %13 = sbr.rel (%p11) target = $region8
  $region5: #{_lambda_.11} parent=0 // loop_body
    %s15 = ssub.s32 %s10, 1
    %s16 = ssub.s32 %s10, 2
    %s26 = sadd.s32 1, %s19
    %p27 = scmp.ge.s32.totalorder %s26, 1
    %s28 = scalar_select %p27, 0, %s26
    %s29 = sadd.s32 1, %s18
    %s30 = scalar_select %p27, %s29, %s18
    %p31 = scmp.ge.s32.totalorder %s30, 1
    %s32 = scalar_select %p31, 0, %s30
    %s33 = sadd.s32 1, %s17
    %s34 = scalar_select %p31, %s33, %s17
    %p35 = scmp.ge.s32.totalorder %s34, 2
    %s36 = scalar_select %p35, 0, %s34
    %s37 = ssub.s32 %s17, %s36
    %s38 = ssub.s32 %s19, %s28
    %s39 = sor.u32 %s37, %s38
    %p40 = scmp.eq.s32.totalorder %s39, 0
    %s42 = sadd.s32 %s41, 1
    %s43 = scalar_select %p40, %s41, %s42
    %p46 = pneg %p40
    %p47 = scmp.eq.s32.totalorder %s10, 1
    %p48 = por %p46, %p47
    %p49 = scmp.ne.s32.totalorder %s41, %s44
    %p50 = scmp.eq.s32.totalorder %s10, 0
    %p51 = por %p49, %p50
    %p52 = scmp.ne.s32.totalorder %s41, %s44
    %p53 = scmp.eq.s32.totalorder %s15, 1
    %p54 = por %p52, %p53
    %p55 = scmp.ne.s32.totalorder %s44, %s45
    %p56 = scmp.eq.s32.totalorder %s15, 0
    %p57 = por %p55, %p56
    %p58 = scmp.ne.s32.totalorder %s44, %s45
    %p59 = scmp.eq.s32.totalorder %s16, 1
    %p60 = por %p58, %p59
    %p62 = scmp.ne.s32.totalorder %s45, %s61
    %p63 = scmp.eq.s32.totalorder %s16, 0
    %p64 = por %p62, %p63
    %s65 = ssub.s32 %s19, %s28
    %s66 = ssub.s32 %s18, %s32
    %s67 = sor.u32 %s65, %s66
    %p68 = scmp.eq.s32.totalorder %s67, 0
    %s70 = sadd.s32 %s69, 1
    %s71 = scalar_select %p68, %s69, %s70
    %p74 = pneg %p68
    %p75 = scmp.eq.s32.totalorder %s10, 1
    %p76 = por %p74, %p75
    %p77 = scmp.ne.s32.totalorder %s69, %s72
    %p78 = scmp.eq.s32.totalorder %s10, 0
    %p79 = por %p77, %p78
    %p80 = scmp.ne.s32.totalorder %s69, %s72
    %p81 = scmp.eq.s32.totalorder %s15, 1
    %p82 = por %p80, %p81
    %p83 = scmp.ne.s32.totalorder %s72, %s73
    %p84 = scmp.eq.s32.totalorder %s15, 0
    %p85 = por %p83, %p84
    %p86 = scmp.ne.s32.totalorder %s72, %s73
    %p87 = scmp.eq.s32.totalorder %s16, 1
    %p88 = por %p86, %p87
    %p90 = scmp.ne.s32.totalorder %s73, %s89
    %p91 = scmp.eq.s32.totalorder %s16, 0
    %p92 = por %p90, %p91
    %s93 = ssub.s32 %s18, %s32
    %p94 = scmp.eq.s32.totalorder %s93, 0
    %s96 = sadd.s32 %s95, 1
    %s97 = scalar_select %p94, %s95, %s96
    %p100 = pneg %p94
    %p101 = scmp.eq.s32.totalorder %s10, 1
    %p102 = por %p100, %p101
    %p103 = scmp.ne.s32.totalorder %s95, %s98
    %p104 = scmp.eq.s32.totalorder %s10, 0
    %p105 = por %p103, %p104
    %p106 = scmp.ne.s32.totalorder %s95, %s98
    %p107 = scmp.eq.s32.totalorder %s15, 1
    %p108 = por %p106, %p107
    %p109 = scmp.ne.s32.totalorder %s98, %s99
    %p110 = scmp.eq.s32.totalorder %s15, 0
    %p111 = por %p109, %p110
    %p112 = scmp.ne.s32.totalorder %s98, %s99
    %p113 = scmp.eq.s32.totalorder %s16, 1
    %p114 = por %p112, %p113
    %p116 = scmp.ne.s32.totalorder %s99, %s115
    %p117 = scmp.eq.s32.totalorder %s16, 0
    %p118 = por %p116, %p117
    %s119 = ssub.s32 %s18, %s32
    %p120 = scmp.eq.s32.totalorder %s119, 0
    %s122 = sadd.s32 %s121, 1
    %s123 = scalar_select %p120, %s121, %s122
    %p126 = pneg %p120
    %p127 = scmp.eq.s32.totalorder %s10, 1
    %p128 = por %p126, %p127
    %p129 = scmp.ne.s32.totalorder %s121, %s124
    %p130 = scmp.eq.s32.totalorder %s10, 0
    %p131 = por %p129, %p130
    %p132 = scmp.ne.s32.totalorder %s121, %s124
    %p133 = scmp.eq.s32.totalorder %s15, 1
    %p134 = por %p132, %p133
    %p135 = scmp.ne.s32.totalorder %s124, %s125
    %p136 = scmp.eq.s32.totalorder %s15, 0
    %p137 = por %p135, %p136
    %p138 = scmp.ne.s32.totalorder %s124, %s125
    %p139 = scmp.eq.s32.totalorder %s16, 1
    %p140 = por %p138, %p139
    %p142 = scmp.ne.s32.totalorder %s125, %s141
    %p143 = scmp.eq.s32.totalorder %s16, 0
    %p144 = por %p142, %p143
    %s145 = ssub.s32 %s17, %s36
    %s146 = ssub.s32 %s18, %s32
    %s147 = sor.u32 %s145, %s146
    %p148 = scmp.eq.s32.totalorder %s147, 0
    %s150 = sadd.s32 %s149, 1
    %s151 = scalar_select %p148, %s149, %s150
    %p154 = pneg %p148
    %p155 = scmp.eq.s32.totalorder %s10, 1
    %p156 = por %p154, %p155
    %p157 = scmp.ne.s32.totalorder %s149, %s152
    %p158 = scmp.eq.s32.totalorder %s10, 0
    %p159 = por %p157, %p158
    %p160 = scmp.ne.s32.totalorder %s149, %s152
    %p161 = scmp.eq.s32.totalorder %s15, 1
    %p162 = por %p160, %p161
    %p163 = scmp.ne.s32.totalorder %s152, %s153
    %p164 = scmp.eq.s32.totalorder %s15, 0
    %p165 = por %p163, %p164
    %p166 = scmp.ne.s32.totalorder %s152, %s153
    %p167 = scmp.eq.s32.totalorder %s16, 1
    %p168 = por %p166, %p167
    %p170 = scmp.ne.s32.totalorder %s153, %s169
    %p171 = scmp.eq.s32.totalorder %s16, 0
    %p172 = por %p170, %p171
    %p173 = scmp.le.s32.totalorder 1, %s10
    %p174 = scmp.lt.s32.totalorder %s10, 3
    %p175 = pnand %p173, %p174
    %p176 = pneg %p175
    // Predicated region
    $region9: #{_lambda_.11} parent=5 // pred_check
      _
    $region10: #{_lambda_.11} parent=5 // pred_check_branch
      %178 = sbr.rel (%p175) target = $region12
    $region11: #{_lambda_.11} parent=5 // pred_region
      %s179 = ssub.s32 %s10, 1
      // Predicated region
      $region13: #{_lambda_.11} parent=11 // pred_check
        %p180 = pneg %p85
      $region14: #{_lambda_.11} parent=11 // pred_check_branch
        %182 = sbr.rel (%p180) target = $region16
      $region15: #{_lambda_.11} parent=11 // pred_region
        %s183 = smul.u32 16, %s22
        %p184 = scmp.lt.s32.totalorder %s183, 15
        %s185 = scalar_select %p184, %s183, 15
        %p186 = scmp.lt.s32.totalorder %s21, 0
        %s187 = scalar_select %p186, %s21, 0
        %s188 = sadd.s32 %s187, %s185
        %s189 = smul.addr %s188, 4
        %s190 = scalar_lea.vmem %s1, %s189
        %s191 = smul.u32 16, %s22
      $region16: #{_lambda_.11} parent=11 // pred_fallthru
        _
      // Predicated region
      $region17: #{_lambda_.11} parent=11 // pred_check
        %p192 = pneg %p111
      $region18: #{_lambda_.11} parent=11 // pred_check_branch
        %194 = sbr.rel (%p192) target = $region20
      $region19: #{_lambda_.11} parent=11 // pred_region
        %p195 = scmp.lt.s32.totalorder %s21, 0
        %s196 = scalar_select %p195, %s21, 0
        %s197 = scalar_lea.vmem %s2, %s196
      $region20: #{_lambda_.11} parent=11 // pred_fallthru
        _
      // Predicated region
      $region21: #{_lambda_.11} parent=11 // pred_check
        %p198 = pneg %p137
      $region22: #{_lambda_.11} parent=11 // pred_check_branch
        %200 = sbr.rel (%p198) target = $region24
      $region23: #{_lambda_.11} parent=11 // pred_region
        %p201 = scmp.lt.s32.totalorder %s21, 0
        %s202 = scalar_select %p201, %s21, 0
        %s203 = scalar_lea.vmem %s3, %s202
      $region24: #{_lambda_.11} parent=11 // pred_fallthru
        _
    $region12: #{_lambda_.11} parent=5 // pred_fallthru
      _
    %p204 = scmp.lt.s32.totalorder %s10, 2
    // Predicated region
    $region25: #{_lambda_.11} parent=5 // pred_check
      %p205 = pneg %p204
    $region26: #{_lambda_.11} parent=5 // pred_check_branch
      %207 = sbr.rel (%p205) target = $region28
    $region27: #{_lambda_.11} parent=5 // pred_region
      // Predicated region
      $region29: #{_lambda_.11} parent=27 // pred_check
        %p208 = pneg %p51
      $region30: #{_lambda_.11} parent=27 // pred_check_branch
        %210 = sbr.rel (%p208) target = $region32
      $region31: #{_lambda_.11} parent=27 // pred_region
        %s211 = smul.u32 8, %s17
        %p212 = scmp.lt.s32.totalorder %s211, 15
        %s213 = scalar_select %p212, %s211, 15
        %p214 = scmp.lt.s32.totalorder %s19, 0
        %s215 = scalar_select %p214, %s19, 0
        %s216 = sadd.s32 %s215, %s213
        %s217 = smul.addr %s216, 4
        %s218 = scalar_lea.vmem %s0, %s217
        %s219 = smul.u32 8, %s17
      $region32: #{_lambda_.11} parent=27 // pred_fallthru
        _
    $region28: #{_lambda_.11} parent=5 // pred_fallthru
      _
    %p220 = scmp.le.s32.totalorder 1, %s10
    %p221 = scmp.lt.s32.totalorder %s10, 3
    %p222 = pnand %p220, %p221
    %p223 = pneg %p222
    // Predicated region
    $region33: #{_lambda_.11} parent=5 // pred_check
      _
    $region34: #{_lambda_.11} parent=5 // pred_check_branch
      %225 = sbr.rel (%p222) target = $region36
    $region35: #{_lambda_.11} parent=5 // pred_region
      %s226 = ssub.s32 %s10, 1
      %s227 = smul.u32 8, %s20
      %p228 = scmp.lt.s32.totalorder %s227, 15
      %s229 = scalar_select %p228, %s227, 15
      %p230 = scmp.lt.s32.totalorder %s22, 0
      %s231 = scalar_select %p230, %s22, 0
      %s232 = sadd.s32 %s231, %s229
      %s233 = smul.addr %s232, 4
      %s234 = scalar_lea.vmem %s0, %s233
      %p235 = pneg %p57
      %p236 = pneg %p54
      %s237 = smul.u32 16, %s22
      %p238 = scmp.lt.s32.totalorder %s237, 15
      %s239 = scalar_select %p238, %s237, 15
      %p240 = scmp.lt.s32.totalorder %s21, 0
      %s241 = scalar_select %p240, %s21, 0
      %s242 = sadd.s32 %s241, %s239
      %s243 = smul.addr %s242, 4
      %s244 = scalar_lea.vmem %s1, %s243
      %p245 = pneg %p85
      %p246 = pneg %p82
      %p247 = scmp.lt.s32.totalorder %s21, 0
      %s248 = scalar_select %p247, %s21, 0
      %s249 = scalar_lea.vmem %s2, %s248
      %p250 = pneg %p111
      %p251 = pneg %p108
      %p252 = scmp.lt.s32.totalorder %s21, 0
      %s253 = scalar_select %p252, %s21, 0
      %s254 = scalar_lea.vmem %s3, %s253
      %p255 = pneg %p137
      %p256 = pneg %p134
      %p257 = pneg %p165
      %p258 = pneg %p162
      %s259 = smul.u32 8, %s20
      %p260 = scmp.lt.s32.totalorder %s259, 15
      %s261 = scalar_select %p260, %s259, 15
      %p262 = scmp.lt.s32.totalorder %s21, 0
      %s263 = scalar_select %p262, %s21, 0
      %s264 = sadd.s32 %s263, %s261
      %s265 = smul.addr %s264, 4
      %s266 = scalar_lea.vmem %s4, %s265
      %s267 = smul.u32 8, %s20
      %p268 = scmp.lt.s32.totalorder %s267, 15
      %s269 = scalar_select %p268, %s267, 15
      %p270 = scmp.lt.s32.totalorder %s22, 0
      %s271 = scalar_select %p270, %s22, 0
      %s272 = sadd.s32 %s271, %s269
      %s273 = smul.addr %s272, 4
      %s274 = scalar_lea.vmem %s0, %s273
      %s275 = smul.u32 8, %s20
      %s276 = smul.u32 16, %s22
      %p277 = scmp.lt.s32.totalorder %s276, 15
      %s278 = scalar_select %p277, %s276, 15
      %p279 = scmp.lt.s32.totalorder %s21, 0
      %s280 = scalar_select %p279, %s21, 0
      %s281 = sadd.s32 %s280, %s278
      %s282 = smul.addr %s281, 4
      %s283 = scalar_lea.vmem %s1, %s282
      %s284 = smul.u32 16, %s22
      %p285 = scmp.lt.s32.totalorder %s21, 0
      %s286 = scalar_select %p285, %s21, 0
      %s287 = scalar_lea.vmem %s2, %s286
      %p288 = scmp.lt.s32.totalorder %s21, 0
      %s289 = scalar_select %p288, %s21, 0
      %s290 = scalar_lea.vmem %s3, %s289
      %s291 = smul.u32 8, %s20
      %p292 = scmp.lt.s32.totalorder %s291, 15
      %s293 = scalar_select %p292, %s291, 15
      %p294 = scmp.lt.s32.totalorder %s21, 0
      %s295 = scalar_select %p294, %s21, 0
      %s296 = sadd.s32 %s295, %s293
      %s297 = smul.addr %s296, 4
      %s298 = scalar_lea.vmem %s4, %s297
      %s299 = smul.u32 8, %s20
      %p301 = scmp.eq.s32.totalorder %s22, 0
      // Predicated region
      $region37: #{_lambda_.11} parent=35 // pred_check
        %p302 = pneg %p301
      $region38: #{_lambda_.11} parent=35 // pred_check_branch
        %304 = sbr.rel (%p302) target = $region40
      $region39: #{_lambda_.11} parent=35 // pred_region
        %305 = vst [vmem:[#allocation2] sm:$0xff] 0.0
        %306 = vst [vmem:[#allocation2 + $0x8] sm:$0xff] 0.0
        %307 = vst [vmem:[#allocation2 + $0x10] sm:$0xff] 0.0
        %308 = vst [vmem:[#allocation2 + $0x18] sm:$0xff] 0.0
        %309 = vst [vmem:[#allocation2 + $0x20] sm:$0xff] 0.0
        %310 = vst [vmem:[#allocation2 + $0x28] sm:$0xff] 0.0
        %311 = vst [vmem:[#allocation2 + $0x30] sm:$0xff] 0.0
        %312 = vst [vmem:[#allocation2 + $0x38] sm:$0xff] 0.0
      $region40: #{_lambda_.11} parent=35 // pred_fallthru
        _
      %v313 = vld [vmem:[#allocation2] sm:$0xff]
      %v314 = vld [vmem:[#allocation2 + $0x8] sm:$0xff]
      %v315 = vld [vmem:[#allocation2 + $0x10] sm:$0xff]
      %v316 = vld [vmem:[#allocation2 + $0x18] sm:$0xff]
      %v317 = vld [vmem:[#allocation2 + $0x20] sm:$0xff]
      %v318 = vld [vmem:[#allocation2 + $0x28] sm:$0xff]
      %v319 = vld [vmem:[#allocation2 + $0x30] sm:$0xff]
      %v320 = vld [vmem:[#allocation2 + $0x38] sm:$0xff]
      %v321 = vld [vmem:[%s274] sm:$0xf]
      %v322 = vld [vmem:[%s274 + $0x4] sm:$0xf]
      %v323 = vld [vmem:[%s274 + $0x8] sm:$0xf]
      %v324 = vld [vmem:[%s274 + $0xc] sm:$0xf]
      %v325 = vld [vmem:[%s274 + $0x10] sm:$0xf]
      %v326 = vld [vmem:[%s274 + $0x14] sm:$0xf]
      %v327 = vld [vmem:[%s274 + $0x18] sm:$0xf]
      %v328 = vld [vmem:[%s274 + $0x1c] sm:$0xf]
      %v329 = vld [vmem:[%s283] sm:$0xf]
      %v330 = vld [vmem:[%s283 + $0x4] sm:$0xf]
      %v331 = vld [vmem:[%s283 + $0x8] sm:$0xf]
      %v332 = vld [vmem:[%s283 + $0xc] sm:$0xf]
      %v333 = vld [vmem:[%s283 + $0x10] sm:$0xf]
      %v334 = vld [vmem:[%s283 + $0x14] sm:$0xf]
      %v335 = vld [vmem:[%s283 + $0x18] sm:$0xf]
      %v336 = vld [vmem:[%s283 + $0x1c] sm:$0xf]
      %v337 = vld [vmem:[%s283 + $0x20] sm:$0xf]
      %v338 = vld [vmem:[%s283 + $0x24] sm:$0xf]
      %v339 = vld [vmem:[%s283 + $0x28] sm:$0xf]
      %v340 = vld [vmem:[%s283 + $0x2c] sm:$0xf]
      %v341 = vld [vmem:[%s283 + $0x30] sm:$0xf]
      %v342 = vld [vmem:[%s283 + $0x34] sm:$0xf]
      %v343 = vld [vmem:[%s283 + $0x38] sm:$0xf]
      %v344 = vld [vmem:[%s283 + $0x3c] sm:$0xf]
      %v353 = vunpack.c.l.b16 %v321
      %v354 = vunpack.c.l.b16 %v322
      %v355 = vunpack.c.l.b16 %v323
      %v356 = vunpack.c.l.b16 %v324
      %v357 = vunpack.c.l.b16 %v325
      %v358 = vunpack.c.l.b16 %v326
      %v359 = vunpack.c.l.b16 %v327
      %v360 = vunpack.c.l.b16 %v328
      %v361 = vpack.c.b16 %v354, %v353
      %v362 = vpack.c.b16 %v356, %v355
      %v363 = vpack.c.b16 %v358, %v357
      %v364 = vpack.c.b16 %v360, %v359
      %v385 = vunpack.c.l.b16 %v329
      %v386 = vunpack.c.l.b16 %v330
      %v387 = vunpack.c.l.b16 %v331
      %v388 = vunpack.c.l.b16 %v332
      %v389 = vunpack.c.l.b16 %v333
      %v390 = vunpack.c.l.b16 %v334
      %v391 = vunpack.c.l.b16 %v335
      %v392 = vunpack.c.l.b16 %v336
      %v393 = vunpack.c.l.b16 %v337
      %v394 = vunpack.c.l.b16 %v338
      %v395 = vunpack.c.l.b16 %v339
      %v396 = vunpack.c.l.b16 %v340
      %v397 = vunpack.c.l.b16 %v341
      %v398 = vunpack.c.l.b16 %v342
      %v399 = vunpack.c.l.b16 %v343
      %v400 = vunpack.c.l.b16 %v344
      %v401 = vpack.c.b16 %v386, %v385
      %v402 = vpack.c.b16 %v388, %v387
      %v403 = vpack.c.b16 %v390, %v389
      %v404 = vpack.c.b16 %v392, %v391
      %v405 = vpack.c.b16 %v394, %v393
      %v406 = vpack.c.b16 %v396, %v395
      %v407 = vpack.c.b16 %v398, %v397
      %v408 = vpack.c.b16 %v400, %v399
      %417 = vmatprep.subr.bf16.mxu0 0
      %418 = vmatpush1.bf16.msra.mxu0 %v408
      %419 = vmatprep.subr.bf16.mxu0 0
      %420 = vmatpush1.bf16.msra.mxu0 %v407
      %421 = vmatprep.subr.bf16.mxu0 0
      %422 = vmatpush1.bf16.msra.mxu0 %v406
      %423 = vmatprep.subr.bf16.mxu0 0
      %424 = vmatpush1.bf16.msra.mxu0 %v405
      %425 = vmatprep.subr.bf16.mxu0 0
      %426 = vmatpush1.bf16.msra.mxu0 %v404
      %427 = vmatprep.subr.bf16.mxu0 0
      %428 = vmatpush1.bf16.msra.mxu0 %v403
      %429 = vmatprep.subr.bf16.mxu0 0
      %430 = vmatpush1.bf16.msra.mxu0 %v402
      %431 = vmatprep.subr.bf16.mxu0 0
      %432 = vmatpush1.bf16.msra.mxu0 %v401
      %433 = vmatprep.subr.bf16.mxu0 0
      %434 = vmatpush2.bf16.msra.mxu0 0
      %435 = vmatprep.subr.bf16.mxu0 0
      %436 = vmatpush2.bf16.msra.mxu0 0
      %437 = vmatprep.subr.bf16.mxu0 0
      %438 = vmatpush2.bf16.msra.mxu0 0
      %439 = vmatprep.subr.bf16.mxu0 0
      %440 = vmatpush2.bf16.msra.mxu0 0
      %441 = vmatprep.subr.bf16.mxu0 0
      %442 = vmatpush2.bf16.msra.mxu0 0
      %443 = vmatprep.subr.bf16.mxu0 0
      %444 = vmatpush2.bf16.msra.mxu0 0
      %445 = vmatprep.subr.bf16.mxu0 0
      %446 = vmatpush2.bf16.msra.mxu0 0
      %447 = vmatprep.subr.bf16.mxu0 0
      %448 = vmatpush2.bf16.msra.mxu0 0
      %449 = vmatprep.mubr.bf16.mxu0 0
      %450 = vmatmul.mubr.bf16.gmra.mxu0 %v361
      %v451 = vpop.f32.mrf.mxu0
      %v452 = vadd.f32 0.0, %v451
      %v453 = vpop.f32.mrf.mxu0
      %v454 = vpop.f32.mrf.mxu0
      %v455 = vadd.f32 0.0, %v454
      %v456 = vpop.f32.mrf.mxu0
      %457 = vmatprep.mubr.bf16.mxu0 0
      %458 = vmatmul.mubr.bf16.gmra.mxu0 %v362
      %v459 = vpop.f32.mrf.mxu0
      %v460 = vadd.f32 0.0, %v459
      %v461 = vpop.f32.mrf.mxu0
      %v462 = vpop.f32.mrf.mxu0
      %v463 = vadd.f32 0.0, %v462
      %v464 = vpop.f32.mrf.mxu0
      %465 = vmatprep.mubr.bf16.mxu0 0
      %466 = vmatmul.mubr.bf16.gmra.mxu0 %v363
      %v467 = vpop.f32.mrf.mxu0
      %v468 = vadd.f32 0.0, %v467
      %v469 = vpop.f32.mrf.mxu0
      %v470 = vpop.f32.mrf.mxu0
      %v471 = vadd.f32 0.0, %v470
      %v472 = vpop.f32.mrf.mxu0
      %473 = vmatprep.mubr.bf16.mxu0 0
      %474 = vmatmul.mubr.bf16.gmra.mxu0 %v364
      %v475 = vpop.f32.mrf.mxu0
      %v476 = vadd.f32 0.0, %v475
      %v477 = vpop.f32.mrf.mxu0
      %v478 = vpop.f32.mrf.mxu0
      %v479 = vadd.f32 0.0, %v478
      %v480 = vpop.f32.mrf.mxu0
      %481 = vdwg.mxu0
      %v482 = vadd.f32 %v313, %v452
      %v483 = vadd.f32 %v314, %v455
      %v484 = vadd.f32 %v315, %v460
      %v485 = vadd.f32 %v316, %v463
      %v486 = vadd.f32 %v317, %v468
      %v487 = vadd.f32 %v318, %v471
      %v488 = vadd.f32 %v319, %v476
      %v489 = vadd.f32 %v320, %v479
      %490 = vst [vmem:[#allocation2] sm:$0xff] %v482
      %491 = vst [vmem:[#allocation2 + $0x8] sm:$0xff] %v483
      %492 = vst [vmem:[#allocation2 + $0x10] sm:$0xff] %v484
      %493 = vst [vmem:[#allocation2 + $0x18] sm:$0xff] %v485
      %494 = vst [vmem:[#allocation2 + $0x20] sm:$0xff] %v486
      %495 = vst [vmem:[#allocation2 + $0x28] sm:$0xff] %v487
      %496 = vst [vmem:[#allocation2 + $0x30] sm:$0xff] %v488
      %497 = vst [vmem:[#allocation2 + $0x38] sm:$0xff] %v489
      // Predicated region
      $region41: #{_lambda_.11} parent=35 // pred_check
        %p498 = pneg %p301
      $region42: #{_lambda_.11} parent=35 // pred_check_branch
        %500 = sbr.rel (%p498) target = $region44
      $region43: #{_lambda_.11} parent=35 // pred_region
        %v501 = vld [vmem:[#allocation2] sm:$0xff]
        %v502 = vld [vmem:[#allocation2 + $0x8] sm:$0xff]
        %v503 = vld [vmem:[#allocation2 + $0x10] sm:$0xff]
        %v504 = vld [vmem:[#allocation2 + $0x18] sm:$0xff]
        %v505 = vld [vmem:[#allocation2 + $0x20] sm:$0xff]
        %v506 = vld [vmem:[#allocation2 + $0x28] sm:$0xff]
        %v507 = vld [vmem:[#allocation2 + $0x30] sm:$0xff]
        %v508 = vld [vmem:[#allocation2 + $0x38] sm:$0xff]
        %v509 = vld [vmem:[%s287] sm:$0x1]
        %v511 = vlaneseq
        %v512 = vshrl.u32 %v511, 7
        %v513 = vsub.s32 0, %v512
        %v514 = vrot.slane %v509, %v513
        %v516 = vmul.f32 %v501, %v514
        %v517 = vmul.f32 %v502, %v514
        %v518 = vmul.f32 %v503, %v514
        %v519 = vmul.f32 %v504, %v514
        %v520 = vmul.f32 %v505, %v514
        %v521 = vmul.f32 %v506, %v514
        %v522 = vmul.f32 %v507, %v514
        %v523 = vmul.f32 %v508, %v514
        %v524 = vld [vmem:[%s290] sm:$0x1]
        %v526 = vlaneseq
        %v527 = vshrl.u32 %v526, 7
        %v528 = vsub.s32 0, %v527
        %v529 = vrot.slane %v524, %v528
        %v531 = vadd.f32 %v516, %v529
        %v532 = vadd.f32 %v517, %v529
        %v533 = vadd.f32 %v518, %v529
        %v534 = vadd.f32 %v519, %v529
        %v535 = vadd.f32 %v520, %v529
        %v536 = vadd.f32 %v521, %v529
        %v537 = vadd.f32 %v522, %v529
        %v538 = vadd.f32 %v523, %v529
        %v539 = vmax.f32 %v531, 0.0
        %v540 = vmax.f32 %v532, 0.0
        %v541 = vmax.f32 %v533, 0.0
        %v542 = vmax.f32 %v534, 0.0
        %v543 = vmax.f32 %v535, 0.0
        %v544 = vmax.f32 %v536, 0.0
        %v545 = vmax.f32 %v537, 0.0
        %v546 = vmax.f32 %v538, 0.0
        %v547 = vpack.c.bf16 %v540, %v539
        %v548 = vpack.c.bf16 %v542, %v541
        %v549 = vpack.c.bf16 %v544, %v543
        %v550 = vpack.c.bf16 %v546, %v545
        %v555 = vunpack.c.l.b16 %v547
        %v556 = vunpack.c.h.b16 %v547
        %v557 = vunpack.c.l.b16 %v548
        %v558 = vunpack.c.h.b16 %v548
        %v559 = vunpack.c.l.b16 %v549
        %v560 = vunpack.c.h.b16 %v549
        %v561 = vunpack.c.l.b16 %v550
        %v562 = vunpack.c.h.b16 %v550
        %v563 = vpack.c.b16 %v555, %v555
        %v564 = vpack.c.b16 %v556, %v556
        %v565 = vpack.c.b16 %v557, %v557
        %v566 = vpack.c.b16 %v558, %v558
        %v567 = vpack.c.b16 %v559, %v559
        %v568 = vpack.c.b16 %v560, %v560
        %v569 = vpack.c.b16 %v561, %v561
        %v570 = vpack.c.b16 %v562, %v562
        %579 = vst [vmem:[%s298] sm:$0xf] %v563
        %580 = vst [vmem:[%s298 + $0x4] sm:$0xf] %v564
        %581 = vst [vmem:[%s298 + $0x8] sm:$0xf] %v565
        %582 = vst [vmem:[%s298 + $0xc] sm:$0xf] %v566
        %583 = vst [vmem:[%s298 + $0x10] sm:$0xf] %v567
        %584 = vst [vmem:[%s298 + $0x14] sm:$0xf] %v568
        %585 = vst [vmem:[%s298 + $0x18] sm:$0xf] %v569
        %586 = vst [vmem:[%s298 + $0x1c] sm:$0xf] %v570
      $region44: #{_lambda_.11} parent=35 // pred_fallthru
        _
      %s587 = smul.u32 8, %s20
      %p588 = scmp.lt.s32.totalorder %s587, 15
      %s589 = scalar_select %p588, %s587, 15
      %p590 = scmp.lt.s32.totalorder %s21, 0
      %s591 = scalar_select %p590, %s21, 0
      %s592 = sadd.s32 %s591, %s589
      %s593 = smul.addr %s592, 4
      %s594 = scalar_lea.vmem %s4, %s593
      // Predicated region
      $region45: #{_lambda_.11} parent=35 // pred_check
        %p595 = pneg %p162
      $region46: #{_lambda_.11} parent=35 // pred_check_branch
        %597 = sbr.rel (%p595) target = $region48
      $region47: #{_lambda_.11} parent=35 // pred_region
        %s598 = smul.u32 8, %s20
      $region48: #{_lambda_.11} parent=35 // pred_fallthru
        _
    $region36: #{_lambda_.11} parent=5 // pred_fallthru
      _
    %p599 = scmp.le.s32.totalorder 2, %s10
    // Predicated region
    $region49: #{_lambda_.11} parent=5 // pred_check
      %p600 = pneg %p599
    $region50: #{_lambda_.11} parent=5 // pred_check_branch
      %602 = sbr.rel (%p600) target = $region52
    $region51: #{_lambda_.11} parent=5 // pred_region
      %s603 = ssub.s32 %s10, 2
      // Predicated region
      $region53: #{_lambda_.11} parent=51 // pred_check
        %p604 = pneg %p168
      $region54: #{_lambda_.11} parent=51 // pred_check_branch
        %606 = sbr.rel (%p604) target = $region56
      $region55: #{_lambda_.11} parent=51 // pred_region
        %s607 = smul.u32 8, %s23
        %p608 = scmp.lt.s32.totalorder %s607, 15
        %s609 = scalar_select %p608, %s607, 15
        %p610 = scmp.lt.s32.totalorder %s24, 0
        %s611 = scalar_select %p610, %s24, 0
        %s612 = sadd.s32 %s611, %s609
        %s613 = smul.addr %s612, 4
        %s614 = scalar_lea.vmem %s4, %s613
      $region56: #{_lambda_.11} parent=51 // pred_fallthru
        _
    $region52: #{_lambda_.11} parent=5 // pred_fallthru
      _
  $region6: #{_lambda_.11} parent=0 // loop_footer
    %s14 = sadd.s32 1, %s10
  $region7: #{_lambda_.11} parent=0 // loop_footer_branch
    %9 = sbr.rel target = $region3
  $region8: #{_lambda_.11} parent=0 // loop_exit
    _

// kernel: _lambda_.8
$region0: #{_lambda_.8}
  #allocation0 [shape = 'u32[]', space=smem, size = 0x4, offset = 0x4, fixed_abs, tag = 'smem constant byte address 0x4 - core index']
  #allocation1 [shape = 'u32[144,128]{1,0:T(1,128)}', space=vmem, size = 0x12000, scoped, tag = 'internal scratch']
  #allocation2 [shape = 'f32[64,128]{1,0:T(8,128)}', space=vmem, size = 0x8000, scoped, tag = 'scratch operand']
  %s0 = inlined_call_operand.vmem [shape: bf16[128,1152], index: 0, kind: input, shape index: {}]
  %s1 = inlined_call_operand.vmem [shape: bf16[1152,128], index: 1, kind: input, shape index: {}]
  %s2 = inlined_call_operand.vmem [shape: f32[1,128], index: 2, kind: input, shape index: {}]
  %s3 = inlined_call_operand.vmem [shape: f32[1,128], index: 3, kind: input, shape index: {}]
  %s4 = inlined_call_operand.vmem [shape: bf16[128,128], index: 4, kind: output, shape index: {}]
  %s5 = sld [smem:[#allocation0]]
  $region57: #{_lambda_.8} parent=0
    _
  %s7 = ssub.s32 1, %s5
  %s8 = scalar_select 0, %s7, %s5
  loop: start=0, step=1, limit=4
  $region2: #{_lambda_.8} parent=0 // loop_pre_header
    _
  $region3: #{_lambda_.8} parent=0 // loop_header
    %s10 = sphi 0, %s14
    %p11 = scmp.ge.s32.totalorder %s10, 4
    %s17 = sphi 0, %s36
    %s18 = sphi 0, %s32
    %s19 = sphi 0, %s28
    %s20 = sphi 0, %s17
    %s21 = sphi 0, %s18
    %s22 = sphi 0, %s19
    %s23 = sphi 0, %s20
    %s24 = sphi 0, %s21
    %s25 = sphi 0, %s22
    %s41 = sphi 0, %s43
    %s44 = sphi 0, %s41
    %s45 = sphi 0, %s44
    %s61 = sphi 0, %s45
    %s69 = sphi 0, %s71
    %s72 = sphi 0, %s69
    %s73 = sphi 0, %s72
    %s89 = sphi 0, %s73
    %s95 = sphi 0, %s97
    %s98 = sphi 0, %s95
    %s99 = sphi 0, %s98
    %s115 = sphi 0, %s99
    %s121 = sphi 0, %s123
    %s124 = sphi 0, %s121
    %s125 = sphi 0, %s124
    %s141 = sphi 0, %s125
    %s149 = sphi 0, %s151
    %s152 = sphi 0, %s149
    %s153 = sphi 0, %s152
    %s169 = sphi 0, %s153
  $region4: #{_lambda_.8} parent=0 // loop_header_branch
    %13 = sbr.rel (%p11) target = $region8
  $region5: #{_lambda_.8} parent=0 // loop_body
    %s15 = ssub.s32 %s10, 1
    %s16 = ssub.s32 %s10, 2
    %s26 = sadd.s32 1, %s19
    %p27 = scmp.ge.s32.totalorder %s26, 1
    %s28 = scalar_select %p27, 0, %s26
    %s29 = sadd.s32 1, %s18
    %s30 = scalar_select %p27, %s29, %s18
    %p31 = scmp.ge.s32.totalorder %s30, 1
    %s32 = scalar_select %p31, 0, %s30
    %s33 = sadd.s32 1, %s17
    %s34 = scalar_select %p31, %s33, %s17
    %p35 = scmp.ge.s32.totalorder %s34, 2
    %s36 = scalar_select %p35, 0, %s34
    %s37 = ssub.s32 %s17, %s36
    %s38 = ssub.s32 %s19, %s28
    %s39 = sor.u32 %s37, %s38
    %p40 = scmp.eq.s32.totalorder %s39, 0
    %s42 = sadd.s32 %s41, 1
    %s43 = scalar_select %p40, %s41, %s42
    %p46 = pneg %p40
    %p47 = scmp.eq.s32.totalorder %s10, 1
    %p48 = por %p46, %p47
    %p49 = scmp.ne.s32.totalorder %s41, %s44
    %p50 = scmp.eq.s32.totalorder %s10, 0
    %p51 = por %p49, %p50
    %p52 = scmp.ne.s32.totalorder %s41, %s44
    %p53 = scmp.eq.s32.totalorder %s15, 1
    %p54 = por %p52, %p53
    %p55 = scmp.ne.s32.totalorder %s44, %s45
    %p56 = scmp.eq.s32.totalorder %s15, 0
    %p57 = por %p55, %p56
    %p58 = scmp.ne.s32.totalorder %s44, %s45
    %p59 = scmp.eq.s32.totalorder %s16, 1
    %p60 = por %p58, %p59
    %p62 = scmp.ne.s32.totalorder %s45, %s61
    %p63 = scmp.eq.s32.totalorder %s16, 0
    %p64 = por %p62, %p63
    %s65 = ssub.s32 %s19, %s28
    %s66 = ssub.s32 %s18, %s32
    %s67 = sor.u32 %s65, %s66
    %p68 = scmp.eq.s32.totalorder %s67, 0
    %s70 = sadd.s32 %s69, 1
    %s71 = scalar_select %p68, %s69, %s70
    %p74 = pneg %p68
    %p75 = scmp.eq.s32.totalorder %s10, 1
    %p76 = por %p74, %p75
    %p77 = scmp.ne.s32.totalorder %s69, %s72
    %p78 = scmp.eq.s32.totalorder %s10, 0
    %p79 = por %p77, %p78
    %p80 = scmp.ne.s32.totalorder %s69, %s72
    %p81 = scmp.eq.s32.totalorder %s15, 1
    %p82 = por %p80, %p81
    %p83 = scmp.ne.s32.totalorder %s72, %s73
    %p84 = scmp.eq.s32.totalorder %s15, 0
    %p85 = por %p83, %p84
    %p86 = scmp.ne.s32.totalorder %s72, %s73
    %p87 = scmp.eq.s32.totalorder %s16, 1
    %p88 = por %p86, %p87
    %p90 = scmp.ne.s32.totalorder %s73, %s89
    %p91 = scmp.eq.s32.totalorder %s16, 0
    %p92 = por %p90, %p91
    %s93 = ssub.s32 %s18, %s32
    %p94 = scmp.eq.s32.totalorder %s93, 0
    %s96 = sadd.s32 %s95, 1
    %s97 = scalar_select %p94, %s95, %s96
    %p100 = pneg %p94
    %p101 = scmp.eq.s32.totalorder %s10, 1
    %p102 = por %p100, %p101
    %p103 = scmp.ne.s32.totalorder %s95, %s98
    %p104 = scmp.eq.s32.totalorder %s10, 0
    %p105 = por %p103, %p104
    %p106 = scmp.ne.s32.totalorder %s95, %s98
    %p107 = scmp.eq.s32.totalorder %s15, 1
    %p108 = por %p106, %p107
    %p109 = scmp.ne.s32.totalorder %s98, %s99
    %p110 = scmp.eq.s32.totalorder %s15, 0
    %p111 = por %p109, %p110
    %p112 = scmp.ne.s32.totalorder %s98, %s99
    %p113 = scmp.eq.s32.totalorder %s16, 1
    %p114 = por %p112, %p113
    %p116 = scmp.ne.s32.totalorder %s99, %s115
    %p117 = scmp.eq.s32.totalorder %s16, 0
    %p118 = por %p116, %p117
    %s119 = ssub.s32 %s18, %s32
    %p120 = scmp.eq.s32.totalorder %s119, 0
    %s122 = sadd.s32 %s121, 1
    %s123 = scalar_select %p120, %s121, %s122
    %p126 = pneg %p120
    %p127 = scmp.eq.s32.totalorder %s10, 1
    %p128 = por %p126, %p127
    %p129 = scmp.ne.s32.totalorder %s121, %s124
    %p130 = scmp.eq.s32.totalorder %s10, 0
    %p131 = por %p129, %p130
    %p132 = scmp.ne.s32.totalorder %s121, %s124
    %p133 = scmp.eq.s32.totalorder %s15, 1
    %p134 = por %p132, %p133
    %p135 = scmp.ne.s32.totalorder %s124, %s125
    %p136 = scmp.eq.s32.totalorder %s15, 0
    %p137 = por %p135, %p136
    %p138 = scmp.ne.s32.totalorder %s124, %s125
    %p139 = scmp.eq.s32.totalorder %s16, 1
    %p140 = por %p138, %p139
    %p142 = scmp.ne.s32.totalorder %s125, %s141
    %p143 = scmp.eq.s32.totalorder %s16, 0
    %p144 = por %p142, %p143
    %s145 = ssub.s32 %s17, %s36
    %s146 = ssub.s32 %s18, %s32
    %s147 = sor.u32 %s145, %s146
    %p148 = scmp.eq.s32.totalorder %s147, 0
    %s150 = sadd.s32 %s149, 1
    %s151 = scalar_select %p148, %s149, %s150
    %p154 = pneg %p148
    %p155 = scmp.eq.s32.totalorder %s10, 1
    %p156 = por %p154, %p155
    %p157 = scmp.ne.s32.totalorder %s149, %s152
    %p158 = scmp.eq.s32.totalorder %s10, 0
    %p159 = por %p157, %p158
    %p160 = scmp.ne.s32.totalorder %s149, %s152
    %p161 = scmp.eq.s32.totalorder %s15, 1
    %p162 = por %p160, %p161
    %p163 = scmp.ne.s32.totalorder %s152, %s153
    %p164 = scmp.eq.s32.totalorder %s15, 0
    %p165 = por %p163, %p164
    %p166 = scmp.ne.s32.totalorder %s152, %s153
    %p167 = scmp.eq.s32.totalorder %s16, 1
    %p168 = por %p166, %p167
    %p170 = scmp.ne.s32.totalorder %s153, %s169
    %p171 = scmp.eq.s32.totalorder %s16, 0
    %p172 = por %p170, %p171
    %p173 = scmp.le.s32.totalorder 1, %s10
    %p174 = scmp.lt.s32.totalorder %s10, 3
    %p175 = pnand %p173, %p174
    %p176 = pneg %p175
    // Predicated region
    $region9: #{_lambda_.8} parent=5 // pred_check
      _
    $region10: #{_lambda_.8} parent=5 // pred_check_branch
      %178 = sbr.rel (%p175) target = $region12
    $region11: #{_lambda_.8} parent=5 // pred_region
      %s179 = ssub.s32 %s10, 1
      // Predicated region
      $region13: #{_lambda_.8} parent=11 // pred_check
        %p180 = pneg %p85
      $region14: #{_lambda_.8} parent=11 // pred_check_branch
        %182 = sbr.rel (%p180) target = $region16
      $region15: #{_lambda_.8} parent=11 // pred_region
        %s183 = smul.u32 144, %s22
        %p184 = scmp.lt.s32.totalorder %s183, 143
        %s185 = scalar_select %p184, %s183, 143
        %p186 = scmp.lt.s32.totalorder %s21, 0
        %s187 = scalar_select %p186, %s21, 0
        %s188 = sadd.s32 %s187, %s185
        %s189 = smul.addr %s188, 4
        %s190 = scalar_lea.vmem %s1, %s189
        %s191 = smul.u32 144, %s22
      $region16: #{_lambda_.8} parent=11 // pred_fallthru
        _
      // Predicated region
      $region17: #{_lambda_.8} parent=11 // pred_check
        %p192 = pneg %p111
      $region18: #{_lambda_.8} parent=11 // pred_check_branch
        %194 = sbr.rel (%p192) target = $region20
      $region19: #{_lambda_.8} parent=11 // pred_region
        %p195 = scmp.lt.s32.totalorder %s21, 0
        %s196 = scalar_select %p195, %s21, 0
        %s197 = scalar_lea.vmem %s2, %s196
      $region20: #{_lambda_.8} parent=11 // pred_fallthru
        _
      // Predicated region
      $region21: #{_lambda_.8} parent=11 // pred_check
        %p198 = pneg %p137
      $region22: #{_lambda_.8} parent=11 // pred_check_branch
        %200 = sbr.rel (%p198) target = $region24
      $region23: #{_lambda_.8} parent=11 // pred_region
        %p201 = scmp.lt.s32.totalorder %s21, 0
        %s202 = scalar_select %p201, %s21, 0
        %s203 = scalar_lea.vmem %s3, %s202
      $region24: #{_lambda_.8} parent=11 // pred_fallthru
        _
    $region12: #{_lambda_.8} parent=5 // pred_fallthru
      _
    %p204 = scmp.lt.s32.totalorder %s10, 2
    // Predicated region
    $region25: #{_lambda_.8} parent=5 // pred_check
      %p205 = pneg %p204
    $region26: #{_lambda_.8} parent=5 // pred_check_branch
      %207 = sbr.rel (%p205) target = $region28
    $region27: #{_lambda_.8} parent=5 // pred_region
      // Predicated region
      $region29: #{_lambda_.8} parent=27 // pred_check
        %p208 = pneg %p51
      $region30: #{_lambda_.8} parent=27 // pred_check_branch
        %210 = sbr.rel (%p208) target = $region32
      $region31: #{_lambda_.8} parent=27 // pred_region
        %s211 = smul.u32 8, %s17
        %s212 = smul.u32 9, %s19
        %p213 = scmp.lt.s32.totalorder %s211, 15
        %s214 = scalar_select %p213, %s211, 15
        %p215 = scmp.lt.s32.totalorder %s212, 8
        %s216 = scalar_select %p215, %s212, 8
        %s217 = smul.addr %s214, 9
        %s218 = sadd.s32 %s216, %s217
        %s219 = smul.addr %s218, 4
        %s220 = scalar_lea.vmem %s0, %s219
        %s221 = smul.u32 8, %s17
        %s222 = smul.u32 9, %s19
      $region32: #{_lambda_.8} parent=27 // pred_fallthru
        _
    $region28: #{_lambda_.8} parent=5 // pred_fallthru
      _
    %p223 = scmp.le.s32.totalorder 1, %s10
    %p224 = scmp.lt.s32.totalorder %s10, 3
    %p225 = pnand %p223, %p224
    %p226 = pneg %p225
    // Predicated region
    $region33: #{_lambda_.8} parent=5 // pred_check
      _
    $region34: #{_lambda_.8} parent=5 // pred_check_branch
      %228 = sbr.rel (%p225) target = $region36
    $region35: #{_lambda_.8} parent=5 // pred_region
      %s229 = ssub.s32 %s10, 1
      %s230 = smul.u32 8, %s20
      %s231 = smul.u32 9, %s22
      %p232 = scmp.lt.s32.totalorder %s230, 15
      %s233 = scalar_select %p232, %s230, 15
      %p234 = scmp.lt.s32.totalorder %s231, 8
      %s235 = scalar_select %p234, %s231, 8
      %s236 = smul.addr %s233, 9
      %s237 = sadd.s32 %s235, %s236
      %s238 = smul.addr %s237, 4
      %s239 = scalar_lea.vmem %s0, %s238
      %p240 = pneg %p57
      %p241 = pneg %p54
      %s242 = smul.u32 144, %s22
      %p243 = scmp.lt.s32.totalorder %s242, 143
      %s244 = scalar_select %p243, %s242, 143
      %p245 = scmp.lt.s32.totalorder %s21, 0
      %s246 = scalar_select %p245, %s21, 0
      %s247 = sadd.s32 %s246, %s244
      %s248 = smul.addr %s247, 4
      %s249 = scalar_lea.vmem %s1, %s248
      %p250 = pneg %p85
      %p251 = pneg %p82
      %p252 = scmp.lt.s32.totalorder %s21, 0
      %s253 = scalar_select %p252, %s21, 0
      %s254 = scalar_lea.vmem %s2, %s253
      %p255 = pneg %p111
      %p256 = pneg %p108
      %p257 = scmp.lt.s32.totalorder %s21, 0
      %s258 = scalar_select %p257, %s21, 0
      %s259 = scalar_lea.vmem %s3, %s258
      %p260 = pneg %p137
      %p261 = pneg %p134
      %p262 = pneg %p165
      %p263 = pneg %p162
      %s264 = smul.u32 8, %s20
      %p265 = scmp.lt.s32.totalorder %s264, 15
      %s266 = scalar_select %p265, %s264, 15
      %p267 = scmp.lt.s32.totalorder %s21, 0
      %s268 = scalar_select %p267, %s21, 0
      %s269 = sadd.s32 %s268, %s266
      %s270 = smul.addr %s269, 4
      %s271 = scalar_lea.vmem %s4, %s270
      %s272 = smul.u32 8, %s20
      %s273 = smul.u32 9, %s22
      %p274 = scmp.lt.s32.totalorder %s272, 15
      %s275 = scalar_select %p274, %s272, 15
      %p276 = scmp.lt.s32.totalorder %s273, 8
      %s277 = scalar_select %p276, %s273, 8
      %s278 = smul.addr %s275, 9
      %s279 = sadd.s32 %s277, %s278
      %s280 = smul.addr %s279, 4
      %s281 = scalar_lea.vmem %s0, %s280
      %s282 = smul.u32 8, %s20
      %s283 = smul.u32 9, %s22
      %s284 = smul.u32 144, %s22
      %p285 = scmp.lt.s32.totalorder %s284, 143
      %s286 = scalar_select %p285, %s284, 143
      %p287 = scmp.lt.s32.totalorder %s21, 0
      %s288 = scalar_select %p287, %s21, 0
      %s289 = sadd.s32 %s288, %s286
      %s290 = smul.addr %s289, 4
      %s291 = scalar_lea.vmem %s1, %s290
      %s292 = smul.u32 144, %s22
      %p293 = scmp.lt.s32.totalorder %s21, 0
      %s294 = scalar_select %p293, %s21, 0
      %s295 = scalar_lea.vmem %s2, %s294
      %p296 = scmp.lt.s32.totalorder %s21, 0
      %s297 = scalar_select %p296, %s21, 0
      %s298 = scalar_lea.vmem %s3, %s297
      %s299 = smul.u32 8, %s20
      %p300 = scmp.lt.s32.totalorder %s299, 15
      %s301 = scalar_select %p300, %s299, 15
      %p302 = scmp.lt.s32.totalorder %s21, 0
      %s303 = scalar_select %p302, %s21, 0
      %s304 = sadd.s32 %s303, %s301
      %s305 = smul.addr %s304, 4
      %s306 = scalar_lea.vmem %s4, %s305
      %s307 = smul.u32 8, %s20
      %p309 = scmp.eq.s32.totalorder %s22, 0
      // Predicated region
      $region37: #{_lambda_.8} parent=35 // pred_check
        %p310 = pneg %p309
      $region38: #{_lambda_.8} parent=35 // pred_check_branch
        %312 = sbr.rel (%p310) target = $region40
      $region39: #{_lambda_.8} parent=35 // pred_region
        %313 = vst [vmem:[#allocation2] sm:$0xff] 0.0
        %314 = vst [vmem:[#allocation2 + $0x8] sm:$0xff] 0.0
        %315 = vst [vmem:[#allocation2 + $0x10] sm:$0xff] 0.0
        %316 = vst [vmem:[#allocation2 + $0x18] sm:$0xff] 0.0
        %317 = vst [vmem:[#allocation2 + $0x20] sm:$0xff] 0.0
        %318 = vst [vmem:[#allocation2 + $0x28] sm:$0xff] 0.0
        %319 = vst [vmem:[#allocation2 + $0x30] sm:$0xff] 0.0
        %320 = vst [vmem:[#allocation2 + $0x38] sm:$0xff] 0.0
      $region40: #{_lambda_.8} parent=35 // pred_fallthru
        _
      %v321 = vld [vmem:[#allocation2] sm:$0xff]
      %v322 = vld [vmem:[#allocation2 + $0x8] sm:$0xff]
      %v323 = vld [vmem:[#allocation2 + $0x10] sm:$0xff]
      %v324 = vld [vmem:[#allocation2 + $0x18] sm:$0xff]
      %v325 = vld [vmem:[#allocation2 + $0x20] sm:$0xff]
      %v326 = vld [vmem:[#allocation2 + $0x28] sm:$0xff]
      %v327 = vld [vmem:[#allocation2 + $0x30] sm:$0xff]
      %v328 = vld [vmem:[#allocation2 + $0x38] sm:$0xff]
      %v329 = vld [vmem:[%s281] sm:$0xff]
      %v330 = vld [vmem:[%s281 + $0x8] sm:$0xff]
      %v331 = vld [vmem:[%s281 + $0x10] sm:$0xff]
      %v332 = vld [vmem:[%s281 + $0x18] sm:$0xff]
      %v333 = vld [vmem:[%s281 + $0x20] sm:$0xf]
      %v334 = vld [vmem:[%s281 + $0x24] sm:$0xff]
      %v335 = vld [vmem:[%s281 + $0x2c] sm:$0xff]
      %v336 = vld [vmem:[%s281 + $0x34] sm:$0xff]
      %v337 = vld [vmem:[%s281 + $0x3c] sm:$0xff]
      %v338 = vld [vmem:[%s281 + $0x44] sm:$0xf]
      %v339 = vld [vmem:[%s281 + $0x48] sm:$0xff]
      %v340 = vld [vmem:[%s281 + $0x50] sm:$0xff]
      %v341 = vld [vmem:[%s281 + $0x58] sm:$0xff]
      %v342 = vld [vmem:[%s281 + $0x60] sm:$0xff]
      %v343 = vld [vmem:[%s281 + $0x68] sm:$0xf]
      %v344 = vld [vmem:[%s281 + $0x6c] sm:$0xff]
      %v345 = vld [vmem:[%s281 + $0x74] sm:$0xff]
      %v346 = vld [vmem:[%s281 + $0x7c] sm:$0xff]
      %v347 = vld [vmem:[%s281 + $0x84] sm:$0xff]
      %v348 = vld [vmem:[%s281 + $0x8c] sm:$0xf]
      %v349 = vld [vmem:[%s281 + $0x90] sm:$0xff]
      %v350 = vld [vmem:[%s281 + $0x98] sm:$0xff]
      %v351 = vld [vmem:[%s281 + $0xa0] sm:$0xff]
      %v352 = vld [vmem:[%s281 + $0xa8] sm:$0xff]
      %v353 = vld [vmem:[%s281 + $0xb0] sm:$0xf]
      %v354 = vld [vmem:[%s281 + $0xb4] sm:$0xff]
      %v355 = vld [vmem:[%s281 + $0xbc] sm:$0xff]
      %v356 = vld [vmem:[%s281 + $0xc4] sm:$0xff]
      %v357 = vld [vmem:[%s281 + $0xcc] sm:$0xff]
      %v358 = vld [vmem:[%s281 + $0xd4] sm:$0xf]
      %v359 = vld [vmem:[%s281 + $0xd8] sm:$0xff]
      %v360 = vld [vmem:[%s281 + $0xe0] sm:$0xff]
      %v361 = vld [vmem:[%s281 + $0xe8] sm:$0xff]
      %v362 = vld [vmem:[%s281 + $0xf0] sm:$0xff]
      %v363 = vld [vmem:[%s281 + $0xf8] sm:$0xf]
      %v364 = vld [vmem:[%s281 + $0xfc] sm:$0xff]
      %v365 = vld [vmem:[%s281 + $0x104] sm:$0xff]
      %v366 = vld [vmem:[%s281 + $0x10c] sm:$0xff]
      %v367 = vld [vmem:[%s281 + $0x114] sm:$0xff]
      %v368 = vld [vmem:[%s281 + $0x11c] sm:$0xf]
      %v369 = vld [vmem:[%s291] sm:$0xf]
      %v370 = vld [vmem:[%s291 + $0x4] sm:$0xf]
      %v371 = vld [vmem:[%s291 + $0x8] sm:$0xf]
      %v372 = vld [vmem:[%s291 + $0xc] sm:$0xf]
      %v373 = vld [vmem:[%s291 + $0x10] sm:$0xf]
      %v374 = vld [vmem:[%s291 + $0x14] sm:$0xf]
      %v375 = vld [vmem:[%s291 + $0x18] sm:$0xf]
      %v376 = vld [vmem:[%s291 + $0x1c] sm:$0xf]
      %v377 = vld [vmem:[%s291 + $0x20] sm:$0xf]
      %v378 = vld [vmem:[%s291 + $0x24] sm:$0xf]
      %v379 = vld [vmem:[%s291 + $0x28] sm:$0xf]
      %v380 = vld [vmem:[%s291 + $0x2c] sm:$0xf]
      %v381 = vld [vmem:[%s291 + $0x30] sm:$0xf]
      %v382 = vld [vmem:[%s291 + $0x34] sm:$0xf]
      %v383 = vld [vmem:[%s291 + $0x38] sm:$0xf]
      %v384 = vld [vmem:[%s291 + $0x3c] sm:$0xf]
      %v385 = vld [vmem:[%s291 + $0x40] sm:$0xf]
      %v386 = vld [vmem:[%s291 + $0x44] sm:$0xf]
      %v387 = vld [vmem:[%s291 + $0x48] sm:$0xf]
      %v388 = vld [vmem:[%s291 + $0x4c] sm:$0xf]
      %v389 = vld [vmem:[%s291 + $0x50] sm:$0xf]
      %v390 = vld [vmem:[%s291 + $0x54] sm:$0xf]
      %v391 = vld [vmem:[%s291 + $0x58] sm:$0xf]
      %v392 = vld [vmem:[%s291 + $0x5c] sm:$0xf]
      %v393 = vld [vmem:[%s291 + $0x60] sm:$0xf]
      %v394 = vld [vmem:[%s291 + $0x64] sm:$0xf]
      %v395 = vld [vmem:[%s291 + $0x68] sm:$0xf]
      %v396 = vld [vmem:[%s291 + $0x6c] sm:$0xf]
      %v397 = vld [vmem:[%s291 + $0x70] sm:$0xf]
      %v398 = vld [vmem:[%s291 + $0x74] sm:$0xf]
      %v399 = vld [vmem:[%s291 + $0x78] sm:$0xf]
      %v400 = vld [vmem:[%s291 + $0x7c] sm:$0xf]
      %v401 = vld [vmem:[%s291 + $0x80] sm:$0xf]
      %v402 = vld [vmem:[%s291 + $0x84] sm:$0xf]
      %v403 = vld [vmem:[%s291 + $0x88] sm:$0xf]
      %v404 = vld [vmem:[%s291 + $0x8c] sm:$0xf]
      %v405 = vld [vmem:[%s291 + $0x90] sm:$0xf]
      %v406 = vld [vmem:[%s291 + $0x94] sm:$0xf]
      %v407 = vld [vmem:[%s291 + $0x98] sm:$0xf]
      %v408 = vld [vmem:[%s291 + $0x9c] sm:$0xf]
      %v409 = vld [vmem:[%s291 + $0xa0] sm:$0xf]
      %v410 = vld [vmem:[%s291 + $0xa4] sm:$0xf]
      %v411 = vld [vmem:[%s291 + $0xa8] sm:$0xf]
      %v412 = vld [vmem:[%s291 + $0xac] sm:$0xf]
      %v413 = vld [vmem:[%s291 + $0xb0] sm:$0xf]
      %v414 = vld [vmem:[%s291 + $0xb4] sm:$0xf]
      %v415 = vld [vmem:[%s291 + $0xb8] sm:$0xf]
      %v416 = vld [vmem:[%s291 + $0xbc] sm:$0xf]
      %v417 = vld [vmem:[%s291 + $0xc0] sm:$0xf]
      %v418 = vld [vmem:[%s291 + $0xc4] sm:$0xf]
      %v419 = vld [vmem:[%s291 + $0xc8] sm:$0xf]
      %v420 = vld [vmem:[%s291 + $0xcc] sm:$0xf]
      %v421 = vld [vmem:[%s291 + $0xd0] sm:$0xf]
      %v422 = vld [vmem:[%s291 + $0xd4] sm:$0xf]
      %v423 = vld [vmem:[%s291 + $0xd8] sm:$0xf]
      %v424 = vld [vmem:[%s291 + $0xdc] sm:$0xf]
      %v425 = vld [vmem:[%s291 + $0xe0] sm:$0xf]
      %v426 = vld [vmem:[%s291 + $0xe4] sm:$0xf]
      %v427 = vld [vmem:[%s291 + $0xe8] sm:$0xf]
      %v428 = vld [vmem:[%s291 + $0xec] sm:$0xf]
      %v429 = vld [vmem:[%s291 + $0xf0] sm:$0xf]
      %v430 = vld [vmem:[%s291 + $0xf4] sm:$0xf]
      %v431 = vld [vmem:[%s291 + $0xf8] sm:$0xf]
      %v432 = vld [vmem:[%s291 + $0xfc] sm:$0xf]
      %v433 = vld [vmem:[%s291 + $0x100] sm:$0xf]
      %v434 = vld [vmem:[%s291 + $0x104] sm:$0xf]
      %v435 = vld [vmem:[%s291 + $0x108] sm:$0xf]
      %v436 = vld [vmem:[%s291 + $0x10c] sm:$0xf]
      %v437 = vld [vmem:[%s291 + $0x110] sm:$0xf]
      %v438 = vld [vmem:[%s291 + $0x114] sm:$0xf]
      %v439 = vld [vmem:[%s291 + $0x118] sm:$0xf]
      %v440 = vld [vmem:[%s291 + $0x11c] sm:$0xf]
      %v441 = vld [vmem:[%s291 + $0x120] sm:$0xf]
      %v442 = vld [vmem:[%s291 + $0x124] sm:$0xf]
      %v443 = vld [vmem:[%s291 + $0x128] sm:$0xf]
      %v444 = vld [vmem:[%s291 + $0x12c] sm:$0xf]
      %v445 = vld [vmem:[%s291 + $0x130] sm:$0xf]
      %v446 = vld [vmem:[%s291 + $0x134] sm:$0xf]
      %v447 = vld [vmem:[%s291 + $0x138] sm:$0xf]
      %v448 = vld [vmem:[%s291 + $0x13c] sm:$0xf]
      %v449 = vld [vmem:[%s291 + $0x140] sm:$0xf]
      %v450 = vld [vmem:[%s291 + $0x144] sm:$0xf]
      %v451 = vld [vmem:[%s291 + $0x148] sm:$0xf]
      %v452 = vld [vmem:[%s291 + $0x14c] sm:$0xf]
      %v453 = vld [vmem:[%s291 + $0x150] sm:$0xf]
      %v454 = vld [vmem:[%s291 + $0x154] sm:$0xf]
      %v455 = vld [vmem:[%s291 + $0x158] sm:$0xf]
      %v456 = vld [vmem:[%s291 + $0x15c] sm:$0xf]
      %v457 = vld [vmem:[%s291 + $0x160] sm:$0xf]
      %v458 = vld [vmem:[%s291 + $0x164] sm:$0xf]
      %v459 = vld [vmem:[%s291 + $0x168] sm:$0xf]
      %v460 = vld [vmem:[%s291 + $0x16c] sm:$0xf]
      %v461 = vld [vmem:[%s291 + $0x170] sm:$0xf]
      %v462 = vld [vmem:[%s291 + $0x174] sm:$0xf]
      %v463 = vld [vmem:[%s291 + $0x178] sm:$0xf]
      %v464 = vld [vmem:[%s291 + $0x17c] sm:$0xf]
      %v465 = vld [vmem:[%s291 + $0x180] sm:$0xf]
      %v466 = vld [vmem:[%s291 + $0x184] sm:$0xf]
      %v467 = vld [vmem:[%s291 + $0x188] sm:$0xf]
      %v468 = vld [vmem:[%s291 + $0x18c] sm:$0xf]
      %v469 = vld [vmem:[%s291 + $0x190] sm:$0xf]
      %v470 = vld [vmem:[%s291 + $0x194] sm:$0xf]
      %v471 = vld [vmem:[%s291 + $0x198] sm:$0xf]
      %v472 = vld [vmem:[%s291 + $0x19c] sm:$0xf]
      %v473 = vld [vmem:[%s291 + $0x1a0] sm:$0xf]
      %v474 = vld [vmem:[%s291 + $0x1a4] sm:$0xf]
      %v475 = vld [vmem:[%s291 + $0x1a8] sm:$0xf]
      %v476 = vld [vmem:[%s291 + $0x1ac] sm:$0xf]
      %v477 = vld [vmem:[%s291 + $0x1b0] sm:$0xf]
      %v478 = vld [vmem:[%s291 + $0x1b4] sm:$0xf]
      %v479 = vld [vmem:[%s291 + $0x1b8] sm:$0xf]
      %v480 = vld [vmem:[%s291 + $0x1bc] sm:$0xf]
      %v481 = vld [vmem:[%s291 + $0x1c0] sm:$0xf]
      %v482 = vld [vmem:[%s291 + $0x1c4] sm:$0xf]
      %v483 = vld [vmem:[%s291 + $0x1c8] sm:$0xf]
      %v484 = vld [vmem:[%s291 + $0x1cc] sm:$0xf]
      %v485 = vld [vmem:[%s291 + $0x1d0] sm:$0xf]
      %v486 = vld [vmem:[%s291 + $0x1d4] sm:$0xf]
      %v487 = vld [vmem:[%s291 + $0x1d8] sm:$0xf]
      %v488 = vld [vmem:[%s291 + $0x1dc] sm:$0xf]
      %v489 = vld [vmem:[%s291 + $0x1e0] sm:$0xf]
      %v490 = vld [vmem:[%s291 + $0x1e4] sm:$0xf]
      %v491 = vld [vmem:[%s291 + $0x1e8] sm:$0xf]
      %v492 = vld [vmem:[%s291 + $0x1ec] sm:$0xf]
      %v493 = vld [vmem:[%s291 + $0x1f0] sm:$0xf]
      %v494 = vld [vmem:[%s291 + $0x1f4] sm:$0xf]
      %v495 = vld [vmem:[%s291 + $0x1f8] sm:$0xf]
      %v496 = vld [vmem:[%s291 + $0x1fc] sm:$0xf]
      %v497 = vld [vmem:[%s291 + $0x200] sm:$0xf]
      %v498 = vld [vmem:[%s291 + $0x204] sm:$0xf]
      %v499 = vld [vmem:[%s291 + $0x208] sm:$0xf]
      %v500 = vld [vmem:[%s291 + $0x20c] sm:$0xf]
      %v501 = vld [vmem:[%s291 + $0x210] sm:$0xf]
      %v502 = vld [vmem:[%s291 + $0x214] sm:$0xf]
      %v503 = vld [vmem:[%s291 + $0x218] sm:$0xf]
      %v504 = vld [vmem:[%s291 + $0x21c] sm:$0xf]
      %v505 = vld [vmem:[%s291 + $0x220] sm:$0xf]
      %v506 = vld [vmem:[%s291 + $0x224] sm:$0xf]
      %v507 = vld [vmem:[%s291 + $0x228] sm:$0xf]
      %v508 = vld [vmem:[%s291 + $0x22c] sm:$0xf]
      %v509 = vld [vmem:[%s291 + $0x230] sm:$0xf]
      %v510 = vld [vmem:[%s291 + $0x234] sm:$0xf]
      %v511 = vld [vmem:[%s291 + $0x238] sm:$0xf]
      %v512 = vld [vmem:[%s291 + $0x23c] sm:$0xf]
      %v553 = vunpack.c.l.b16 %v329
      %v554 = vunpack.c.h.b16 %v329
      %v555 = vunpack.c.l.b16 %v330
      %v556 = vunpack.c.h.b16 %v330
      %v557 = vunpack.c.l.b16 %v331
      %v558 = vunpack.c.h.b16 %v331
      %v559 = vunpack.c.l.b16 %v332
      %v560 = vunpack.c.h.b16 %v332
      %v561 = vunpack.c.l.b16 %v333
      %v562 = vunpack.c.l.b16 %v334
      %v563 = vunpack.c.h.b16 %v334
      %v564 = vunpack.c.l.b16 %v335
      %v565 = vunpack.c.h.b16 %v335
      %v566 = vunpack.c.l.b16 %v336
      %v567 = vunpack.c.h.b16 %v336
      %v568 = vunpack.c.l.b16 %v337
      %v569 = vunpack.c.h.b16 %v337
      %v570 = vunpack.c.l.b16 %v338
      %v571 = vunpack.c.l.b16 %v339
      %v572 = vunpack.c.h.b16 %v339
      %v573 = vunpack.c.l.b16 %v340
      %v574 = vunpack.c.h.b16 %v340
      %v575 = vunpack.c.l.b16 %v341
      %v576 = vunpack.c.h.b16 %v341
      %v577 = vunpack.c.l.b16 %v342
      %v578 = vunpack.c.h.b16 %v342
      %v579 = vunpack.c.l.b16 %v343
      %v580 = vunpack.c.l.b16 %v344
      %v581 = vunpack.c.h.b16 %v344
      %v582 = vunpack.c.l.b16 %v345
      %v583 = vunpack.c.h.b16 %v345
      %v584 = vunpack.c.l.b16 %v346
      %v585 = vunpack.c.h.b16 %v346
      %v586 = vunpack.c.l.b16 %v347
      %v587 = vunpack.c.h.b16 %v347
      %v588 = vunpack.c.l.b16 %v348
      %v589 = vunpack.c.l.b16 %v349
      %v590 = vunpack.c.h.b16 %v349
      %v591 = vunpack.c.l.b16 %v350
      %v592 = vunpack.c.h.b16 %v350
      %v593 = vunpack.c.l.b16 %v351
      %v594 = vunpack.c.h.b16 %v351
      %v595 = vunpack.c.l.b16 %v352
      %v596 = vunpack.c.h.b16 %v352
      %v597 = vunpack.c.l.b16 %v353
      %v598 = vunpack.c.l.b16 %v354
      %v599 = vunpack.c.h.b16 %v354
      %v600 = vunpack.c.l.b16 %v355
      %v601 = vunpack.c.h.b16 %v355
      %v602 = vunpack.c.l.b16 %v356
      %v603 = vunpack.c.h.b16 %v356
      %v604 = vunpack.c.l.b16 %v357
      %v605 = vunpack.c.h.b16 %v357
      %v606 = vunpack.c.l.b16 %v358
      %v607 = vunpack.c.l.b16 %v359
      %v608 = vunpack.c.h.b16 %v359
      %v609 = vunpack.c.l.b16 %v360
      %v610 = vunpack.c.h.b16 %v360
      %v611 = vunpack.c.l.b16 %v361
      %v612 = vunpack.c.h.b16 %v361
      %v613 = vunpack.c.l.b16 %v362
      %v614 = vunpack.c.h.b16 %v362
      %v615 = vunpack.c.l.b16 %v363
      %v616 = vunpack.c.l.b16 %v364
      %v617 = vunpack.c.h.b16 %v364
      %v618 = vunpack.c.l.b16 %v365
      %v619 = vunpack.c.h.b16 %v365
      %v620 = vunpack.c.l.b16 %v366
      %v621 = vunpack.c.h.b16 %v366
      %v622 = vunpack.c.l.b16 %v367
      %v623 = vunpack.c.h.b16 %v367
      %v624 = vunpack.c.l.b16 %v368
      %v625 = vpack.c.b16 %v562, %v553
      %v626 = vpack.c.b16 %v563, %v554
      %v627 = vpack.c.b16 %v564, %v555
      %v628 = vpack.c.b16 %v565, %v556
      %v629 = vpack.c.b16 %v566, %v557
      %v630 = vpack.c.b16 %v567, %v558
      %v631 = vpack.c.b16 %v568, %v559
      %v632 = vpack.c.b16 %v569, %v560
      %v633 = vpack.c.b16 %v570, %v561
      %v634 = vpack.c.b16 %v580, %v571
      %v635 = vpack.c.b16 %v581, %v572
      %v636 = vpack.c.b16 %v582, %v573
      %v637 = vpack.c.b16 %v583, %v574
      %v638 = vpack.c.b16 %v584, %v575
      %v639 = vpack.c.b16 %v585, %v576
      %v640 = vpack.c.b16 %v586, %v577
      %v641 = vpack.c.b16 %v587, %v578
      %v642 = vpack.c.b16 %v588, %v579
      %v643 = vpack.c.b16 %v598, %v589
      %v644 = vpack.c.b16 %v599, %v590
      %v645 = vpack.c.b16 %v600, %v591
      %v646 = vpack.c.b16 %v601, %v592
      %v647 = vpack.c.b16 %v602, %v593
      %v648 = vpack.c.b16 %v603, %v594
      %v649 = vpack.c.b16 %v604, %v595
      %v650 = vpack.c.b16 %v605, %v596
      %v651 = vpack.c.b16 %v606, %v597
      %v652 = vpack.c.b16 %v616, %v607
      %v653 = vpack.c.b16 %v617, %v608
      %v654 = vpack.c.b16 %v618, %v609
      %v655 = vpack.c.b16 %v619, %v610
      %v656 = vpack.c.b16 %v620, %v611
      %v657 = vpack.c.b16 %v621, %v612
      %v658 = vpack.c.b16 %v622, %v613
      %v659 = vpack.c.b16 %v623, %v614
      %v660 = vpack.c.b16 %v624, %v615
      %v841 = vunpack.c.l.b16 %v369
      %v842 = vunpack.c.l.b16 %v370
      %v843 = vunpack.c.l.b16 %v371
      %v844 = vunpack.c.l.b16 %v372
      %v845 = vunpack.c.l.b16 %v373
      %v846 = vunpack.c.l.b16 %v374
      %v847 = vunpack.c.l.b16 %v375
      %v848 = vunpack.c.l.b16 %v376
      %v849 = vunpack.c.l.b16 %v377
      %v850 = vunpack.c.l.b16 %v378
      %v851 = vunpack.c.l.b16 %v379
      %v852 = vunpack.c.l.b16 %v380
      %v853 = vunpack.c.l.b16 %v381
      %v854 = vunpack.c.l.b16 %v382
      %v855 = vunpack.c.l.b16 %v383
      %v856 = vunpack.c.l.b16 %v384
      %v857 = vunpack.c.l.b16 %v385
      %v858 = vunpack.c.l.b16 %v386
      %v859 = vunpack.c.l.b16 %v387
      %v860 = vunpack.c.l.b16 %v388
      %v861 = vunpack.c.l.b16 %v389
      %v862 = vunpack.c.l.b16 %v390
      %v863 = vunpack.c.l.b16 %v391
      %v864 = vunpack.c.l.b16 %v392
      %v865 = vunpack.c.l.b16 %v393
      %v866 = vunpack.c.l.b16 %v394
      %v867 = vunpack.c.l.b16 %v395
      %v868 = vunpack.c.l.b16 %v396
      %v869 = vunpack.c.l.b16 %v397
      %v870 = vunpack.c.l.b16 %v398
      %v871 = vunpack.c.l.b16 %v399
      %v872 = vunpack.c.l.b16 %v400
      %v873 = vunpack.c.l.b16 %v401
      %v874 = vunpack.c.l.b16 %v402
      %v875 = vunpack.c.l.b16 %v403
      %v876 = vunpack.c.l.b16 %v404
      %v877 = vunpack.c.l.b16 %v405
      %v878 = vunpack.c.l.b16 %v406
      %v879 = vunpack.c.l.b16 %v407
      %v880 = vunpack.c.l.b16 %v408
      %v881 = vunpack.c.l.b16 %v409
      %v882 = vunpack.c.l.b16 %v410
      %v883 = vunpack.c.l.b16 %v411
      %v884 = vunpack.c.l.b16 %v412
      %v885 = vunpack.c.l.b16 %v413
      %v886 = vunpack.c.l.b16 %v414
      %v887 = vunpack.c.l.b16 %v415
      %v888 = vunpack.c.l.b16 %v416
      %v889 = vunpack.c.l.b16 %v417
      %v890 = vunpack.c.l.b16 %v418
      %v891 = vunpack.c.l.b16 %v419
      %v892 = vunpack.c.l.b16 %v420
      %v893 = vunpack.c.l.b16 %v421
      %v894 = vunpack.c.l.b16 %v422
      %v895 = vunpack.c.l.b16 %v423
      %v896 = vunpack.c.l.b16 %v424
      %v897 = vunpack.c.l.b16 %v425
      %v898 = vunpack.c.l.b16 %v426
      %v899 = vunpack.c.l.b16 %v427
      %v900 = vunpack.c.l.b16 %v428
      %v901 = vunpack.c.l.b16 %v429
      %v902 = vunpack.c.l.b16 %v430
      %v903 = vunpack.c.l.b16 %v431
      %v904 = vunpack.c.l.b16 %v432
      %v905 = vunpack.c.l.b16 %v433
      %v906 = vunpack.c.l.b16 %v434
      %v907 = vunpack.c.l.b16 %v435
      %v908 = vunpack.c.l.b16 %v436
      %v909 = vunpack.c.l.b16 %v437
      %v910 = vunpack.c.l.b16 %v438
      %v911 = vunpack.c.l.b16 %v439
      %v912 = vunpack.c.l.b16 %v440
      %v913 = vunpack.c.l.b16 %v441
      %v914 = vunpack.c.l.b16 %v442
      %v915 = vunpack.c.l.b16 %v443
      %v916 = vunpack.c.l.b16 %v444
      %v917 = vunpack.c.l.b16 %v445
      %v918 = vunpack.c.l.b16 %v446
      %v919 = vunpack.c.l.b16 %v447
      %v920 = vunpack.c.l.b16 %v448
      %v921 = vunpack.c.l.b16 %v449
      %v922 = vunpack.c.l.b16 %v450
      %v923 = vunpack.c.l.b16 %v451
      %v924 = vunpack.c.l.b16 %v452
      %v925 = vunpack.c.l.b16 %v453
      %v926 = vunpack.c.l.b16 %v454
      %v927 = vunpack.c.l.b16 %v455
      %v928 = vunpack.c.l.b16 %v456
      %v929 = vunpack.c.l.b16 %v457
      %v930 = vunpack.c.l.b16 %v458
      %v931 = vunpack.c.l.b16 %v459
      %v932 = vunpack.c.l.b16 %v460
      %v933 = vunpack.c.l.b16 %v461
      %v934 = vunpack.c.l.b16 %v462
      %v935 = vunpack.c.l.b16 %v463
      %v936 = vunpack.c.l.b16 %v464
      %v937 = vunpack.c.l.b16 %v465
      %v938 = vunpack.c.l.b16 %v466
      %v939 = vunpack.c.l.b16 %v467
      %v940 = vunpack.c.l.b16 %v468
      %v941 = vunpack.c.l.b16 %v469
      %v942 = vunpack.c.l.b16 %v470
      %v943 = vunpack.c.l.b16 %v471
      %v944 = vunpack.c.l.b16 %v472
      %v945 = vunpack.c.l.b16 %v473
      %v946 = vunpack.c.l.b16 %v474
      %v947 = vunpack.c.l.b16 %v475
      %v948 = vunpack.c.l.b16 %v476
      %v949 = vunpack.c.l.b16 %v477
      %v950 = vunpack.c.l.b16 %v478
      %v951 = vunpack.c.l.b16 %v479
      %v952 = vunpack.c.l.b16 %v480
      %v953 = vunpack.c.l.b16 %v481
      %v954 = vunpack.c.l.b16 %v482
      %v955 = vunpack.c.l.b16 %v483
      %v956 = vunpack.c.l.b16 %v484
      %v957 = vunpack.c.l.b16 %v485
      %v958 = vunpack.c.l.b16 %v486
      %v959 = vunpack.c.l.b16 %v487
      %v960 = vunpack.c.l.b16 %v488
      %v961 = vunpack.c.l.b16 %v489
      %v962 = vunpack.c.l.b16 %v490
      %v963 = vunpack.c.l.b16 %v491
      %v964 = vunpack.c.l.b16 %v492
      %v965 = vunpack.c.l.b16 %v493
      %v966 = vunpack.c.l.b16 %v494
      %v967 = vunpack.c.l.b16 %v495
      %v968 = vunpack.c.l.b16 %v496
      %v969 = vunpack.c.l.b16 %v497
      %v970 = vunpack.c.l.b16 %v498
      %v971 = vunpack.c.l.b16 %v499
      %v972 = vunpack.c.l.b16 %v500
      %v973 = vunpack.c.l.b16 %v501
      %v974 = vunpack.c.l.b16 %v502
      %v975 = vunpack.c.l.b16 %v503
      %v976 = vunpack.c.l.b16 %v504
      %v977 = vunpack.c.l.b16 %v505
      %v978 = vunpack.c.l.b16 %v506
      %v979 = vunpack.c.l.b16 %v507
      %v980 = vunpack.c.l.b16 %v508
      %v981 = vunpack.c.l.b16 %v509
      %v982 = vunpack.c.l.b16 %v510
      %v983 = vunpack.c.l.b16 %v511
      %v984 = vunpack.c.l.b16 %v512
      %v985 = vpack.c.b16 %v842, %v841
      %v986 = vpack.c.b16 %v844, %v843
      %v987 = vpack.c.b16 %v846, %v845
      %v988 = vpack.c.b16 %v848, %v847
      %v989 = vpack.c.b16 %v850, %v849
      %v990 = vpack.c.b16 %v852, %v851
      %v991 = vpack.c.b16 %v854, %v853
      %v992 = vpack.c.b16 %v856, %v855
      %v993 = vpack.c.b16 %v858, %v857
      %v994 = vpack.c.b16 %v860, %v859
      %v995 = vpack.c.b16 %v862, %v861
      %v996 = vpack.c.b16 %v864, %v863
      %v997 = vpack.c.b16 %v866, %v865
      %v998 = vpack.c.b16 %v868, %v867
      %v999 = vpack.c.b16 %v870, %v869
      %v1000 = vpack.c.b16 %v872, %v871
      %v1001 = vpack.c.b16 %v874, %v873
      %v1002 = vpack.c.b16 %v876, %v875
      %v1003 = vpack.c.b16 %v878, %v877
      %v1004 = vpack.c.b16 %v880, %v879
      %v1005 = vpack.c.b16 %v882, %v881
      %v1006 = vpack.c.b16 %v884, %v883
      %v1007 = vpack.c.b16 %v886, %v885
      %v1008 = vpack.c.b16 %v888, %v887
      %v1009 = vpack.c.b16 %v890, %v889
      %v1010 = vpack.c.b16 %v892, %v891
      %v1011 = vpack.c.b16 %v894, %v893
      %v1012 = vpack.c.b16 %v896, %v895
      %v1013 = vpack.c.b16 %v898, %v897
      %v1014 = vpack.c.b16 %v900, %v899
      %v1015 = vpack.c.b16 %v902, %v901
      %v1016 = vpack.c.b16 %v904, %v903
      %v1017 = vpack.c.b16 %v906, %v905
      %v1018 = vpack.c.b16 %v908, %v907
      %v1019 = vpack.c.b16 %v910, %v909
      %v1020 = vpack.c.b16 %v912, %v911
      %v1021 = vpack.c.b16 %v914, %v913
      %v1022 = vpack.c.b16 %v916, %v915
      %v1023 = vpack.c.b16 %v918, %v917
      %v1024 = vpack.c.b16 %v920, %v919
      %v1025 = vpack.c.b16 %v922, %v921
      %v1026 = vpack.c.b16 %v924, %v923
      %v1027 = vpack.c.b16 %v926, %v925
      %v1028 = vpack.c.b16 %v928, %v927
      %v1029 = vpack.c.b16 %v930, %v929
      %v1030 = vpack.c.b16 %v932, %v931
      %v1031 = vpack.c.b16 %v934, %v933
      %v1032 = vpack.c.b16 %v936, %v935
      %v1033 = vpack.c.b16 %v938, %v937
      %v1034 = vpack.c.b16 %v940, %v939
      %v1035 = vpack.c.b16 %v942, %v941
      %v1036 = vpack.c.b16 %v944, %v943
      %v1037 = vpack.c.b16 %v946, %v945
      %v1038 = vpack.c.b16 %v948, %v947
      %v1039 = vpack.c.b16 %v950, %v949
      %v1040 = vpack.c.b16 %v952, %v951
      %v1041 = vpack.c.b16 %v954, %v953
      %v1042 = vpack.c.b16 %v956, %v955
      %v1043 = vpack.c.b16 %v958, %v957
      %v1044 = vpack.c.b16 %v960, %v959
      %v1045 = vpack.c.b16 %v962, %v961
      %v1046 = vpack.c.b16 %v964, %v963
      %v1047 = vpack.c.b16 %v966, %v965
      %v1048 = vpack.c.b16 %v968, %v967
      %v1049 = vpack.c.b16 %v970, %v969
      %v1050 = vpack.c.b16 %v972, %v971
      %v1051 = vpack.c.b16 %v974, %v973
      %v1052 = vpack.c.b16 %v976, %v975
      %v1053 = vpack.c.b16 %v978, %v977
      %v1054 = vpack.c.b16 %v980, %v979
      %v1055 = vpack.c.b16 %v982, %v981
      %v1056 = vpack.c.b16 %v984, %v983
      %1129 = vmatprep.subr.bf16.mxu0 0
      %1130 = vmatpush1.bf16.msra.mxu0 %v992
      %1131 = vmatprep.subr.bf16.mxu0 0
      %1132 = vmatpush1.bf16.msra.mxu0 %v991
      %1133 = vmatprep.subr.bf16.mxu0 0
      %1134 = vmatpush1.bf16.msra.mxu0 %v990
      %1135 = vmatprep.subr.bf16.mxu0 0
      %1136 = vmatpush1.bf16.msra.mxu0 %v989
      %1137 = vmatprep.subr.bf16.mxu0 0
      %1138 = vmatpush1.bf16.msra.mxu0 %v988
      %1139 = vmatprep.subr.bf16.mxu0 0
      %1140 = vmatpush1.bf16.msra.mxu0 %v987
      %1141 = vmatprep.subr.bf16.mxu0 0
      %1142 = vmatpush1.bf16.msra.mxu0 %v986
      %1143 = vmatprep.subr.bf16.mxu0 0
      %1144 = vmatpush1.bf16.msra.mxu0 %v985
      %1145 = vmatprep.subr.bf16.mxu0 0
      %1146 = vmatpush2.bf16.msra.mxu0 %v1000
      %1147 = vmatprep.subr.bf16.mxu0 0
      %1148 = vmatpush2.bf16.msra.mxu0 %v999
      %1149 = vmatprep.subr.bf16.mxu0 0
      %1150 = vmatpush2.bf16.msra.mxu0 %v998
      %1151 = vmatprep.subr.bf16.mxu0 0
      %1152 = vmatpush2.bf16.msra.mxu0 %v997
      %1153 = vmatprep.subr.bf16.mxu0 0
      %1154 = vmatpush2.bf16.msra.mxu0 %v996
      %1155 = vmatprep.subr.bf16.mxu0 0
      %1156 = vmatpush2.bf16.msra.mxu0 %v995
      %1157 = vmatprep.subr.bf16.mxu0 0
      %1158 = vmatpush2.bf16.msra.mxu0 %v994
      %1159 = vmatprep.subr.bf16.mxu0 0
      %1160 = vmatpush2.bf16.msra.mxu0 %v993
      %1161 = vmatprep.mubr.bf16.mxu0 %v626
      %1162 = vmatmul.mubr.bf16.gmra.mxu0 %v625
      %v1163 = vpop.f32.mrf.mxu0
      %v1164 = vadd.f32 0.0, %v1163
      %v1165 = vpop.f32.mrf.mxu0
      %v1166 = vpop.f32.mrf.mxu0
      %v1167 = vadd.f32 0.0, %v1166
      %v1168 = vpop.f32.mrf.mxu0
      %1169 = vmatprep.mubr.bf16.mxu0 %v635
      %1170 = vmatmul.mubr.bf16.gmra.mxu0 %v634
      %v1171 = vpop.f32.mrf.mxu0
      %v1172 = vadd.f32 0.0, %v1171
      %v1173 = vpop.f32.mrf.mxu0
      %v1174 = vpop.f32.mrf.mxu0
      %v1175 = vadd.f32 0.0, %v1174
      %v1176 = vpop.f32.mrf.mxu0
      %1177 = vmatprep.mubr.bf16.mxu0 %v644
      %1178 = vmatmul.mubr.bf16.gmra.mxu0 %v643
      %v1179 = vpop.f32.mrf.mxu0
      %v1180 = vadd.f32 0.0, %v1179
      %v1181 = vpop.f32.mrf.mxu0
      %v1182 = vpop.f32.mrf.mxu0
      %v1183 = vadd.f32 0.0, %v1182
      %v1184 = vpop.f32.mrf.mxu0
      %1185 = vmatprep.mubr.bf16.mxu0 %v653
      %1186 = vmatmul.mubr.bf16.gmra.mxu0 %v652
      %v1187 = vpop.f32.mrf.mxu0
      %v1188 = vadd.f32 0.0, %v1187
      %v1189 = vpop.f32.mrf.mxu0
      %v1190 = vpop.f32.mrf.mxu0
      %v1191 = vadd.f32 0.0, %v1190
      %v1192 = vpop.f32.mrf.mxu0
      %1193 = vdwg.mxu0
      %1194 = vmatprep.subr.bf16.mxu0 0
      %1195 = vmatpush1.bf16.msra.mxu0 %v1008
      %1196 = vmatprep.subr.bf16.mxu0 0
      %1197 = vmatpush1.bf16.msra.mxu0 %v1007
      %1198 = vmatprep.subr.bf16.mxu0 0
      %1199 = vmatpush1.bf16.msra.mxu0 %v1006
      %1200 = vmatprep.subr.bf16.mxu0 0
      %1201 = vmatpush1.bf16.msra.mxu0 %v1005
      %1202 = vmatprep.subr.bf16.mxu0 0
      %1203 = vmatpush1.bf16.msra.mxu0 %v1004
      %1204 = vmatprep.subr.bf16.mxu0 0
      %1205 = vmatpush1.bf16.msra.mxu0 %v1003
      %1206 = vmatprep.subr.bf16.mxu0 0
      %1207 = vmatpush1.bf16.msra.mxu0 %v1002
      %1208 = vmatprep.subr.bf16.mxu0 0
      %1209 = vmatpush1.bf16.msra.mxu0 %v1001
      %1210 = vmatprep.subr.bf16.mxu0 0
      %1211 = vmatpush2.bf16.msra.mxu0 %v1016
      %1212 = vmatprep.subr.bf16.mxu0 0
      %1213 = vmatpush2.bf16.msra.mxu0 %v1015
      %1214 = vmatprep.subr.bf16.mxu0 0
      %1215 = vmatpush2.bf16.msra.mxu0 %v1014
      %1216 = vmatprep.subr.bf16.mxu0 0
      %1217 = vmatpush2.bf16.msra.mxu0 %v1013
      %1218 = vmatprep.subr.bf16.mxu0 0
      %1219 = vmatpush2.bf16.msra.mxu0 %v1012
      %1220 = vmatprep.subr.bf16.mxu0 0
      %1221 = vmatpush2.bf16.msra.mxu0 %v1011
      %1222 = vmatprep.subr.bf16.mxu0 0
      %1223 = vmatpush2.bf16.msra.mxu0 %v1010
      %1224 = vmatprep.subr.bf16.mxu0 0
      %1225 = vmatpush2.bf16.msra.mxu0 %v1009
      %1226 = vmatprep.mubr.bf16.mxu0 %v628
      %1227 = vmatmul.mubr.bf16.gmra.mxu0 %v627
      %v1228 = vpop.f32.mrf.mxu0
      %v1229 = vadd.f32 %v1164, %v1228
      %v1230 = vpop.f32.mrf.mxu0
      %v1231 = vpop.f32.mrf.mxu0
      %v1232 = vadd.f32 %v1167, %v1231
      %v1233 = vpop.f32.mrf.mxu0
      %1234 = vmatprep.mubr.bf16.mxu0 %v637
      %1235 = vmatmul.mubr.bf16.gmra.mxu0 %v636
      %v1236 = vpop.f32.mrf.mxu0
      %v1237 = vadd.f32 %v1172, %v1236
      %v1238 = vpop.f32.mrf.mxu0
      %v1239 = vpop.f32.mrf.mxu0
      %v1240 = vadd.f32 %v1175, %v1239
      %v1241 = vpop.f32.mrf.mxu0
      %1242 = vmatprep.mubr.bf16.mxu0 %v646
      %1243 = vmatmul.mubr.bf16.gmra.mxu0 %v645
      %v1244 = vpop.f32.mrf.mxu0
      %v1245 = vadd.f32 %v1180, %v1244
      %v1246 = vpop.f32.mrf.mxu0
      %v1247 = vpop.f32.mrf.mxu0
      %v1248 = vadd.f32 %v1183, %v1247
      %v1249 = vpop.f32.mrf.mxu0
      %1250 = vmatprep.mubr.bf16.mxu0 %v655
      %1251 = vmatmul.mubr.bf16.gmra.mxu0 %v654
      %v1252 = vpop.f32.mrf.mxu0
      %v1253 = vadd.f32 %v1188, %v1252
      %v1254 = vpop.f32.mrf.mxu0
      %v1255 = vpop.f32.mrf.mxu0
      %v1256 = vadd.f32 %v1191, %v1255
      %v1257 = vpop.f32.mrf.mxu0
      %1258 = vdwg.mxu0
      %1259 = vmatprep.subr.bf16.mxu0 0
      %1260 = vmatpush1.bf16.msra.mxu0 %v1024
      %1261 = vmatprep.subr.bf16.mxu0 0
      %1262 = vmatpush1.bf16.msra.mxu0 %v1023
      %1263 = vmatprep.subr.bf16.mxu0 0
      %1264 = vmatpush1.bf16.msra.mxu0 %v1022
      %1265 = vmatprep.subr.bf16.mxu0 0
      %1266 = vmatpush1.bf16.msra.mxu0 %v1021
      %1267 = vmatprep.subr.bf16.mxu0 0
      %1268 = vmatpush1.bf16.msra.mxu0 %v1020
      %1269 = vmatprep.subr.bf16.mxu0 0
      %1270 = vmatpush1.bf16.msra.mxu0 %v1019
      %1271 = vmatprep.subr.bf16.mxu0 0
      %1272 = vmatpush1.bf16.msra.mxu0 %v1018
      %1273 = vmatprep.subr.bf16.mxu0 0
      %1274 = vmatpush1.bf16.msra.mxu0 %v1017
      %1275 = vmatprep.subr.bf16.mxu0 0
      %1276 = vmatpush2.bf16.msra.mxu0 %v1032
      %1277 = vmatprep.subr.bf16.mxu0 0
      %1278 = vmatpush2.bf16.msra.mxu0 %v1031
      %1279 = vmatprep.subr.bf16.mxu0 0
      %1280 = vmatpush2.bf16.msra.mxu0 %v1030
      %1281 = vmatprep.subr.bf16.mxu0 0
      %1282 = vmatpush2.bf16.msra.mxu0 %v1029
      %1283 = vmatprep.subr.bf16.mxu0 0
      %1284 = vmatpush2.bf16.msra.mxu0 %v1028
      %1285 = vmatprep.subr.bf16.mxu0 0
      %1286 = vmatpush2.bf16.msra.mxu0 %v1027
      %1287 = vmatprep.subr.bf16.mxu0 0
      %1288 = vmatpush2.bf16.msra.mxu0 %v1026
      %1289 = vmatprep.subr.bf16.mxu0 0
      %1290 = vmatpush2.bf16.msra.mxu0 %v1025
      %1291 = vmatprep.mubr.bf16.mxu0 %v630
      %1292 = vmatmul.mubr.bf16.gmra.mxu0 %v629
      %v1293 = vpop.f32.mrf.mxu0
      %v1294 = vadd.f32 %v1229, %v1293
      %v1295 = vpop.f32.mrf.mxu0
      %v1296 = vpop.f32.mrf.mxu0
      %v1297 = vadd.f32 %v1232, %v1296
      %v1298 = vpop.f32.mrf.mxu0
      %1299 = vmatprep.mubr.bf16.mxu0 %v639
      %1300 = vmatmul.mubr.bf16.gmra.mxu0 %v638
      %v1301 = vpop.f32.mrf.mxu0
      %v1302 = vadd.f32 %v1237, %v1301
      %v1303 = vpop.f32.mrf.mxu0
      %v1304 = vpop.f32.mrf.mxu0
      %v1305 = vadd.f32 %v1240, %v1304
      %v1306 = vpop.f32.mrf.mxu0
      %1307 = vmatprep.mubr.bf16.mxu0 %v648
      %1308 = vmatmul.mubr.bf16.gmra.mxu0 %v647
      %v1309 = vpop.f32.mrf.mxu0
      %v1310 = vadd.f32 %v1245, %v1309
      %v1311 = vpop.f32.mrf.mxu0
      %v1312 = vpop.f32.mrf.mxu0
      %v1313 = vadd.f32 %v1248, %v1312
      %v1314 = vpop.f32.mrf.mxu0
      %1315 = vmatprep.mubr.bf16.mxu0 %v657
      %1316 = vmatmul.mubr.bf16.gmra.mxu0 %v656
      %v1317 = vpop.f32.mrf.mxu0
      %v1318 = vadd.f32 %v1253, %v1317
      %v1319 = vpop.f32.mrf.mxu0
      %v1320 = vpop.f32.mrf.mxu0
      %v1321 = vadd.f32 %v1256, %v1320
      %v1322 = vpop.f32.mrf.mxu0
      %1323 = vdwg.mxu0
      %1324 = vmatprep.subr.bf16.mxu0 0
      %1325 = vmatpush1.bf16.msra.mxu0 %v1040
      %1326 = vmatprep.subr.bf16.mxu0 0
      %1327 = vmatpush1.bf16.msra.mxu0 %v1039
      %1328 = vmatprep.subr.bf16.mxu0 0
      %1329 = vmatpush1.bf16.msra.mxu0 %v1038
      %1330 = vmatprep.subr.bf16.mxu0 0
      %1331 = vmatpush1.bf16.msra.mxu0 %v1037
      %1332 = vmatprep.subr.bf16.mxu0 0
      %1333 = vmatpush1.bf16.msra.mxu0 %v1036
      %1334 = vmatprep.subr.bf16.mxu0 0
      %1335 = vmatpush1.bf16.msra.mxu0 %v1035
      %1336 = vmatprep.subr.bf16.mxu0 0
      %1337 = vmatpush1.bf16.msra.mxu0 %v1034
      %1338 = vmatprep.subr.bf16.mxu0 0
      %1339 = vmatpush1.bf16.msra.mxu0 %v1033
      %1340 = vmatprep.subr.bf16.mxu0 0
      %1341 = vmatpush2.bf16.msra.mxu0 %v1048
      %1342 = vmatprep.subr.bf16.mxu0 0
      %1343 = vmatpush2.bf16.msra.mxu0 %v1047
      %1344 = vmatprep.subr.bf16.mxu0 0
      %1345 = vmatpush2.bf16.msra.mxu0 %v1046
      %1346 = vmatprep.subr.bf16.mxu0 0
      %1347 = vmatpush2.bf16.msra.mxu0 %v1045
      %1348 = vmatprep.subr.bf16.mxu0 0
      %1349 = vmatpush2.bf16.msra.mxu0 %v1044
      %1350 = vmatprep.subr.bf16.mxu0 0
      %1351 = vmatpush2.bf16.msra.mxu0 %v1043
      %1352 = vmatprep.subr.bf16.mxu0 0
      %1353 = vmatpush2.bf16.msra.mxu0 %v1042
      %1354 = vmatprep.subr.bf16.mxu0 0
      %1355 = vmatpush2.bf16.msra.mxu0 %v1041
      %1356 = vmatprep.mubr.bf16.mxu0 %v632
      %1357 = vmatmul.mubr.bf16.gmra.mxu0 %v631
      %v1358 = vpop.f32.mrf.mxu0
      %v1359 = vadd.f32 %v1294, %v1358
      %v1360 = vpop.f32.mrf.mxu0
      %v1361 = vpop.f32.mrf.mxu0
      %v1362 = vadd.f32 %v1297, %v1361
      %v1363 = vpop.f32.mrf.mxu0
      %1364 = vmatprep.mubr.bf16.mxu0 %v641
      %1365 = vmatmul.mubr.bf16.gmra.mxu0 %v640
      %v1366 = vpop.f32.mrf.mxu0
      %v1367 = vadd.f32 %v1302, %v1366
      %v1368 = vpop.f32.mrf.mxu0
      %v1369 = vpop.f32.mrf.mxu0
      %v1370 = vadd.f32 %v1305, %v1369
      %v1371 = vpop.f32.mrf.mxu0
      %1372 = vmatprep.mubr.bf16.mxu0 %v650
      %1373 = vmatmul.mubr.bf16.gmra.mxu0 %v649
      %v1374 = vpop.f32.mrf.mxu0
      %v1375 = vadd.f32 %v1310, %v1374
      %v1376 = vpop.f32.mrf.mxu0
      %v1377 = vpop.f32.mrf.mxu0
      %v1378 = vadd.f32 %v1313, %v1377
      %v1379 = vpop.f32.mrf.mxu0
      %1380 = vmatprep.mubr.bf16.mxu0 %v659
      %1381 = vmatmul.mubr.bf16.gmra.mxu0 %v658
      %v1382 = vpop.f32.mrf.mxu0
      %v1383 = vadd.f32 %v1318, %v1382
      %v1384 = vpop.f32.mrf.mxu0
      %v1385 = vpop.f32.mrf.mxu0
      %v1386 = vadd.f32 %v1321, %v1385
      %v1387 = vpop.f32.mrf.mxu0
      %1388 = vdwg.mxu0
      %1389 = vmatprep.subr.bf16.mxu0 0
      %1390 = vmatpush1.bf16.msra.mxu0 %v1056
      %1391 = vmatprep.subr.bf16.mxu0 0
      %1392 = vmatpush1.bf16.msra.mxu0 %v1055
      %1393 = vmatprep.subr.bf16.mxu0 0
      %1394 = vmatpush1.bf16.msra.mxu0 %v1054
      %1395 = vmatprep.subr.bf16.mxu0 0
      %1396 = vmatpush1.bf16.msra.mxu0 %v1053
      %1397 = vmatprep.subr.bf16.mxu0 0
      %1398 = vmatpush1.bf16.msra.mxu0 %v1052
      %1399 = vmatprep.subr.bf16.mxu0 0
      %1400 = vmatpush1.bf16.msra.mxu0 %v1051
      %1401 = vmatprep.subr.bf16.mxu0 0
      %1402 = vmatpush1.bf16.msra.mxu0 %v1050
      %1403 = vmatprep.subr.bf16.mxu0 0
      %1404 = vmatpush1.bf16.msra.mxu0 %v1049
      %1405 = vmatprep.subr.bf16.mxu0 0
      %1406 = vmatpush2.bf16.msra.mxu0 0
      %1407 = vmatprep.subr.bf16.mxu0 0
      %1408 = vmatpush2.bf16.msra.mxu0 0
      %1409 = vmatprep.subr.bf16.mxu0 0
      %1410 = vmatpush2.bf16.msra.mxu0 0
      %1411 = vmatprep.subr.bf16.mxu0 0
      %1412 = vmatpush2.bf16.msra.mxu0 0
      %1413 = vmatprep.subr.bf16.mxu0 0
      %1414 = vmatpush2.bf16.msra.mxu0 0
      %1415 = vmatprep.subr.bf16.mxu0 0
      %1416 = vmatpush2.bf16.msra.mxu0 0
      %1417 = vmatprep.subr.bf16.mxu0 0
      %1418 = vmatpush2.bf16.msra.mxu0 0
      %1419 = vmatprep.subr.bf16.mxu0 0
      %1420 = vmatpush2.bf16.msra.mxu0 0
      %1421 = vmatprep.mubr.bf16.mxu0 0
      %1422 = vmatmul.mubr.bf16.gmra.mxu0 %v633
      %v1423 = vpop.f32.mrf.mxu0
      %v1424 = vadd.f32 %v1359, %v1423
      %v1425 = vpop.f32.mrf.mxu0
      %v1426 = vpop.f32.mrf.mxu0
      %v1427 = vadd.f32 %v1362, %v1426
      %v1428 = vpop.f32.mrf.mxu0
      %1429 = vmatprep.mubr.bf16.mxu0 0
      %1430 = vmatmul.mubr.bf16.gmra.mxu0 %v642
      %v1431 = vpop.f32.mrf.mxu0
      %v1432 = vadd.f32 %v1367, %v1431
      %v1433 = vpop.f32.mrf.mxu0
      %v1434 = vpop.f32.mrf.mxu0
      %v1435 = vadd.f32 %v1370, %v1434
      %v1436 = vpop.f32.mrf.mxu0
      %1437 = vmatprep.mubr.bf16.mxu0 0
      %1438 = vmatmul.mubr.bf16.gmra.mxu0 %v651
      %v1439 = vpop.f32.mrf.mxu0
      %v1440 = vadd.f32 %v1375, %v1439
      %v1441 = vpop.f32.mrf.mxu0
      %v1442 = vpop.f32.mrf.mxu0
      %v1443 = vadd.f32 %v1378, %v1442
      %v1444 = vpop.f32.mrf.mxu0
      %1445 = vmatprep.mubr.bf16.mxu0 0
      %1446 = vmatmul.mubr.bf16.gmra.mxu0 %v660
      %v1447 = vpop.f32.mrf.mxu0
      %v1448 = vadd.f32 %v1383, %v1447
      %v1449 = vpop.f32.mrf.mxu0
      %v1450 = vpop.f32.mrf.mxu0
      %v1451 = vadd.f32 %v1386, %v1450
      %v1452 = vpop.f32.mrf.mxu0
      %1453 = vdwg.mxu0
      %v1454 = vadd.f32 %v321, %v1424
      %v1455 = vadd.f32 %v322, %v1427
      %v1456 = vadd.f32 %v323, %v1432
      %v1457 = vadd.f32 %v324, %v1435
      %v1458 = vadd.f32 %v325, %v1440
      %v1459 = vadd.f32 %v326, %v1443
      %v1460 = vadd.f32 %v327, %v1448
      %v1461 = vadd.f32 %v328, %v1451
      %1462 = vst [vmem:[#allocation2] sm:$0xff] %v1454
      %1463 = vst [vmem:[#allocation2 + $0x8] sm:$0xff] %v1455
      %1464 = vst [vmem:[#allocation2 + $0x10] sm:$0xff] %v1456
      %1465 = vst [vmem:[#allocation2 + $0x18] sm:$0xff] %v1457
      %1466 = vst [vmem:[#allocation2 + $0x20] sm:$0xff] %v1458
      %1467 = vst [vmem:[#allocation2 + $0x28] sm:$0xff] %v1459
      %1468 = vst [vmem:[#allocation2 + $0x30] sm:$0xff] %v1460
      %1469 = vst [vmem:[#allocation2 + $0x38] sm:$0xff] %v1461
      // Predicated region
      $region41: #{_lambda_.8} parent=35 // pred_check
        %p1470 = pneg %p309
      $region42: #{_lambda_.8} parent=35 // pred_check_branch
        %1472 = sbr.rel (%p1470) target = $region44
      $region43: #{_lambda_.8} parent=35 // pred_region
        %v1473 = vld [vmem:[#allocation2] sm:$0xff]
        %v1474 = vld [vmem:[#allocation2 + $0x8] sm:$0xff]
        %v1475 = vld [vmem:[#allocation2 + $0x10] sm:$0xff]
        %v1476 = vld [vmem:[#allocation2 + $0x18] sm:$0xff]
        %v1477 = vld [vmem:[#allocation2 + $0x20] sm:$0xff]
        %v1478 = vld [vmem:[#allocation2 + $0x28] sm:$0xff]
        %v1479 = vld [vmem:[#allocation2 + $0x30] sm:$0xff]
        %v1480 = vld [vmem:[#allocation2 + $0x38] sm:$0xff]
        %v1481 = vld [vmem:[%s295] sm:$0x1]
        %v1483 = vlaneseq
        %v1484 = vshrl.u32 %v1483, 7
        %v1485 = vsub.s32 0, %v1484
        %v1486 = vrot.slane %v1481, %v1485
        %v1488 = vmul.f32 %v1473, %v1486
        %v1489 = vmul.f32 %v1474, %v1486
        %v1490 = vmul.f32 %v1475, %v1486
        %v1491 = vmul.f32 %v1476, %v1486
        %v1492 = vmul.f32 %v1477, %v1486
        %v1493 = vmul.f32 %v1478, %v1486
        %v1494 = vmul.f32 %v1479, %v1486
        %v1495 = vmul.f32 %v1480, %v1486
        %v1496 = vld [vmem:[%s298] sm:$0x1]
        %v1498 = vlaneseq
        %v1499 = vshrl.u32 %v1498, 7
        %v1500 = vsub.s32 0, %v1499
        %v1501 = vrot.slane %v1496, %v1500
        %v1503 = vadd.f32 %v1488, %v1501
        %v1504 = vadd.f32 %v1489, %v1501
        %v1505 = vadd.f32 %v1490, %v1501
        %v1506 = vadd.f32 %v1491, %v1501
        %v1507 = vadd.f32 %v1492, %v1501
        %v1508 = vadd.f32 %v1493, %v1501
        %v1509 = vadd.f32 %v1494, %v1501
        %v1510 = vadd.f32 %v1495, %v1501
        %v1511 = vmax.f32 %v1503, 0.0
        %v1512 = vmax.f32 %v1504, 0.0
        %v1513 = vmax.f32 %v1505, 0.0
        %v1514 = vmax.f32 %v1506, 0.0
        %v1515 = vmax.f32 %v1507, 0.0
        %v1516 = vmax.f32 %v1508, 0.0
        %v1517 = vmax.f32 %v1509, 0.0
        %v1518 = vmax.f32 %v1510, 0.0
        %v1519 = vpack.c.bf16 %v1512, %v1511
        %v1520 = vpack.c.bf16 %v1514, %v1513
        %v1521 = vpack.c.bf16 %v1516, %v1515
        %v1522 = vpack.c.bf16 %v1518, %v1517
        %v1527 = vunpack.c.l.b16 %v1519
        %v1528 = vunpack.c.h.b16 %v1519
        %v1529 = vunpack.c.l.b16 %v1520
        %v1530 = vunpack.c.h.b16 %v1520
        %v1531 = vunpack.c.l.b16 %v1521
        %v1532 = vunpack.c.h.b16 %v1521
        %v1533 = vunpack.c.l.b16 %v1522
        %v1534 = vunpack.c.h.b16 %v1522
        %v1535 = vpack.c.b16 %v1527, %v1527
        %v1536 = vpack.c.b16 %v1528, %v1528
        %v1537 = vpack.c.b16 %v1529, %v1529
        %v1538 = vpack.c.b16 %v1530, %v1530
        %v1539 = vpack.c.b16 %v1531, %v1531
        %v1540 = vpack.c.b16 %v1532, %v1532
        %v1541 = vpack.c.b16 %v1533, %v1533
        %v1542 = vpack.c.b16 %v1534, %v1534
        %1551 = vst [vmem:[%s306] sm:$0xf] %v1535
        %1552 = vst [vmem:[%s306 + $0x4] sm:$0xf] %v1536
        %1553 = vst [vmem:[%s306 + $0x8] sm:$0xf] %v1537
        %1554 = vst [vmem:[%s306 + $0xc] sm:$0xf] %v1538
        %1555 = vst [vmem:[%s306 + $0x10] sm:$0xf] %v1539
        %1556 = vst [vmem:[%s306 + $0x14] sm:$0xf] %v1540
        %1557 = vst [vmem:[%s306 + $0x18] sm:$0xf] %v1541
        %1558 = vst [vmem:[%s306 + $0x1c] sm:$0xf] %v1542
      $region44: #{_lambda_.8} parent=35 // pred_fallthru
        _
      %s1559 = smul.u32 8, %s20
      %p1560 = scmp.lt.s32.totalorder %s1559, 15
      %s1561 = scalar_select %p1560, %s1559, 15
      %p1562 = scmp.lt.s32.totalorder %s21, 0
      %s1563 = scalar_select %p1562, %s21, 0
      %s1564 = sadd.s32 %s1563, %s1561
      %s1565 = smul.addr %s1564, 4
      %s1566 = scalar_lea.vmem %s4, %s1565
      // Predicated region
      $region45: #{_lambda_.8} parent=35 // pred_check
        %p1567 = pneg %p162
      $region46: #{_lambda_.8} parent=35 // pred_check_branch
        %1569 = sbr.rel (%p1567) target = $region48
      $region47: #{_lambda_.8} parent=35 // pred_region
        %s1570 = smul.u32 8, %s20
      $region48: #{_lambda_.8} parent=35 // pred_fallthru
        _
    $region36: #{_lambda_.8} parent=5 // pred_fallthru
      _
    %p1571 = scmp.le.s32.totalorder 2, %s10
    // Predicated region
    $region49: #{_lambda_.8} parent=5 // pred_check
      %p1572 = pneg %p1571
    $region50: #{_lambda_.8} parent=5 // pred_check_branch
      %1574 = sbr.rel (%p1572) target = $region52
    $region51: #{_lambda_.8} parent=5 // pred_region
      %s1575 = ssub.s32 %s10, 2
      // Predicated region
      $region53: #{_lambda_.8} parent=51 // pred_check
        %p1576 = pneg %p168
      $region54: #{_lambda_.8} parent=51 // pred_check_branch
        %1578 = sbr.rel (%p1576) target = $region56
      $region55: #{_lambda_.8} parent=51 // pred_region
        %s1579 = smul.u32 8, %s23
        %p1580 = scmp.lt.s32.totalorder %s1579, 15
        %s1581 = scalar_select %p1580, %s1579, 15
        %p1582 = scmp.lt.s32.totalorder %s24, 0
        %s1583 = scalar_select %p1582, %s24, 0
        %s1584 = sadd.s32 %s1583, %s1581
        %s1585 = smul.addr %s1584, 4
        %s1586 = scalar_lea.vmem %s4, %s1585
      $region56: #{_lambda_.8} parent=51 // pred_fallthru
        _
    $region52: #{_lambda_.8} parent=5 // pred_fallthru
      _
  $region6: #{_lambda_.8} parent=0 // loop_footer
    %s14 = sadd.s32 1, %s10
  $region7: #{_lambda_.8} parent=0 // loop_footer_branch
    %9 = sbr.rel target = $region3
  $region8: #{_lambda_.8} parent=0 // loop_exit
    _

</llo_original>
